<compile_context>
chip_gen: v7x
topology: tpu7x:2x2x1
jax: 0.10.0
libtpu: 0.0.40
codegen_flags: <defaults>
</compile_context>

<pallas_src>
import math
import functools

import jax
import jax.numpy as jnp
from jax.experimental import pallas as pl
from jax.experimental.pallas import tpu as pltpu

NEG_INF = -1e18


# ----------------------------------------------------------------------------
# in-kernel math helpers
# ----------------------------------------------------------------------------
def _layer_norm(x, g, b, eps=1e-6):
    # single-pass: E[x] and E[x^2] computed independently (better ILP than the
    # two-pass mean / centered-variance form)
    m = jnp.mean(x, axis=-1, keepdims=True)
    m2 = jnp.mean(x * x, axis=-1, keepdims=True)
    var = jnp.maximum(m2 - m * m, 0.0)
    return (x - m) * jax.lax.rsqrt(var + eps) * g + b


def _gelu(x):
    # PreSumm's tanh-approximated gelu
    return 0.5 * x * (1.0 + jnp.tanh(
        math.sqrt(2.0 / math.pi) * (x + 0.044715 * x ** 3)))


# ----------------------------------------------------------------------------
# fused encoder kernel: one grid step = one (batch, layer) pair
# ----------------------------------------------------------------------------
def _fused_encoder_kernel(x_ref, bias_ref, maskc_ref, pe_ref,
                          wqkv_ref, bqkv_ref, wo3_ref, bo_ref,
                          ln_g_ref, ln_b_ref,
                          ff_g_ref, ff_b_ref, w1_ref, b1_ref, w2_ref, b2_ref,
                          fin_g_ref, fin_b_ref, fw_ref, fb_ref,
                          scores_ref, *rest,
                          heads, q_block, ff_chunk, return_attn):
    if return_attn:
        attn_ref, x_res, xn_bf, qkv_bf = rest
    else:
        x_res, xn_bf, qkv_bf = rest

    l = pl.program_id(1)
    n_layers = pl.num_programs(1)

    S, D = x_res.shape
    dh = D // heads
    F = w1_ref.shape[-1]
    n_qblk = S // q_block
    n_ffc = F // ff_chunk
    bf16 = jnp.bfloat16

    # ---- layer input: prep at layer 0, else LayerNorm of the carried act ----
    @pl.when(l == 0)
    def _():
        # fused prep: x = top_vecs * mask[:, :, None] + pos_emb
        xp = x_ref[0] * maskc_ref[0] + pe_ref[0]
        x_res[...] = xp
        xn_bf[...] = xp.astype(bf16)        # PreSumm: no pre-attn LN on layer 0

    @pl.when(l != 0)
    def _():
        xn_bf[...] = _layer_norm(x_res[...], ln_g_ref[0],
                                 ln_b_ref[0]).astype(bf16)

    # ---- fused QKV projection (Q pre-scaled by 1/sqrt(dh) on the host) ------
    qkv_bf[...] = (jnp.dot(xn_bf[...], wqkv_ref[0],
                           preferred_element_type=jnp.float32)
                   + bqkv_ref[0]).astype(bf16)

    # residual base: x + out-proj bias; heads accumulate into it below
    x_res[...] = x_res[...] + bo_ref[0]

    # key-side additive mask, broadcast once (shared by all heads / row tiles)
    bias_blk = jnp.broadcast_to(bias_ref[0], (q_block, S))

    # ---- per-head attention, row-blocked softmax, per-head out-projection ---
    for h in range(heads):
        lo = h * dh
        kh = qkv_bf[:, D + lo:D + lo + dh]            # (S, dh) bf16
        vh = qkv_bf[:, 2 * D + lo:2 * D + lo + dh]    # (S, dh) bf16
        wo_h = wo3_ref[0, h]                          # (dh, D) bf16
        for r in range(n_qblk):
            r0 = r * q_block
            qh = qkv_bf[r0:r0 + q_block, lo:lo + dh]  # (qb, dh) bf16
            s = jax.lax.dot_general(qh, kh, (((1,), (1,)), ((), ())),
                                    preferred_element_type=jnp.float32)
            s = s + bias_blk
            m = jnp.max(s, axis=-1, keepdims=True)
            p = jnp.exp(s - m)
            inv = pl.reciprocal(jnp.sum(p, axis=-1, keepdims=True), approx=True)
            attn = p * inv
            if return_attn:
                attn_ref[0, 0, h, r0:r0 + q_block, :] = attn.astype(attn_ref.dtype)
            ctx = jnp.dot(attn.astype(bf16), vh,
                          preferred_element_type=jnp.float32)       # (qb, dh)
            x_res[r0:r0 + q_block, :] += jnp.dot(
                ctx.astype(bf16), wo_h, preferred_element_type=jnp.float32)

    # ---- PositionwiseFeedForward: LN -> (W1 -> gelu -> W2), chunked on d_ff --
    out = x_res[...]
    xn_bf[...] = _layer_norm(out, ff_g_ref[0], ff_b_ref[0]).astype(bf16)
    x_res[...] = out + b2_ref[0]
    for c in range(n_ffc):
        c0 = c * ff_chunk
        hc = jnp.dot(xn_bf[...], w1_ref[0, :, c0:c0 + ff_chunk],
                     preferred_element_type=jnp.float32) \
             + b1_ref[0, :, c0:c0 + ff_chunk]
        x_res[...] += jnp.dot(_gelu(hc).astype(bf16),
                              w2_ref[0, c0:c0 + ff_chunk, :],
                              preferred_element_type=jnp.float32)

    # ---- final head (last layer only): LN -> Linear(D,1) -> sigmoid -> *mask -
    @pl.when(l == n_layers - 1)
    def _():
        yn = _layer_norm(x_res[...], fin_g_ref[...], fin_b_ref[...])
        logits = jnp.dot(yn, fw_ref[...],
                         preferred_element_type=jnp.float32) + fb_ref[...]
        scores_ref[0] = jax.nn.sigmoid(logits) * maskc_ref[0]


def _prep_final_kernel(x_ref, maskc_ref, pe_ref, g_ref, b_ref, w_ref, wb_ref,
                       scores_ref):
    # num_inter_layers == 0 path: prep + final LN + Linear + sigmoid * mask
    x = x_ref[0] * maskc_ref[0] + pe_ref[0]
    xn = _layer_norm(x, g_ref[...], b_ref[...])
    logits = jnp.dot(xn, w_ref[...],
                     preferred_element_type=jnp.float32) + wb_ref[...]
    scores_ref[0] = jax.nn.sigmoid(logits) * maskc_ref[0]


# ----------------------------------------------------------------------------
# wrapper
# ----------------------------------------------------------------------------
def ext_transformer_encoder(top_vecs, mask, params, *, heads,
                            return_attn=True, attn_dtype=jnp.float32,
                            q_block=128, ff_chunk=512):
    """top_vecs: (B, S, D) f32, mask: (B, S) bool (True = valid sentence)."""
    B, S, D = top_vecs.shape
    mask_f = mask.astype(jnp.float32)
    mask_col = mask_f[:, :, None]                                    # (B,S,1)
    attn_bias = jnp.where(mask, 0.0, NEG_INF).astype(jnp.float32)[:, None, :]
    pe = params["pe"][:, :S, :]                                      # (1,S,D)

    # 48 MiB scoped VMEM: above the 16/32 MiB defaults, below v7x's 64 MiB
    # physical limit (do not raise further on v7x).
    vmem_limit = 48 * 1024 * 1024

    # ---------------- num_inter_layers == 0 path ----------------
    if "wqkv" not in params:
        scores = pl.pallas_call(
            _prep_final_kernel,
            out_shape=jax.ShapeDtypeStruct((B, S, 1), jnp.float32),
            grid=(B,),
            in_specs=[pl.BlockSpec((1, S, D), lambda b: (b, 0, 0)),
                      pl.BlockSpec((1, S, 1), lambda b: (b, 0, 0)),
                      pl.BlockSpec((1, S, D), lambda b: (0, 0, 0),
                                   pipeline_mode=pl.Buffered(1)),
                      pl.BlockSpec((1, D), lambda b: (0, 0),
                                   pipeline_mode=pl.Buffered(1)),
                      pl.BlockSpec((1, D), lambda b: (0, 0),
                                   pipeline_mode=pl.Buffered(1)),
                      pl.BlockSpec((D, 1), lambda b: (0, 0),
                                   pipeline_mode=pl.Buffered(1)),
                      pl.BlockSpec((1, 1), lambda b: (0, 0),
                                   pipeline_mode=pl.Buffered(1))],
            out_specs=pl.BlockSpec((1, S, 1), lambda b: (b, 0, 0)),
            compiler_params=pltpu.CompilerParams(
                dimension_semantics=("parallel",),
                vmem_limit_bytes=vmem_limit),
        )(top_vecs, mask_col, pe, params["final_ln_g"], params["final_ln_b"],
          params["wo_w"], params["wo_b"])
        return scores[:, :, 0], []

    # ---------------- fused multi-layer path ----------------
    L = params["wqkv"].shape[0]
    d_ff = params["w1"].shape[-1]
    dh = D // heads
    qb = q_block if (S > q_block and S % q_block == 0) else S
    ck = ff_chunk if (d_ff > ff_chunk and d_ff % ff_chunk == 0) else d_ff

    x_spec = pl.BlockSpec((1, S, D), lambda b, l: (b, 0, 0))
    bias_spec = pl.BlockSpec((1, 1, S), lambda b, l: (b, 0, 0))
    mcol_spec = pl.BlockSpec((1, S, 1), lambda b, l: (b, 0, 0))
    scores_spec = pl.BlockSpec((1, S, 1), lambda b, l: (b, 0, 0))

    def wspec(shape):
        # stacked per-layer weights: leading block dim 1 indexed by the layer
        # grid axis -> default double buffering prefetches layer l+1's weights
        return pl.BlockSpec((1,) + shape, lambda b, l: (l,) + (0,) * len(shape))

    def cspec(shape):
        # grid-constant blocks: single-buffered, DMA'd once, stay resident
        return pl.BlockSpec(shape, lambda b, l: (0,) * len(shape),
                            pipeline_mode=pl.Buffered(1))

    in_specs = [x_spec, bias_spec, mcol_spec, cspec((1, S, D)),
                wspec((D, 3 * D)), wspec((1, 3 * D)),
                wspec((heads, dh, D)), wspec((1, D)),
                wspec((1, D)), wspec((1, D)),
                wspec((1, D)), wspec((1, D)),
                wspec((D, d_ff)), wspec((1, d_ff)),
                wspec((d_ff, D)), wspec((1, D)),
                cspec((1, D)), cspec((1, D)), cspec((D, 1)), cspec((1, 1))]

    if return_attn:
        out_shape = (jax.ShapeDtypeStruct((B, S, 1), jnp.float32),
                     jax.ShapeDtypeStruct((B, L, heads, S, S), attn_dtype))
        out_specs = (scores_spec,
                     pl.BlockSpec((1, 1, heads, S, S),
                                  lambda b, l: (b, l, 0, 0, 0)))
    else:
        out_shape = jax.ShapeDtypeStruct((B, S, 1), jnp.float32)
        out_specs = scores_spec

    kern = functools.partial(_fused_encoder_kernel, heads=heads, q_block=qb,
                             ff_chunk=ck, return_attn=return_attn)

    outs = pl.pallas_call(
        kern,
        out_shape=out_shape,
        grid=(B, L),
        in_specs=in_specs,
        out_specs=out_specs,
        scratch_shapes=[pltpu.VMEM((S, D), jnp.float32),     # residual / act carry
                        pltpu.VMEM((S, D), jnp.bfloat16),    # normalized input
                        pltpu.VMEM((S, 3 * D), jnp.bfloat16)],  # fused QKV
        compiler_params=pltpu.CompilerParams(
            dimension_semantics=("parallel", "arbitrary"),
            vmem_limit_bytes=vmem_limit),
    )(top_vecs, attn_bias, mask_col, pe,
      params["wqkv"], params["bqkv"], params["wo3"], params["bo"],
      params["ln_g"], params["ln_b"],
      params["ff_ln_g"], params["ff_ln_b"],
      params["w1"], params["b1"], params["w2"], params["b2"],
      params["final_ln_g"], params["final_ln_b"],
      params["wo_w"], params["wo_b"])

    if return_attn:
        scores, attn_all = outs
        attn_list = [attn_all[:, i] for i in range(L)]
    else:
        scores = outs
        attn_list = []
    return scores[:, :, 0], attn_list


# ----------------------------------------------------------------------------
# deterministic parameter construction (synthetic, no checkpoint)
# ----------------------------------------------------------------------------
def make_positional_encoding(d_model, max_len=512):
    position = jnp.arange(max_len, dtype=jnp.float32)[:, None]
    div_term = jnp.exp(jnp.arange(0, d_model, 2, dtype=jnp.float32)
                       * -(math.log(10000.0) / d_model))
    angles = position * div_term
    pe = jnp.zeros((max_len, d_model), jnp.float32)
    pe = pe.at[:, 0::2].set(jnp.sin(angles))
    pe = pe.at[:, 1::2].set(jnp.cos(angles))
    return pe[None]                               # (1, max_len, d_model)


def init_params(key, d_model, d_ff, heads, num_inter_layers):
    del heads  # layout is head-major inside d_model, nothing to init per head

    def nxt():
        nonlocal key
        key, sub = jax.random.split(key)
        return sub

    def lin(din, dout):
        w = 0.02 * jax.random.normal(nxt(), (din, dout), jnp.float32)
        b = 0.02 * jax.random.normal(nxt(), (1, dout), jnp.float32)
        return w, b

    layers = []
    for _ in range(num_inter_layers):
        wq, bq = lin(d_model, d_model)
        wk, bk = lin(d_model, d_model)
        wv, bv = lin(d_model, d_model)
        wo, bo = lin(d_model, d_model)
        w1, b1 = lin(d_model, d_ff)
        w2, b2 = lin(d_ff, d_model)
        layers.append(dict(
            wq=wq, bq=bq, wk=wk, bk=bk, wv=wv, bv=bv, wo=wo, bo=bo,
            ln_g=jnp.ones((1, d_model), jnp.float32),
            ln_b=jnp.zeros((1, d_model), jnp.float32),
            ff_ln_g=jnp.ones((1, d_model), jnp.float32),
            ff_ln_b=jnp.zeros((1, d_model), jnp.float32),
            w1=w1, b1=b1, w2=w2, b2=b2))

    wo_w, wo_b = lin(d_model, 1)
    return dict(
        pe=make_positional_encoding(d_model),
        layers=layers,
        final_ln_g=jnp.ones((1, d_model), jnp.float32),
        final_ln_b=jnp.zeros((1, d_model), jnp.float32),
        wo_w=wo_w, wo_b=wo_b)


def pack_params(params, heads):
    """Kernel-side params: per-layer weights stacked on a leading L axis,
    fused + 1/sqrt(dh)-scaled QKV, head-major out-projection, bf16 MXU
    operands (biases / LN params stay f32)."""
    bf = jnp.bfloat16
    packed = dict(pe=params["pe"],
                  final_ln_g=params["final_ln_g"],
                  final_ln_b=params["final_ln_b"],
                  wo_w=params["wo_w"], wo_b=params["wo_b"])
    layers = params["layers"]
    if len(layers) == 0:
        return packed
    D = params["final_ln_g"].shape[-1]
    dh = D // heads
    scale = 1.0 / math.sqrt(dh)

    def stack(fn):
        return jnp.stack([fn(lp) for lp in layers], axis=0)

    packed.update(
        wqkv=stack(lambda lp: jnp.concatenate(
            [lp["wq"] * scale, lp["wk"], lp["wv"]], axis=1)).astype(bf),
        bqkv=stack(lambda lp: jnp.concatenate(
            [lp["bq"] * scale, lp["bk"], lp["bv"]], axis=1)),
        wo3=stack(lambda lp: lp["wo"].reshape(heads, dh, D)).astype(bf),
        bo=stack(lambda lp: lp["bo"]),
        ln_g=stack(lambda lp: lp["ln_g"]), ln_b=stack(lambda lp: lp["ln_b"]),
        ff_ln_g=stack(lambda lp: lp["ff_ln_g"]),
        ff_ln_b=stack(lambda lp: lp["ff_ln_b"]),
        w1=stack(lambda lp: lp["w1"]).astype(bf),
        b1=stack(lambda lp: lp["b1"]),
        w2=stack(lambda lp: lp["w2"]).astype(bf),
        b2=stack(lambda lp: lp["b2"]))
    return packed


# ----------------------------------------------------------------------------
# pure-JAX f32 reference (same math) for the correctness check
# ----------------------------------------------------------------------------
def reference(top_vecs, mask, params, heads):
    B, S, D = top_vecs.shape
    dh = D // heads
    mask_f = mask.astype(jnp.float32)
    x = top_vecs * mask_f[:, :, None] + params["pe"][:, :S, :]
    bias = jnp.where(mask, 0.0, NEG_INF).astype(jnp.float32)[:, None, None, :]

    def ln(v, g, b):
        mu = jnp.mean(v, -1, keepdims=True)
        var = jnp.mean((v - mu) ** 2, -1, keepdims=True)
        return (v - mu) * jax.lax.rsqrt(var + 1e-6) * g + b

    attns = []
    for i, lp in enumerate(params["layers"]):
        xn = ln(x, lp["ln_g"][0], lp["ln_b"][0]) if i != 0 else x
        q = xn @ lp["wq"] + lp["bq"][0]
        k = xn @ lp["wk"] + lp["bk"][0]
        v = xn @ lp["wv"] + lp["bv"][0]
        qh = q.reshape(B, S, heads, dh).transpose(0, 2, 1, 3) / math.sqrt(dh)
        kh = k.reshape(B, S, heads, dh).transpose(0, 2, 1, 3)
        vh = v.reshape(B, S, heads, dh).transpose(0, 2, 1, 3)
        sc = jnp.einsum("bhqd,bhkd->bhqk", qh, kh) + bias
        attn = jax.nn.softmax(sc, axis=-1)
        attns.append(attn)
        ctx = jnp.einsum("bhqk,bhkd->bhqd", attn, vh)
        ctx = ctx.transpose(0, 2, 1, 3).reshape(B, S, D)
        out = ctx @ lp["wo"] + lp["bo"][0] + x
        on = ln(out, lp["ff_ln_g"][0], lp["ff_ln_b"][0])
        inter = _gelu(on @ lp["w1"] + lp["b1"][0])
        x = inter @ lp["w2"] + lp["b2"][0] + out
    x = ln(x, params["final_ln_g"][0], params["final_ln_b"][0])
    s = jax.nn.sigmoid(x @ params["wo_w"] + params["wo_b"][0])[:, :, 0]
    return s * mask_f, attns


# ----------------------------------------------------------------------------
if __name__ == "__main__":
    B, S, D, H, D_FF, L = 2, 8, 32, 4, 64, 2

    key = jax.random.PRNGKey(0)
    k_x, k_p = jax.random.split(key)
    top_vecs = jax.random.normal(k_x, (B, S, D), dtype=jnp.float32)
    lengths = jnp.array([S, S - 3])
    mask = jnp.arange(S)[None, :] < lengths[:, None]          # (B, S) bool

    params = init_params(k_p, D, D_FF, H, L)      # f32 / unpacked (reference)
    kparams = pack_params(params, heads=H)        # stacked bf16 / fused (kernel)

    fwd = jax.jit(functools.partial(ext_transformer_encoder, heads=H))
    sent_scores, attn_list = fwd(top_vecs, mask, kparams)
    sent_scores = jax.block_until_ready(sent_scores)
    for a in attn_list:
        jax.block_until_ready(a)

    ref_scores, ref_attns = reference(top_vecs, mask, params, H)
    # bf16 MXU operands + approx reciprocal -> loosened tolerance vs f32 ref
    assert jnp.allclose(sent_scores, ref_scores, atol=2e-2, rtol=2e-2)
    for a, r in zip(attn_list, ref_attns):
        assert jnp.allclose(a.astype(jnp.float32), r, atol=2e-2, rtol=2e-2)

    # fast path: drop the (B, L, H, S, S) attention-probability HBM writes
    fwd_fast = jax.jit(functools.partial(ext_transformer_encoder, heads=H,
                                         return_attn=False))
    fast_scores, fast_attn = fwd_fast(top_vecs, mask, kparams)
    fast_scores = jax.block_until_ready(fast_scores)
    assert len(fast_attn) == 0
    assert jnp.allclose(fast_scores, ref_scores, atol=2e-2, rtol=2e-2)

    print("KERNEL_OK")
</pallas_src>

<mosaic_0001>
module attributes {stable_mosaic.version = 11 : i64} {
  func.func @_fused_encoder_kernel(%arg0: i32, %arg1: i32, %arg2: memref<1x8x32xf32, #tpu.memory_space<vmem>>, %arg3: memref<1x1x8xf32, #tpu.memory_space<vmem>>, %arg4: memref<1x8x1xf32, #tpu.memory_space<vmem>>, %arg5: memref<1x8x32xf32, #tpu.memory_space<vmem>>, %arg6: memref<1x32x96xbf16, #tpu.memory_space<vmem>>, %arg7: memref<1x1x96xf32, #tpu.memory_space<vmem>>, %arg8: memref<1x4x8x32xbf16, #tpu.memory_space<vmem>>, %arg9: memref<1x1x32xf32, #tpu.memory_space<vmem>>, %arg10: memref<1x1x32xf32, #tpu.memory_space<vmem>>, %arg11: memref<1x1x32xf32, #tpu.memory_space<vmem>>, %arg12: memref<1x1x32xf32, #tpu.memory_space<vmem>>, %arg13: memref<1x1x32xf32, #tpu.memory_space<vmem>>, %arg14: memref<1x32x64xbf16, #tpu.memory_space<vmem>>, %arg15: memref<1x1x64xf32, #tpu.memory_space<vmem>>, %arg16: memref<1x64x32xbf16, #tpu.memory_space<vmem>>, %arg17: memref<1x1x32xf32, #tpu.memory_space<vmem>>, %arg18: memref<1x32xf32, #tpu.memory_space<vmem>>, %arg19: memref<1x32xf32, #tpu.memory_space<vmem>>, %arg20: memref<32x1xf32, #tpu.memory_space<vmem>>, %arg21: memref<1x1xf32, #tpu.memory_space<vmem>>, %arg22: memref<1x8x1xf32, #tpu.memory_space<vmem>>, %arg23: memref<1x1x4x8x8xf32, #tpu.memory_space<vmem>>, %arg24: memref<8x32xf32, #tpu.memory_space<vmem>>, %arg25: memref<8x32xbf16, #tpu.memory_space<vmem>>, %arg26: memref<8x96xbf16, #tpu.memory_space<vmem>>) attributes {dimension_semantics = [#tpu.dimension_semantics<parallel>, #tpu.dimension_semantics<arbitrary>], iteration_bounds = array<i64: 2, 2>, scalar_prefetch = 0 : i64, scratch_operands = 3 : i64, tpu.core_type = #tpu.core_type<tc>, window_params = [{transform_indices = @transform_0, window_bounds = array<i64: 1, 8, 32>}, {transform_indices = @transform_1, window_bounds = array<i64: 1, 1, 8>}, {transform_indices = @transform_2, window_bounds = array<i64: 1, 8, 1>}, {pipeline_mode = #tpu.pipeline_mode<synchronous>, transform_indices = @transform_3, window_bounds = array<i64: 1, 8, 32>}, {transform_indices = @transform_4, window_bounds = array<i64: 1, 32, 96>}, {transform_indices = @transform_5, window_bounds = array<i64: 1, 1, 96>}, {transform_indices = @transform_6, window_bounds = array<i64: 1, 4, 8, 32>}, {transform_indices = @transform_7, window_bounds = array<i64: 1, 1, 32>}, {transform_indices = @transform_8, window_bounds = array<i64: 1, 1, 32>}, {transform_indices = @transform_9, window_bounds = array<i64: 1, 1, 32>}, {transform_indices = @transform_10, window_bounds = array<i64: 1, 1, 32>}, {transform_indices = @transform_11, window_bounds = array<i64: 1, 1, 32>}, {transform_indices = @transform_12, window_bounds = array<i64: 1, 32, 64>}, {transform_indices = @transform_13, window_bounds = array<i64: 1, 1, 64>}, {transform_indices = @transform_14, window_bounds = array<i64: 1, 64, 32>}, {transform_indices = @transform_15, window_bounds = array<i64: 1, 1, 32>}, {pipeline_mode = #tpu.pipeline_mode<synchronous>, transform_indices = @transform_16, window_bounds = array<i64: 1, 32>}, {pipeline_mode = #tpu.pipeline_mode<synchronous>, transform_indices = @transform_17, window_bounds = array<i64: 1, 32>}, {pipeline_mode = #tpu.pipeline_mode<synchronous>, transform_indices = @transform_18, window_bounds = array<i64: 32, 1>}, {pipeline_mode = #tpu.pipeline_mode<synchronous>, transform_indices = @transform_19, window_bounds = array<i64: 1, 1>}, {transform_indices = @transform_20, window_bounds = array<i64: 1, 8, 1>}, {transform_indices = @transform_21, window_bounds = array<i64: 1, 1, 4, 8, 8>}]} {
    %c0_i32 = arith.constant 0 : i32
    %0 = arith.cmpi eq, %arg1, %c0_i32 : i32
    %1 = arith.extui %0 : i1 to i32
    %c0_i32_0 = arith.constant 0 : i32
    %2 = arith.cmpi ne, %1, %c0_i32_0 : i32
    scf.if %2 {
      %c0_147 = arith.constant 0 : index
      %c0_148 = arith.constant 0 : index
      %c0_149 = arith.constant 0 : index
      %201 = vector.load %arg2[%c0_147, %c0_148, %c0_149] : memref<1x8x32xf32, #tpu.memory_space<vmem>>, vector<1x8x32xf32>
      %202 = vector.shape_cast %201 : vector<1x8x32xf32> to vector<8x32xf32>
      %c0_150 = arith.constant 0 : index
      %c0_151 = arith.constant 0 : index
      %c0_152 = arith.constant 0 : index
      %203 = vector.load %arg4[%c0_150, %c0_151, %c0_152] : memref<1x8x1xf32, #tpu.memory_space<vmem>>, vector<1x8x1xf32>
      %204 = vector.shape_cast %203 : vector<1x8x1xf32> to vector<8x1xf32>
      %205 = vector.broadcast %204 : vector<8x1xf32> to vector<8x32xf32>
      %206 = arith.mulf %202, %205 : vector<8x32xf32>
      %c0_153 = arith.constant 0 : index
      %c0_154 = arith.constant 0 : index
      %c0_155 = arith.constant 0 : index
      %207 = vector.load %arg5[%c0_153, %c0_154, %c0_155] : memref<1x8x32xf32, #tpu.memory_space<vmem>>, vector<1x8x32xf32>
      %208 = vector.shape_cast %207 : vector<1x8x32xf32> to vector<8x32xf32>
      %209 = arith.addf %206, %208 : vector<8x32xf32>
      %c0_156 = arith.constant 0 : index
      %c0_157 = arith.constant 0 : index
      %210 = vector.load %arg24[%c0_156, %c0_157] : memref<8x32xf32, #tpu.memory_space<vmem>>, vector<8x32xf32>
      tpu.vector_store %arg24[%c0_156, %c0_157], %209 {strides = array<i32>} : memref<8x32xf32, #tpu.memory_space<vmem>>, vector<8x32xf32>,
      %211 = arith.truncf %209 : vector<8x32xf32> to vector<8x32xbf16>
      %c0_158 = arith.constant 0 : index
      %c0_159 = arith.constant 0 : index
      %212 = vector.load %arg25[%c0_158, %c0_159] : memref<8x32xbf16, #tpu.memory_space<vmem>>, vector<8x32xbf16>
      tpu.vector_store %arg25[%c0_158, %c0_159], %211 {strides = array<i32>} : memref<8x32xbf16, #tpu.memory_space<vmem>>, vector<8x32xbf16>,
    } else {
    }
    %c0_i32_1 = arith.constant 0 : i32
    %3 = arith.cmpi ne, %arg1, %c0_i32_1 : i32
    %4 = arith.extui %3 : i1 to i32
    %c0_i32_2 = arith.constant 0 : i32
    %5 = arith.cmpi ne, %4, %c0_i32_2 : i32
    scf.if %5 {
      %c0_147 = arith.constant 0 : index
      %c0_148 = arith.constant 0 : index
      %201 = vector.load %arg24[%c0_147, %c0_148] : memref<8x32xf32, #tpu.memory_space<vmem>>, vector<8x32xf32>
      %c0_149 = arith.constant 0 : index
      %c0_150 = arith.constant 0 : index
      %c0_151 = arith.constant 0 : index
      %202 = vector.load %arg10[%c0_149, %c0_150, %c0_151] : memref<1x1x32xf32, #tpu.memory_space<vmem>>, vector<1x1x32xf32>
      %203 = vector.shape_cast %202 : vector<1x1x32xf32> to vector<1x32xf32>
      %c0_152 = arith.constant 0 : index
      %c0_153 = arith.constant 0 : index
      %c0_154 = arith.constant 0 : index
      %204 = vector.load %arg11[%c0_152, %c0_153, %c0_154] : memref<1x1x32xf32, #tpu.memory_space<vmem>>, vector<1x1x32xf32>
      %205 = vector.shape_cast %204 : vector<1x1x32xf32> to vector<1x32xf32>
      %cst_155 = arith.constant dense<0.000000e+00> : vector<8xf32>
      %206 = vector.multi_reduction <add>, %201, %cst_155 [1] : vector<8x32xf32> to vector<8xf32>
      %207 = vector.shape_cast %206 : vector<8xf32> to vector<8x1xf32>
      %cst_156 = arith.constant 3.200000e+01 : f32
      %208 = vector.broadcast %cst_156 : f32 to vector<8x1xf32>
      %209 = arith.divf %207, %208 : vector<8x1xf32>
      %210 = arith.mulf %201, %201 : vector<8x32xf32>
      %cst_157 = arith.constant dense<0.000000e+00> : vector<8xf32>
      %211 = vector.multi_reduction <add>, %210, %cst_157 [1] : vector<8x32xf32> to vector<8xf32>
      %212 = vector.shape_cast %211 : vector<8xf32> to vector<8x1xf32>
      %cst_158 = arith.constant 3.200000e+01 : f32
      %213 = vector.broadcast %cst_158 : f32 to vector<8x1xf32>
      %214 = arith.divf %212, %213 : vector<8x1xf32>
      %215 = arith.mulf %209, %209 : vector<8x1xf32>
      %216 = arith.subf %214, %215 : vector<8x1xf32>
      %cst_159 = arith.constant 0.000000e+00 : f32
      %217 = vector.broadcast %cst_159 : f32 to vector<8x1xf32>
      %218 = arith.maximumf %216, %217 : vector<8x1xf32>
      %219 = vector.broadcast %209 : vector<8x1xf32> to vector<8x32xf32>
      %220 = arith.subf %201, %219 : vector<8x32xf32>
      %cst_160 = arith.constant 9.99999997E-7 : f32
      %221 = vector.broadcast %cst_160 : f32 to vector<8x1xf32>
      %222 = arith.addf %218, %221 : vector<8x1xf32>
      %223 = math.rsqrt %222 : vector<8x1xf32>
      %224 = vector.broadcast %223 : vector<8x1xf32> to vector<8x32xf32>
      %225 = arith.mulf %220, %224 : vector<8x32xf32>
      %226 = vector.broadcast %203 : vector<1x32xf32> to vector<8x32xf32>
      %227 = arith.mulf %225, %226 : vector<8x32xf32>
      %228 = vector.broadcast %205 : vector<1x32xf32> to vector<8x32xf32>
      %229 = arith.addf %227, %228 : vector<8x32xf32>
      %230 = arith.truncf %229 : vector<8x32xf32> to vector<8x32xbf16>
      %c0_161 = arith.constant 0 : index
      %c0_162 = arith.constant 0 : index
      %231 = vector.load %arg25[%c0_161, %c0_162] : memref<8x32xbf16, #tpu.memory_space<vmem>>, vector<8x32xbf16>
      tpu.vector_store %arg25[%c0_161, %c0_162], %230 {strides = array<i32>} : memref<8x32xbf16, #tpu.memory_space<vmem>>, vector<8x32xbf16>,
    } else {
    }
    %c0 = arith.constant 0 : index
    %c0_3 = arith.constant 0 : index
    %6 = vector.load %arg25[%c0, %c0_3] : memref<8x32xbf16, #tpu.memory_space<vmem>>, vector<8x32xbf16>
    %c0_4 = arith.constant 0 : index
    %c0_5 = arith.constant 0 : index
    %c0_6 = arith.constant 0 : index
    %7 = vector.load %arg6[%c0_4, %c0_5, %c0_6] : memref<1x32x96xbf16, #tpu.memory_space<vmem>>, vector<1x32x96xbf16>
    %8 = vector.shape_cast %7 : vector<1x32x96xbf16> to vector<32x96xbf16>
    %cst = arith.constant dense<0.000000e+00> : vector<8x96xf32>
    %9 = tpu.matmul %6, %8, %cst {dimension_numbers = #tpu.dot_dimension_numbers<[1], [0], [0], [1], [0, 0, 1, 1], [], []>} : vector<8x32xbf16>, vector<32x96xbf16>, vector<8x96xf32> -> vector<8x96xf32>
    %c0_7 = arith.constant 0 : index
    %c0_8 = arith.constant 0 : index
    %c0_9 = arith.constant 0 : index
    %10 = vector.load %arg7[%c0_7, %c0_8, %c0_9] : memref<1x1x96xf32, #tpu.memory_space<vmem>>, vector<1x1x96xf32>
    %11 = vector.shape_cast %10 : vector<1x1x96xf32> to vector<1x96xf32>
    %12 = vector.broadcast %11 : vector<1x96xf32> to vector<8x96xf32>
    %13 = arith.addf %9, %12 : vector<8x96xf32>
    %14 = arith.truncf %13 : vector<8x96xf32> to vector<8x96xbf16>
    %c0_10 = arith.constant 0 : index
    %c0_11 = arith.constant 0 : index
    %15 = vector.load %arg26[%c0_10, %c0_11] : memref<8x96xbf16, #tpu.memory_space<vmem>>, vector<8x96xbf16>
    tpu.vector_store %arg26[%c0_10, %c0_11], %14 {strides = array<i32>} : memref<8x96xbf16, #tpu.memory_space<vmem>>, vector<8x96xbf16>,
    %c0_12 = arith.constant 0 : index
    %c0_13 = arith.constant 0 : index
    %16 = vector.load %arg24[%c0_12, %c0_13] : memref<8x32xf32, #tpu.memory_space<vmem>>, vector<8x32xf32>
    %c0_14 = arith.constant 0 : index
    %c0_15 = arith.constant 0 : index
    %c0_16 = arith.constant 0 : index
    %17 = vector.load %arg9[%c0_14, %c0_15, %c0_16] : memref<1x1x32xf32, #tpu.memory_space<vmem>>, vector<1x1x32xf32>
    %18 = vector.shape_cast %17 : vector<1x1x32xf32> to vector<1x32xf32>
    %19 = vector.broadcast %18 : vector<1x32xf32> to vector<8x32xf32>
    %20 = arith.addf %16, %19 : vector<8x32xf32>
    %c0_17 = arith.constant 0 : index
    %c0_18 = arith.constant 0 : index
    %21 = vector.load %arg24[%c0_17, %c0_18] : memref<8x32xf32, #tpu.memory_space<vmem>>, vector<8x32xf32>
    tpu.vector_store %arg24[%c0_17, %c0_18], %20 {strides = array<i32>} : memref<8x32xf32, #tpu.memory_space<vmem>>, vector<8x32xf32>,
    %c0_19 = arith.constant 0 : index
    %c0_20 = arith.constant 0 : index
    %c0_21 = arith.constant 0 : index
    %22 = vector.load %arg3[%c0_19, %c0_20, %c0_21] : memref<1x1x8xf32, #tpu.memory_space<vmem>>, vector<1x1x8xf32>
    %23 = vector.shape_cast %22 : vector<1x1x8xf32> to vector<1x8xf32>
    %24 = vector.shape_cast %23 : vector<1x8xf32> to vector<1x8xf32>
    %25 = vector.broadcast %24 : vector<1x8xf32> to vector<8x8xf32>
    %c0_22 = arith.constant 0 : index
    %c32 = arith.constant 32 : index
    %26 = vector.load %arg26[%c0_22, %c32] : memref<8x96xbf16, #tpu.memory_space<vmem>>, vector<8x8xbf16>
    %c0_23 = arith.constant 0 : index
    %c64 = arith.constant 64 : index
    %27 = vector.load %arg26[%c0_23, %c64] : memref<8x96xbf16, #tpu.memory_space<vmem>>, vector<8x8xbf16>
    %c0_24 = arith.constant 0 : index
    %c0_25 = arith.constant 0 : index
    %c0_26 = arith.constant 0 : index
    %c0_27 = arith.constant 0 : index
    %28 = vector.load %arg8[%c0_24, %c0_25, %c0_26, %c0_27] : memref<1x4x8x32xbf16, #tpu.memory_space<vmem>>, vector<1x1x8x32xbf16>
    %29 = vector.shape_cast %28 : vector<1x1x8x32xbf16> to vector<8x32xbf16>
    %c0_28 = arith.constant 0 : index
    %c0_29 = arith.constant 0 : index
    %30 = vector.load %arg26[%c0_28, %c0_29] : memref<8x96xbf16, #tpu.memory_space<vmem>>, vector<8x8xbf16>
    %cst_30 = arith.constant dense<0.000000e+00> : vector<8x8xf32>
    %31 = tpu.matmul %30, %26, %cst_30 {dimension_numbers = #tpu.dot_dimension_numbers<[1], [1], [0], [0], [0, 0, 1, 0], [], []>} : vector<8x8xbf16>, vector<8x8xbf16>, vector<8x8xf32> -> vector<8x8xf32>
    %32 = arith.addf %31, %25 : vector<8x8xf32>
    %cst_31 = arith.constant dense<0xFF800000> : vector<8xf32>
    %33 = vector.multi_reduction <maximumf>, %32, %cst_31 [1] : vector<8x8xf32> to vector<8xf32>
    %34 = vector.shape_cast %33 : vector<8xf32> to vector<8x1xf32>
    %35 = vector.broadcast %34 : vector<8x1xf32> to vector<8x8xf32>
    %36 = arith.subf %32, %35 : vector<8x8xf32>
    %37 = math.exp %36 : vector<8x8xf32>
    %cst_32 = arith.constant dense<0.000000e+00> : vector<8xf32>
    %38 = vector.multi_reduction <add>, %37, %cst_32 [1] : vector<8x8xf32> to vector<8xf32>
    %39 = vector.shape_cast %38 : vector<8xf32> to vector<8x1xf32>
    %40 = tpu.reciprocal %39 {approx = true} : vector<8x1xf32> -> vector<8x1xf32>
    %41 = vector.broadcast %40 : vector<8x1xf32> to vector<8x8xf32>
    %42 = arith.mulf %37, %41 : vector<8x8xf32>
    %c0_33 = arith.constant 0 : index
    %c0_34 = arith.constant 0 : index
    %c0_35 = arith.constant 0 : index
    %c0_36 = arith.constant 0 : index
    %c0_37 = arith.constant 0 : index
    %43 = vector.load %arg23[%c0_33, %c0_34, %c0_35, %c0_36, %c0_37] : memref<1x1x4x8x8xf32, #tpu.memory_space<vmem>>, vector<1x1x1x8x8xf32>
    %44 = vector.shape_cast %43 : vector<1x1x1x8x8xf32> to vector<8x8xf32>
    %45 = vector.shape_cast %42 : vector<8x8xf32> to vector<1x1x1x8x8xf32>
    tpu.vector_store %arg23[%c0_33, %c0_34, %c0_35, %c0_36, %c0_37], %45 {strides = array<i32>} : memref<1x1x4x8x8xf32, #tpu.memory_space<vmem>>, vector<1x1x1x8x8xf32>,
    %46 = arith.truncf %42 : vector<8x8xf32> to vector<8x8xbf16>
    %cst_38 = arith.constant dense<0.000000e+00> : vector<8x8xf32>
    %47 = tpu.matmul %46, %27, %cst_38 {dimension_numbers = #tpu.dot_dimension_numbers<[1], [0], [0], [1], [0, 0, 1, 1], [], []>} : vector<8x8xbf16>, vector<8x8xbf16>, vector<8x8xf32> -> vector<8x8xf32>
    %c0_39 = arith.constant 0 : index
    %c0_40 = arith.constant 0 : index
    %48 = vector.load %arg24[%c0_39, %c0_40] : memref<8x32xf32, #tpu.memory_space<vmem>>, vector<8x32xf32>
    %49 = arith.truncf %47 : vector<8x8xf32> to vector<8x8xbf16>
    %cst_41 = arith.constant dense<0.000000e+00> : vector<8x32xf32>
    %50 = tpu.matmul %49, %29, %cst_41 {dimension_numbers = #tpu.dot_dimension_numbers<[1], [0], [0], [1], [0, 0, 1, 1], [], []>} : vector<8x8xbf16>, vector<8x32xbf16>, vector<8x32xf32> -> vector<8x32xf32>
    %51 = arith.addf %48, %50 : vector<8x32xf32>
    %c0_42 = arith.constant 0 : index
    %c0_43 = arith.constant 0 : index
    %52 = vector.load %arg24[%c0_42, %c0_43] : memref<8x32xf32, #tpu.memory_space<vmem>>, vector<8x32xf32>
    tpu.vector_store %arg24[%c0_42, %c0_43], %51 {strides = array<i32>} : memref<8x32xf32, #tpu.memory_space<vmem>>, vector<8x32xf32>,
    %c0_44 = arith.constant 0 : index
    %c40 = arith.constant 40 : index
    %53 = vector.load %arg26[%c0_44, %c40] : memref<8x96xbf16, #tpu.memory_space<vmem>>, vector<8x8xbf16>
    %c0_45 = arith.constant 0 : index
    %c72 = arith.constant 72 : index
    %54 = vector.load %arg26[%c0_45, %c72] : memref<8x96xbf16, #tpu.memory_space<vmem>>, vector<8x8xbf16>
    %c0_46 = arith.constant 0 : index
    %c1 = arith.constant 1 : index
    %c0_47 = arith.constant 0 : index
    %c0_48 = arith.constant 0 : index
    %55 = vector.load %arg8[%c0_46, %c1, %c0_47, %c0_48] : memref<1x4x8x32xbf16, #tpu.memory_space<vmem>>, vector<1x1x8x32xbf16>
    %56 = vector.shape_cast %55 : vector<1x1x8x32xbf16> to vector<8x32xbf16>
    %c0_49 = arith.constant 0 : index
    %c8 = arith.constant 8 : index
    %57 = vector.load %arg26[%c0_49, %c8] : memref<8x96xbf16, #tpu.memory_space<vmem>>, vector<8x8xbf16>
    %cst_50 = arith.constant dense<0.000000e+00> : vector<8x8xf32>
    %58 = tpu.matmul %57, %53, %cst_50 {dimension_numbers = #tpu.dot_dimension_numbers<[1], [1], [0], [0], [0, 0, 1, 0], [], []>} : vector<8x8xbf16>, vector<8x8xbf16>, vector<8x8xf32> -> vector<8x8xf32>
    %59 = arith.addf %58, %25 : vector<8x8xf32>
    %cst_51 = arith.constant dense<0xFF800000> : vector<8xf32>
    %60 = vector.multi_reduction <maximumf>, %59, %cst_51 [1] : vector<8x8xf32> to vector<8xf32>
    %61 = vector.shape_cast %60 : vector<8xf32> to vector<8x1xf32>
    %62 = vector.broadcast %61 : vector<8x1xf32> to vector<8x8xf32>
    %63 = arith.subf %59, %62 : vector<8x8xf32>
    %64 = math.exp %63 : vector<8x8xf32>
    %cst_52 = arith.constant dense<0.000000e+00> : vector<8xf32>
    %65 = vector.multi_reduction <add>, %64, %cst_52 [1] : vector<8x8xf32> to vector<8xf32>
    %66 = vector.shape_cast %65 : vector<8xf32> to vector<8x1xf32>
    %67 = tpu.reciprocal %66 {approx = true} : vector<8x1xf32> -> vector<8x1xf32>
    %68 = vector.broadcast %67 : vector<8x1xf32> to vector<8x8xf32>
    %69 = arith.mulf %64, %68 : vector<8x8xf32>
    %c0_53 = arith.constant 0 : index
    %c0_54 = arith.constant 0 : index
    %c1_55 = arith.constant 1 : index
    %c0_56 = arith.constant 0 : index
    %c0_57 = arith.constant 0 : index
    %70 = vector.load %arg23[%c0_53, %c0_54, %c1_55, %c0_56, %c0_57] : memref<1x1x4x8x8xf32, #tpu.memory_space<vmem>>, vector<1x1x1x8x8xf32>
    %71 = vector.shape_cast %70 : vector<1x1x1x8x8xf32> to vector<8x8xf32>
    %72 = vector.shape_cast %69 : vector<8x8xf32> to vector<1x1x1x8x8xf32>
    tpu.vector_store %arg23[%c0_53, %c0_54, %c1_55, %c0_56, %c0_57], %72 {strides = array<i32>} : memref<1x1x4x8x8xf32, #tpu.memory_space<vmem>>, vector<1x1x1x8x8xf32>,
    %73 = arith.truncf %69 : vector<8x8xf32> to vector<8x8xbf16>
    %cst_58 = arith.constant dense<0.000000e+00> : vector<8x8xf32>
    %74 = tpu.matmul %73, %54, %cst_58 {dimension_numbers = #tpu.dot_dimension_numbers<[1], [0], [0], [1], [0, 0, 1, 1], [], []>} : vector<8x8xbf16>, vector<8x8xbf16>, vector<8x8xf32> -> vector<8x8xf32>
    %c0_59 = arith.constant 0 : index
    %c0_60 = arith.constant 0 : index
    %75 = vector.load %arg24[%c0_59, %c0_60] : memref<8x32xf32, #tpu.memory_space<vmem>>, vector<8x32xf32>
    %76 = arith.truncf %74 : vector<8x8xf32> to vector<8x8xbf16>
    %cst_61 = arith.constant dense<0.000000e+00> : vector<8x32xf32>
    %77 = tpu.matmul %76, %56, %cst_61 {dimension_numbers = #tpu.dot_dimension_numbers<[1], [0], [0], [1], [0, 0, 1, 1], [], []>} : vector<8x8xbf16>, vector<8x32xbf16>, vector<8x32xf32> -> vector<8x32xf32>
    %78 = arith.addf %75, %77 : vector<8x32xf32>
    %c0_62 = arith.constant 0 : index
    %c0_63 = arith.constant 0 : index
    %79 = vector.load %arg24[%c0_62, %c0_63] : memref<8x32xf32, #tpu.memory_space<vmem>>, vector<8x32xf32>
    tpu.vector_store %arg24[%c0_62, %c0_63], %78 {strides = array<i32>} : memref<8x32xf32, #tpu.memory_space<vmem>>, vector<8x32xf32>,
    %c0_64 = arith.constant 0 : index
    %c48 = arith.constant 48 : index
    %80 = vector.load %arg26[%c0_64, %c48] : memref<8x96xbf16, #tpu.memory_space<vmem>>, vector<8x8xbf16>
    %c0_65 = arith.constant 0 : index
    %c80 = arith.constant 80 : index
    %81 = vector.load %arg26[%c0_65, %c80] : memref<8x96xbf16, #tpu.memory_space<vmem>>, vector<8x8xbf16>
    %c0_66 = arith.constant 0 : index
    %c2 = arith.constant 2 : index
    %c0_67 = arith.constant 0 : index
    %c0_68 = arith.constant 0 : index
    %82 = vector.load %arg8[%c0_66, %c2, %c0_67, %c0_68] : memref<1x4x8x32xbf16, #tpu.memory_space<vmem>>, vector<1x1x8x32xbf16>
    %83 = vector.shape_cast %82 : vector<1x1x8x32xbf16> to vector<8x32xbf16>
    %c0_69 = arith.constant 0 : index
    %c16 = arith.constant 16 : index
    %84 = vector.load %arg26[%c0_69, %c16] : memref<8x96xbf16, #tpu.memory_space<vmem>>, vector<8x8xbf16>
    %cst_70 = arith.constant dense<0.000000e+00> : vector<8x8xf32>
    %85 = tpu.matmul %84, %80, %cst_70 {dimension_numbers = #tpu.dot_dimension_numbers<[1], [1], [0], [0], [0, 0, 1, 0], [], []>} : vector<8x8xbf16>, vector<8x8xbf16>, vector<8x8xf32> -> vector<8x8xf32>
    %86 = arith.addf %85, %25 : vector<8x8xf32>
    %cst_71 = arith.constant dense<0xFF800000> : vector<8xf32>
    %87 = vector.multi_reduction <maximumf>, %86, %cst_71 [1] : vector<8x8xf32> to vector<8xf32>
    %88 = vector.shape_cast %87 : vector<8xf32> to vector<8x1xf32>
    %89 = vector.broadcast %88 : vector<8x1xf32> to vector<8x8xf32>
    %90 = arith.subf %86, %89 : vector<8x8xf32>
    %91 = math.exp %90 : vector<8x8xf32>
    %cst_72 = arith.constant dense<0.000000e+00> : vector<8xf32>
    %92 = vector.multi_reduction <add>, %91, %cst_72 [1] : vector<8x8xf32> to vector<8xf32>
    %93 = vector.shape_cast %92 : vector<8xf32> to vector<8x1xf32>
    %94 = tpu.reciprocal %93 {approx = true} : vector<8x1xf32> -> vector<8x1xf32>
    %95 = vector.broadcast %94 : vector<8x1xf32> to vector<8x8xf32>
    %96 = arith.mulf %91, %95 : vector<8x8xf32>
    %c0_73 = arith.constant 0 : index
    %c0_74 = arith.constant 0 : index
    %c2_75 = arith.constant 2 : index
    %c0_76 = arith.constant 0 : index
    %c0_77 = arith.constant 0 : index
    %97 = vector.load %arg23[%c0_73, %c0_74, %c2_75, %c0_76, %c0_77] : memref<1x1x4x8x8xf32, #tpu.memory_space<vmem>>, vector<1x1x1x8x8xf32>
    %98 = vector.shape_cast %97 : vector<1x1x1x8x8xf32> to vector<8x8xf32>
    %99 = vector.shape_cast %96 : vector<8x8xf32> to vector<1x1x1x8x8xf32>
    tpu.vector_store %arg23[%c0_73, %c0_74, %c2_75, %c0_76, %c0_77], %99 {strides = array<i32>} : memref<1x1x4x8x8xf32, #tpu.memory_space<vmem>>, vector<1x1x1x8x8xf32>,
    %100 = arith.truncf %96 : vector<8x8xf32> to vector<8x8xbf16>
    %cst_78 = arith.constant dense<0.000000e+00> : vector<8x8xf32>
    %101 = tpu.matmul %100, %81, %cst_78 {dimension_numbers = #tpu.dot_dimension_numbers<[1], [0], [0], [1], [0, 0, 1, 1], [], []>} : vector<8x8xbf16>, vector<8x8xbf16>, vector<8x8xf32> -> vector<8x8xf32>
    %c0_79 = arith.constant 0 : index
    %c0_80 = arith.constant 0 : index
    %102 = vector.load %arg24[%c0_79, %c0_80] : memref<8x32xf32, #tpu.memory_space<vmem>>, vector<8x32xf32>
    %103 = arith.truncf %101 : vector<8x8xf32> to vector<8x8xbf16>
    %cst_81 = arith.constant dense<0.000000e+00> : vector<8x32xf32>
    %104 = tpu.matmul %103, %83, %cst_81 {dimension_numbers = #tpu.dot_dimension_numbers<[1], [0], [0], [1], [0, 0, 1, 1], [], []>} : vector<8x8xbf16>, vector<8x32xbf16>, vector<8x32xf32> -> vector<8x32xf32>
    %105 = arith.addf %102, %104 : vector<8x32xf32>
    %c0_82 = arith.constant 0 : index
    %c0_83 = arith.constant 0 : index
    %106 = vector.load %arg24[%c0_82, %c0_83] : memref<8x32xf32, #tpu.memory_space<vmem>>, vector<8x32xf32>
    tpu.vector_store %arg24[%c0_82, %c0_83], %105 {strides = array<i32>} : memref<8x32xf32, #tpu.memory_space<vmem>>, vector<8x32xf32>,
    %c0_84 = arith.constant 0 : index
    %c56 = arith.constant 56 : index
    %107 = vector.load %arg26[%c0_84, %c56] : memref<8x96xbf16, #tpu.memory_space<vmem>>, vector<8x8xbf16>
    %c0_85 = arith.constant 0 : index
    %c88 = arith.constant 88 : index
    %108 = vector.load %arg26[%c0_85, %c88] : memref<8x96xbf16, #tpu.memory_space<vmem>>, vector<8x8xbf16>
    %c0_86 = arith.constant 0 : index
    %c3 = arith.constant 3 : index
    %c0_87 = arith.constant 0 : index
    %c0_88 = arith.constant 0 : index
    %109 = vector.load %arg8[%c0_86, %c3, %c0_87, %c0_88] : memref<1x4x8x32xbf16, #tpu.memory_space<vmem>>, vector<1x1x8x32xbf16>
    %110 = vector.shape_cast %109 : vector<1x1x8x32xbf16> to vector<8x32xbf16>
    %c0_89 = arith.constant 0 : index
    %c24 = arith.constant 24 : index
    %111 = vector.load %arg26[%c0_89, %c24] : memref<8x96xbf16, #tpu.memory_space<vmem>>, vector<8x8xbf16>
    %cst_90 = arith.constant dense<0.000000e+00> : vector<8x8xf32>
    %112 = tpu.matmul %111, %107, %cst_90 {dimension_numbers = #tpu.dot_dimension_numbers<[1], [1], [0], [0], [0, 0, 1, 0], [], []>} : vector<8x8xbf16>, vector<8x8xbf16>, vector<8x8xf32> -> vector<8x8xf32>
    %113 = arith.addf %112, %25 : vector<8x8xf32>
    %cst_91 = arith.constant dense<0xFF800000> : vector<8xf32>
    %114 = vector.multi_reduction <maximumf>, %113, %cst_91 [1] : vector<8x8xf32> to vector<8xf32>
    %115 = vector.shape_cast %114 : vector<8xf32> to vector<8x1xf32>
    %116 = vector.broadcast %115 : vector<8x1xf32> to vector<8x8xf32>
    %117 = arith.subf %113, %116 : vector<8x8xf32>
    %118 = math.exp %117 : vector<8x8xf32>
    %cst_92 = arith.constant dense<0.000000e+00> : vector<8xf32>
    %119 = vector.multi_reduction <add>, %118, %cst_92 [1] : vector<8x8xf32> to vector<8xf32>
    %120 = vector.shape_cast %119 : vector<8xf32> to vector<8x1xf32>
    %121 = tpu.reciprocal %120 {approx = true} : vector<8x1xf32> -> vector<8x1xf32>
    %122 = vector.broadcast %121 : vector<8x1xf32> to vector<8x8xf32>
    %123 = arith.mulf %118, %122 : vector<8x8xf32>
    %c0_93 = arith.constant 0 : index
    %c0_94 = arith.constant 0 : index
    %c3_95 = arith.constant 3 : index
    %c0_96 = arith.constant 0 : index
    %c0_97 = arith.constant 0 : index
    %124 = vector.load %arg23[%c0_93, %c0_94, %c3_95, %c0_96, %c0_97] : memref<1x1x4x8x8xf32, #tpu.memory_space<vmem>>, vector<1x1x1x8x8xf32>
    %125 = vector.shape_cast %124 : vector<1x1x1x8x8xf32> to vector<8x8xf32>
    %126 = vector.shape_cast %123 : vector<8x8xf32> to vector<1x1x1x8x8xf32>
    tpu.vector_store %arg23[%c0_93, %c0_94, %c3_95, %c0_96, %c0_97], %126 {strides = array<i32>} : memref<1x1x4x8x8xf32, #tpu.memory_space<vmem>>, vector<1x1x1x8x8xf32>,
    %127 = arith.truncf %123 : vector<8x8xf32> to vector<8x8xbf16>
    %cst_98 = arith.constant dense<0.000000e+00> : vector<8x8xf32>
    %128 = tpu.matmul %127, %108, %cst_98 {dimension_numbers = #tpu.dot_dimension_numbers<[1], [0], [0], [1], [0, 0, 1, 1], [], []>} : vector<8x8xbf16>, vector<8x8xbf16>, vector<8x8xf32> -> vector<8x8xf32>
    %c0_99 = arith.constant 0 : index
    %c0_100 = arith.constant 0 : index
    %129 = vector.load %arg24[%c0_99, %c0_100] : memref<8x32xf32, #tpu.memory_space<vmem>>, vector<8x32xf32>
    %130 = arith.truncf %128 : vector<8x8xf32> to vector<8x8xbf16>
    %cst_101 = arith.constant dense<0.000000e+00> : vector<8x32xf32>
    %131 = tpu.matmul %130, %110, %cst_101 {dimension_numbers = #tpu.dot_dimension_numbers<[1], [0], [0], [1], [0, 0, 1, 1], [], []>} : vector<8x8xbf16>, vector<8x32xbf16>, vector<8x32xf32> -> vector<8x32xf32>
    %132 = arith.addf %129, %131 : vector<8x32xf32>
    %c0_102 = arith.constant 0 : index
    %c0_103 = arith.constant 0 : index
    %133 = vector.load %arg24[%c0_102, %c0_103] : memref<8x32xf32, #tpu.memory_space<vmem>>, vector<8x32xf32>
    tpu.vector_store %arg24[%c0_102, %c0_103], %132 {strides = array<i32>} : memref<8x32xf32, #tpu.memory_space<vmem>>, vector<8x32xf32>,
    %c0_104 = arith.constant 0 : index
    %c0_105 = arith.constant 0 : index
    %134 = vector.load %arg24[%c0_104, %c0_105] : memref<8x32xf32, #tpu.memory_space<vmem>>, vector<8x32xf32>
    %c0_106 = arith.constant 0 : index
    %c0_107 = arith.constant 0 : index
    %c0_108 = arith.constant 0 : index
    %135 = vector.load %arg12[%c0_106, %c0_107, %c0_108] : memref<1x1x32xf32, #tpu.memory_space<vmem>>, vector<1x1x32xf32>
    %136 = vector.shape_cast %135 : vector<1x1x32xf32> to vector<1x32xf32>
    %c0_109 = arith.constant 0 : index
    %c0_110 = arith.constant 0 : index
    %c0_111 = arith.constant 0 : index
    %137 = vector.load %arg13[%c0_109, %c0_110, %c0_111] : memref<1x1x32xf32, #tpu.memory_space<vmem>>, vector<1x1x32xf32>
    %138 = vector.shape_cast %137 : vector<1x1x32xf32> to vector<1x32xf32>
    %cst_112 = arith.constant dense<0.000000e+00> : vector<8xf32>
    %139 = vector.multi_reduction <add>, %134, %cst_112 [1] : vector<8x32xf32> to vector<8xf32>
    %140 = vector.shape_cast %139 : vector<8xf32> to vector<8x1xf32>
    %cst_113 = arith.constant 3.200000e+01 : f32
    %141 = vector.broadcast %cst_113 : f32 to vector<8x1xf32>
    %142 = arith.divf %140, %141 : vector<8x1xf32>
    %143 = arith.mulf %134, %134 : vector<8x32xf32>
    %cst_114 = arith.constant dense<0.000000e+00> : vector<8xf32>
    %144 = vector.multi_reduction <add>, %143, %cst_114 [1] : vector<8x32xf32> to vector<8xf32>
    %145 = vector.shape_cast %144 : vector<8xf32> to vector<8x1xf32>
    %cst_115 = arith.constant 3.200000e+01 : f32
    %146 = vector.broadcast %cst_115 : f32 to vector<8x1xf32>
    %147 = arith.divf %145, %146 : vector<8x1xf32>
    %148 = arith.mulf %142, %142 : vector<8x1xf32>
    %149 = arith.subf %147, %148 : vector<8x1xf32>
    %cst_116 = arith.constant 0.000000e+00 : f32
    %150 = vector.broadcast %cst_116 : f32 to vector<8x1xf32>
    %151 = arith.maximumf %149, %150 : vector<8x1xf32>
    %152 = vector.broadcast %142 : vector<8x1xf32> to vector<8x32xf32>
    %153 = arith.subf %134, %152 : vector<8x32xf32>
    %cst_117 = arith.constant 9.99999997E-7 : f32
    %154 = vector.broadcast %cst_117 : f32 to vector<8x1xf32>
    %155 = arith.addf %151, %154 : vector<8x1xf32>
    %156 = math.rsqrt %155 : vector<8x1xf32>
    %157 = vector.broadcast %156 : vector<8x1xf32> to vector<8x32xf32>
    %158 = arith.mulf %153, %157 : vector<8x32xf32>
    %159 = vector.broadcast %136 : vector<1x32xf32> to vector<8x32xf32>
    %160 = arith.mulf %158, %159 : vector<8x32xf32>
    %161 = vector.broadcast %138 : vector<1x32xf32> to vector<8x32xf32>
    %162 = arith.addf %160, %161 : vector<8x32xf32>
    %163 = arith.truncf %162 : vector<8x32xf32> to vector<8x32xbf16>
    %c0_118 = arith.constant 0 : index
    %c0_119 = arith.constant 0 : index
    %164 = vector.load %arg25[%c0_118, %c0_119] : memref<8x32xbf16, #tpu.memory_space<vmem>>, vector<8x32xbf16>
    tpu.vector_store %arg25[%c0_118, %c0_119], %163 {strides = array<i32>} : memref<8x32xbf16, #tpu.memory_space<vmem>>, vector<8x32xbf16>,
    %c0_120 = arith.constant 0 : index
    %c0_121 = arith.constant 0 : index
    %c0_122 = arith.constant 0 : index
    %165 = vector.load %arg17[%c0_120, %c0_121, %c0_122] : memref<1x1x32xf32, #tpu.memory_space<vmem>>, vector<1x1x32xf32>
    %166 = vector.shape_cast %165 : vector<1x1x32xf32> to vector<1x32xf32>
    %167 = vector.broadcast %166 : vector<1x32xf32> to vector<8x32xf32>
    %168 = arith.addf %134, %167 : vector<8x32xf32>
    %c0_123 = arith.constant 0 : index
    %c0_124 = arith.constant 0 : index
    %169 = vector.load %arg24[%c0_123, %c0_124] : memref<8x32xf32, #tpu.memory_space<vmem>>, vector<8x32xf32>
    tpu.vector_store %arg24[%c0_123, %c0_124], %168 {strides = array<i32>} : memref<8x32xf32, #tpu.memory_space<vmem>>, vector<8x32xf32>,
    %c0_125 = arith.constant 0 : index
    %c0_126 = arith.constant 0 : index
    %170 = vector.load %arg25[%c0_125, %c0_126] : memref<8x32xbf16, #tpu.memory_space<vmem>>, vector<8x32xbf16>
    %c0_127 = arith.constant 0 : index
    %c0_128 = arith.constant 0 : index
    %c0_129 = arith.constant 0 : index
    %171 = vector.load %arg14[%c0_127, %c0_128, %c0_129] : memref<1x32x64xbf16, #tpu.memory_space<vmem>>, vector<1x32x64xbf16>
    %172 = vector.shape_cast %171 : vector<1x32x64xbf16> to vector<32x64xbf16>
    %cst_130 = arith.constant dense<0.000000e+00> : vector<8x64xf32>
    %173 = tpu.matmul %170, %172, %cst_130 {dimension_numbers = #tpu.dot_dimension_numbers<[1], [0], [0], [1], [0, 0, 1, 1], [], []>} : vector<8x32xbf16>, vector<32x64xbf16>, vector<8x64xf32> -> vector<8x64xf32>
    %c0_131 = arith.constant 0 : index
    %c0_132 = arith.constant 0 : index
    %c0_133 = arith.constant 0 : index
    %174 = vector.load %arg15[%c0_131, %c0_132, %c0_133] : memref<1x1x64xf32, #tpu.memory_space<vmem>>, vector<1x1x64xf32>
    %175 = vector.shape_cast %174 : vector<1x1x64xf32> to vector<1x64xf32>
    %176 = vector.broadcast %175 : vector<1x64xf32> to vector<8x64xf32>
    %177 = arith.addf %173, %176 : vector<8x64xf32>
    %c0_134 = arith.constant 0 : index
    %c0_135 = arith.constant 0 : index
    %178 = vector.load %arg24[%c0_134, %c0_135] : memref<8x32xf32, #tpu.memory_space<vmem>>, vector<8x32xf32>
    %cst_136 = arith.constant 5.000000e-01 : f32
    %179 = vector.broadcast %cst_136 : f32 to vector<8x64xf32>
    %180 = arith.mulf %179, %177 : vector<8x64xf32>
    %181 = arith.mulf %177, %177 : vector<8x64xf32>
    %182 = arith.mulf %177, %181 : vector<8x64xf32>
    %cst_137 = arith.constant 4.471500e-02 : f32
    %183 = vector.broadcast %cst_137 : f32 to vector<8x64xf32>
    %184 = arith.mulf %183, %182 : vector<8x64xf32>
    %185 = arith.addf %177, %184 : vector<8x64xf32>
    %cst_138 = arith.constant 0.797884583 : f32
    %186 = vector.broadcast %cst_138 : f32 to vector<8x64xf32>
    %187 = arith.mulf %186, %185 : vector<8x64xf32>
    %188 = math.tanh %187 : vector<8x64xf32>
    %cst_139 = arith.constant 1.000000e+00 : f32
    %189 = vector.broadcast %cst_139 : f32 to vector<8x64xf32>
    %190 = arith.addf %189, %188 : vector<8x64xf32>
    %191 = arith.mulf %180, %190 : vector<8x64xf32>
    %192 = arith.truncf %191 : vector<8x64xf32> to vector<8x64xbf16>
    %c0_140 = arith.constant 0 : index
    %c0_141 = arith.constant 0 : index
    %c0_142 = arith.constant 0 : index
    %193 = vector.load %arg16[%c0_140, %c0_141, %c0_142] : memref<1x64x32xbf16, #tpu.memory_space<vmem>>, vector<1x64x32xbf16>
    %194 = vector.shape_cast %193 : vector<1x64x32xbf16> to vector<64x32xbf16>
    %cst_143 = arith.constant dense<0.000000e+00> : vector<8x32xf32>
    %195 = tpu.matmul %192, %194, %cst_143 {dimension_numbers = #tpu.dot_dimension_numbers<[1], [0], [0], [1], [0, 0, 1, 1], [], []>} : vector<8x64xbf16>, vector<64x32xbf16>, vector<8x32xf32> -> vector<8x32xf32>
    %196 = arith.addf %178, %195 : vector<8x32xf32>
    %c0_144 = arith.constant 0 : index
    %c0_145 = arith.constant 0 : index
    %197 = vector.load %arg24[%c0_144, %c0_145] : memref<8x32xf32, #tpu.memory_space<vmem>>, vector<8x32xf32>
    tpu.vector_store %arg24[%c0_144, %c0_145], %196 {strides = array<i32>} : memref<8x32xf32, #tpu.memory_space<vmem>>, vector<8x32xf32>,
    %c1_i32 = arith.constant 1 : i32
    %198 = arith.cmpi eq, %arg1, %c1_i32 : i32
    %199 = arith.extui %198 : i1 to i32
    %c0_i32_146 = arith.constant 0 : i32
    %200 = arith.cmpi ne, %199, %c0_i32_146 : i32
    scf.if %200 {
      %c0_147 = arith.constant 0 : index
      %c0_148 = arith.constant 0 : index
      %201 = vector.load %arg24[%c0_147, %c0_148] : memref<8x32xf32, #tpu.memory_space<vmem>>, vector<8x32xf32>
      %c0_149 = arith.constant 0 : index
      %c0_150 = arith.constant 0 : index
      %202 = vector.load %arg18[%c0_149, %c0_150] : memref<1x32xf32, #tpu.memory_space<vmem>>, vector<1x32xf32>
      %c0_151 = arith.constant 0 : index
      %c0_152 = arith.constant 0 : index
      %203 = vector.load %arg19[%c0_151, %c0_152] : memref<1x32xf32, #tpu.memory_space<vmem>>, vector<1x32xf32>
      %cst_153 = arith.constant dense<0.000000e+00> : vector<8xf32>
      %204 = vector.multi_reduction <add>, %201, %cst_153 [1] : vector<8x32xf32> to vector<8xf32>
      %205 = vector.shape_cast %204 : vector<8xf32> to vector<8x1xf32>
      %cst_154 = arith.constant 3.200000e+01 : f32
      %206 = vector.broadcast %cst_154 : f32 to vector<8x1xf32>
      %207 = arith.divf %205, %206 : vector<8x1xf32>
      %208 = arith.mulf %201, %201 : vector<8x32xf32>
      %cst_155 = arith.constant dense<0.000000e+00> : vector<8xf32>
      %209 = vector.multi_reduction <add>, %208, %cst_155 [1] : vector<8x32xf32> to vector<8xf32>
      %210 = vector.shape_cast %209 : vector<8xf32> to vector<8x1xf32>
      %cst_156 = arith.constant 3.200000e+01 : f32
      %211 = vector.broadcast %cst_156 : f32 to vector<8x1xf32>
      %212 = arith.divf %210, %211 : vector<8x1xf32>
      %213 = arith.mulf %207, %207 : vector<8x1xf32>
      %214 = arith.subf %212, %213 : vector<8x1xf32>
      %cst_157 = arith.constant 0.000000e+00 : f32
      %215 = vector.broadcast %cst_157 : f32 to vector<8x1xf32>
      %216 = arith.maximumf %214, %215 : vector<8x1xf32>
      %217 = vector.broadcast %207 : vector<8x1xf32> to vector<8x32xf32>
      %218 = arith.subf %201, %217 : vector<8x32xf32>
      %cst_158 = arith.constant 9.99999997E-7 : f32
      %219 = vector.broadcast %cst_158 : f32 to vector<8x1xf32>
      %220 = arith.addf %216, %219 : vector<8x1xf32>
      %221 = math.rsqrt %220 : vector<8x1xf32>
      %222 = vector.broadcast %221 : vector<8x1xf32> to vector<8x32xf32>
      %223 = arith.mulf %218, %222 : vector<8x32xf32>
      %224 = vector.broadcast %202 : vector<1x32xf32> to vector<8x32xf32>
      %225 = arith.mulf %223, %224 : vector<8x32xf32>
      %226 = vector.broadcast %203 : vector<1x32xf32> to vector<8x32xf32>
      %227 = arith.addf %225, %226 : vector<8x32xf32>
      %c0_159 = arith.constant 0 : index
      %c0_160 = arith.constant 0 : index
      %228 = vector.load %arg20[%c0_159, %c0_160] : memref<32x1xf32, #tpu.memory_space<vmem>>, vector<32x1xf32>
      %cst_161 = arith.constant dense<0.000000e+00> : vector<8x1xf32>
      %229 = tpu.matmul %227, %228, %cst_161 {dimension_numbers = #tpu.dot_dimension_numbers<[1], [0], [0], [1], [0, 0, 1, 1], [], []>} : vector<8x32xf32>, vector<32x1xf32>, vector<8x1xf32> -> vector<8x1xf32>
      %c0_162 = arith.constant 0 : index
      %c0_163 = arith.constant 0 : index
      %230 = vector.load %arg21[%c0_162, %c0_163] : memref<1x1xf32, #tpu.memory_space<vmem>>, vector<1x1xf32>
      %231 = vector.broadcast %230 : vector<1x1xf32> to vector<8x1xf32>
      %232 = arith.addf %229, %231 : vector<8x1xf32>
      %233 = arith.negf %232 : vector<8x1xf32>
      %234 = math.exp %233 : vector<8x1xf32>
      %cst_164 = arith.constant 1.000000e+00 : f32
      %235 = vector.broadcast %cst_164 : f32 to vector<8x1xf32>
      %236 = arith.addf %235, %234 : vector<8x1xf32>
      %237 = arith.divf %235, %236 : vector<8x1xf32>
      %c0_165 = arith.constant 0 : index
      %c0_166 = arith.constant 0 : index
      %c0_167 = arith.constant 0 : index
      %238 = vector.load %arg4[%c0_165, %c0_166, %c0_167] : memref<1x8x1xf32, #tpu.memory_space<vmem>>, vector<1x8x1xf32>
      %239 = vector.shape_cast %238 : vector<1x8x1xf32> to vector<8x1xf32>
      %240 = arith.mulf %237, %239 : vector<8x1xf32>
      %c0_168 = arith.constant 0 : index
      %c0_169 = arith.constant 0 : index
      %c0_170 = arith.constant 0 : index
      %241 = vector.load %arg22[%c0_168, %c0_169, %c0_170] : memref<1x8x1xf32, #tpu.memory_space<vmem>>, vector<1x8x1xf32>
      %242 = vector.shape_cast %241 : vector<1x8x1xf32> to vector<8x1xf32>
      %243 = vector.shape_cast %240 : vector<8x1xf32> to vector<1x8x1xf32>
      tpu.vector_store %arg22[%c0_168, %c0_169, %c0_170], %243 {strides = array<i32>} : memref<1x8x1xf32, #tpu.memory_space<vmem>>, vector<1x8x1xf32>,
    } else {
    }
    return
  }
  func.func @transform_0(%arg0: i32, %arg1: i32) -> (i32, i32, i32) {
    %c0_i32 = arith.constant 0 : i32
    %c0_i32_0 = arith.constant 0 : i32
    %c0_i32_1 = arith.constant 0 : i32
    return %arg0, %c0_i32, %c0_i32_0 : i32, i32, i32
  }
  func.func @transform_1(%arg0: i32, %arg1: i32) -> (i32, i32, i32) {
    %c0_i32 = arith.constant 0 : i32
    %c0_i32_0 = arith.constant 0 : i32
    %c0_i32_1 = arith.constant 0 : i32
    return %arg0, %c0_i32, %c0_i32_0 : i32, i32, i32
  }
  func.func @transform_2(%arg0: i32, %arg1: i32) -> (i32, i32, i32) {
    %c0_i32 = arith.constant 0 : i32
    %c0_i32_0 = arith.constant 0 : i32
    %c0_i32_1 = arith.constant 0 : i32
    return %arg0, %c0_i32, %c0_i32_0 : i32, i32, i32
  }
  func.func @transform_3(%arg0: i32, %arg1: i32) -> (i32, i32, i32) {
    %c0_i32 = arith.constant 0 : i32
    %c0_i32_0 = arith.constant 0 : i32
    %c0_i32_1 = arith.constant 0 : i32
    %c0_i32_2 = arith.constant 0 : i32
    return %c0_i32, %c0_i32_0, %c0_i32_1 : i32, i32, i32
  }
  func.func @transform_4(%arg0: i32, %arg1: i32) -> (i32, i32, i32) {
    %c0_i32 = arith.constant 0 : i32
    %c0_i32_0 = arith.constant 0 : i32
    %c0_i32_1 = arith.constant 0 : i32
    return %arg1, %c0_i32, %c0_i32_0 : i32, i32, i32
  }
  func.func @transform_5(%arg0: i32, %arg1: i32) -> (i32, i32, i32) {
    %c0_i32 = arith.constant 0 : i32
    %c0_i32_0 = arith.constant 0 : i32
    %c0_i32_1 = arith.constant 0 : i32
    return %arg1, %c0_i32, %c0_i32_0 : i32, i32, i32
  }
  func.func @transform_6(%arg0: i32, %arg1: i32) -> (i32, i32, i32, i32) {
    %c0_i32 = arith.constant 0 : i32
    %c0_i32_0 = arith.constant 0 : i32
    %c0_i32_1 = arith.constant 0 : i32
    %c0_i32_2 = arith.constant 0 : i32
    return %arg1, %c0_i32, %c0_i32_0, %c0_i32_1 : i32, i32, i32, i32
  }
  func.func @transform_7(%arg0: i32, %arg1: i32) -> (i32, i32, i32) {
    %c0_i32 = arith.constant 0 : i32
    %c0_i32_0 = arith.constant 0 : i32
    %c0_i32_1 = arith.constant 0 : i32
    return %arg1, %c0_i32, %c0_i32_0 : i32, i32, i32
  }
  func.func @transform_8(%arg0: i32, %arg1: i32) -> (i32, i32, i32) {
    %c0_i32 = arith.constant 0 : i32
    %c0_i32_0 = arith.constant 0 : i32
    %c0_i32_1 = arith.constant 0 : i32
    return %arg1, %c0_i32, %c0_i32_0 : i32, i32, i32
  }
  func.func @transform_9(%arg0: i32, %arg1: i32) -> (i32, i32, i32) {
    %c0_i32 = arith.constant 0 : i32
    %c0_i32_0 = arith.constant 0 : i32
    %c0_i32_1 = arith.constant 0 : i32
    return %arg1, %c0_i32, %c0_i32_0 : i32, i32, i32
  }
  func.func @transform_10(%arg0: i32, %arg1: i32) -> (i32, i32, i32) {
    %c0_i32 = arith.constant 0 : i32
    %c0_i32_0 = arith.constant 0 : i32
    %c0_i32_1 = arith.constant 0 : i32
    return %arg1, %c0_i32, %c0_i32_0 : i32, i32, i32
  }
  func.func @transform_11(%arg0: i32, %arg1: i32) -> (i32, i32, i32) {
    %c0_i32 = arith.constant 0 : i32
    %c0_i32_0 = arith.constant 0 : i32
    %c0_i32_1 = arith.constant 0 : i32
    return %arg1, %c0_i32, %c0_i32_0 : i32, i32, i32
  }
  func.func @transform_12(%arg0: i32, %arg1: i32) -> (i32, i32, i32) {
    %c0_i32 = arith.constant 0 : i32
    %c0_i32_0 = arith.constant 0 : i32
    %c0_i32_1 = arith.constant 0 : i32
    return %arg1, %c0_i32, %c0_i32_0 : i32, i32, i32
  }
  func.func @transform_13(%arg0: i32, %arg1: i32) -> (i32, i32, i32) {
    %c0_i32 = arith.constant 0 : i32
    %c0_i32_0 = arith.constant 0 : i32
    %c0_i32_1 = arith.constant 0 : i32
    return %arg1, %c0_i32, %c0_i32_0 : i32, i32, i32
  }
  func.func @transform_14(%arg0: i32, %arg1: i32) -> (i32, i32, i32) {
    %c0_i32 = arith.constant 0 : i32
    %c0_i32_0 = arith.constant 0 : i32
    %c0_i32_1 = arith.constant 0 : i32
    return %arg1, %c0_i32, %c0_i32_0 : i32, i32, i32
  }
  func.func @transform_15(%arg0: i32, %arg1: i32) -> (i32, i32, i32) {
    %c0_i32 = arith.constant 0 : i32
    %c0_i32_0 = arith.constant 0 : i32
    %c0_i32_1 = arith.constant 0 : i32
    return %arg1, %c0_i32, %c0_i32_0 : i32, i32, i32
  }
  func.func @transform_16(%arg0: i32, %arg1: i32) -> (i32, i32) {
    %c0_i32 = arith.constant 0 : i32
    %c0_i32_0 = arith.constant 0 : i32
    %c0_i32_1 = arith.constant 0 : i32
    return %c0_i32, %c0_i32_0 : i32, i32
  }
  func.func @transform_17(%arg0: i32, %arg1: i32) -> (i32, i32) {
    %c0_i32 = arith.constant 0 : i32
    %c0_i32_0 = arith.constant 0 : i32
    %c0_i32_1 = arith.constant 0 : i32
    return %c0_i32, %c0_i32_0 : i32, i32
  }
  func.func @transform_18(%arg0: i32, %arg1: i32) -> (i32, i32) {
    %c0_i32 = arith.constant 0 : i32
    %c0_i32_0 = arith.constant 0 : i32
    %c0_i32_1 = arith.constant 0 : i32
    return %c0_i32, %c0_i32_0 : i32, i32
  }
  func.func @transform_19(%arg0: i32, %arg1: i32) -> (i32, i32) {
    %c0_i32 = arith.constant 0 : i32
    %c0_i32_0 = arith.constant 0 : i32
    %c0_i32_1 = arith.constant 0 : i32
    return %c0_i32, %c0_i32_0 : i32, i32
  }
  func.func @transform_20(%arg0: i32, %arg1: i32) -> (i32, i32, i32) {
    %c0_i32 = arith.constant 0 : i32
    %c0_i32_0 = arith.constant 0 : i32
    %c0_i32_1 = arith.constant 0 : i32
    return %arg0, %c0_i32, %c0_i32_0 : i32, i32, i32
  }
  func.func @transform_21(%arg0: i32, %arg1: i32) -> (i32, i32, i32, i32, i32) {
    %c0_i32 = arith.constant 0 : i32
    %c0_i32_0 = arith.constant 0 : i32
    %c0_i32_1 = arith.constant 0 : i32
    %c0_i32_2 = arith.constant 0 : i32
    return %arg0, %arg1, %c0_i32, %c0_i32_0, %c0_i32_1 : i32, i32, i32, i32, i32
  }
}

</mosaic_0001>

<llo_original>
// kernel: ext_transformer_encoder.1
$region0: #{ext_transformer_encoder.1}
  #allocation0 [shape = 'u32[]', space=smem, size = 0x4, offset = 0x4, fixed_abs, tag = 'smem constant byte address 0x4 - core index']
  #allocation1 [shape = 'u32[144,128]{1,0:T(1,128)}', space=vmem, size = 0x12000, scoped, tag = 'internal scratch']
  #allocation2 [shape = 'f32[8,32]{1,0:T(8,128)}', space=vmem, size = 0x1000, scoped, tag = 'scratch operand']
  #allocation3 [shape = 'bf16[8,32]{1,0:T(8,128)(2,1)}', space=vmem, size = 0x800, scoped, tag = 'scratch operand']
  #allocation4 [shape = 'bf16[8,96]{1,0:T(8,128)(2,1)}', space=vmem, size = 0x800, scoped, tag = 'scratch operand']
  #allocation5 [shape = 'f32[1,1]{1,0:T(1,128)S(1)}', space=vmem, size = 0x200, scoped, tag = 'scoped memory for ext_transformer_encoder.1']
  %s0 = inlined_call_operand.vmem [shape: f32[2,8,32], index: 0, kind: input, shape index: {}]
  %s1 = inlined_call_operand.vmem [shape: f32[2,1,8], index: 1, kind: input, shape index: {}]
  %s2 = inlined_call_operand.vmem [shape: f32[2,8,1], index: 2, kind: input, shape index: {}]
  %s3 = inlined_call_operand.vmem [shape: f32[1,8,32], index: 3, kind: input, shape index: {}]
  %s4 = inlined_call_operand.vmem [shape: bf16[2,32,96], index: 4, kind: input, shape index: {}]
  %s5 = inlined_call_operand.vmem [shape: f32[2,1,96], index: 5, kind: input, shape index: {}]
  %s6 = inlined_call_operand.vmem [shape: bf16[2,4,8,32], index: 6, kind: input, shape index: {}]
  %s7 = inlined_call_operand.vmem [shape: f32[2,1,32], index: 7, kind: input, shape index: {}]
  %s8 = inlined_call_operand.vmem [shape: f32[2,1,32], index: 8, kind: input, shape index: {}]
  %s9 = inlined_call_operand.vmem [shape: f32[2,1,32], index: 9, kind: input, shape index: {}]
  %s10 = inlined_call_operand.vmem [shape: f32[2,1,32], index: 10, kind: input, shape index: {}]
  %s11 = inlined_call_operand.vmem [shape: f32[2,1,32], index: 11, kind: input, shape index: {}]
  %s12 = inlined_call_operand.vmem [shape: bf16[2,32,64], index: 12, kind: input, shape index: {}]
  %s13 = inlined_call_operand.vmem [shape: f32[2,1,64], index: 13, kind: input, shape index: {}]
  %s14 = inlined_call_operand.vmem [shape: bf16[2,64,32], index: 14, kind: input, shape index: {}]
  %s15 = inlined_call_operand.vmem [shape: f32[2,1,32], index: 15, kind: input, shape index: {}]
  %s16 = inlined_call_operand.vmem [shape: f32[1,32], index: 16, kind: input, shape index: {}]
  %s17 = inlined_call_operand.vmem [shape: f32[1,32], index: 17, kind: input, shape index: {}]
  %s18 = inlined_call_operand.vmem [shape: f32[32,1], index: 18, kind: input, shape index: {}]
  %s19 = inlined_call_operand.<no memory space> [shape: f32[1,1], index: 19, kind: input, shape index: {}]
  %s20 = inlined_call_operand.vmem [shape: f32[2,8,1], index: 20, kind: output, shape index: {0}]
  %s21 = inlined_call_operand.vmem [shape: f32[2,2,4,8,8], index: 21, kind: output, shape index: {1}]
  %22 = xla_tuple %s20, %s21
  %s23 = sld [smem:[#allocation0]]
  $region133: #{ext_transformer_encoder.1} parent=0
    _
  %s25 = ssub.s32 1, %s23
  %s26 = scalar_select 0, %s25, %s23
  %v27 = vstv %s19
  %28 = vst [vmem:[#allocation5] sm:$0x1] %v27
  loop: start=0, step=1, limit=6
  $region2: #{ext_transformer_encoder.1} parent=0 // loop_pre_header
    _
  $region3: #{ext_transformer_encoder.1} parent=0 // loop_header
    %s30 = sphi 0, %s34
    %p31 = scmp.ge.s32.totalorder %s30, 6
    %s37 = sphi 0, %s49
    %s38 = sphi 0, %s45
    %s39 = sphi 0, %s37
    %s40 = sphi 0, %s38
    %s41 = sphi 0, %s39
    %s42 = sphi 0, %s40
    %s52 = sphi 0, %s54
    %s55 = sphi 0, %s52
    %s56 = sphi 0, %s55
    %s72 = sphi 0, %s56
    %s78 = sphi 0, %s80
    %s81 = sphi 0, %s78
    %s82 = sphi 0, %s81
    %s98 = sphi 0, %s82
    %s104 = sphi 0, %s106
    %s107 = sphi 0, %s104
    %s108 = sphi 0, %s107
    %s124 = sphi 0, %s108
    %s128 = sphi 0, %s128
    %s130 = sphi 0, %s128
    %s131 = sphi 0, %s130
    %s145 = sphi 0, %s131
    %s151 = sphi 0, %s153
    %s154 = sphi 0, %s151
    %s155 = sphi 0, %s154
    %s171 = sphi 0, %s155
    %s177 = sphi 0, %s179
    %s180 = sphi 0, %s177
    %s181 = sphi 0, %s180
    %s197 = sphi 0, %s181
    %s203 = sphi 0, %s205
    %s206 = sphi 0, %s203
    %s207 = sphi 0, %s206
    %s223 = sphi 0, %s207
    %s229 = sphi 0, %s231
    %s232 = sphi 0, %s229
    %s233 = sphi 0, %s232
    %s249 = sphi 0, %s233
    %s255 = sphi 0, %s257
    %s258 = sphi 0, %s255
    %s259 = sphi 0, %s258
    %s275 = sphi 0, %s259
    %s281 = sphi 0, %s283
    %s284 = sphi 0, %s281
    %s285 = sphi 0, %s284
    %s301 = sphi 0, %s285
    %s307 = sphi 0, %s309
    %s310 = sphi 0, %s307
    %s311 = sphi 0, %s310
    %s327 = sphi 0, %s311
    %s333 = sphi 0, %s335
    %s336 = sphi 0, %s333
    %s337 = sphi 0, %s336
    %s353 = sphi 0, %s337
    %s359 = sphi 0, %s361
    %s362 = sphi 0, %s359
    %s363 = sphi 0, %s362
    %s379 = sphi 0, %s363
    %s385 = sphi 0, %s387
    %s388 = sphi 0, %s385
    %s389 = sphi 0, %s388
    %s405 = sphi 0, %s389
    %s411 = sphi 0, %s413
    %s414 = sphi 0, %s411
    %s415 = sphi 0, %s414
    %s431 = sphi 0, %s415
    %s437 = sphi 0, %s439
    %s440 = sphi 0, %s437
    %s441 = sphi 0, %s440
    %s457 = sphi 0, %s441
    %s461 = sphi 0, %s461
    %s463 = sphi 0, %s461
    %s464 = sphi 0, %s463
    %s478 = sphi 0, %s464
    %s482 = sphi 0, %s482
    %s484 = sphi 0, %s482
    %s485 = sphi 0, %s484
    %s499 = sphi 0, %s485
    %s503 = sphi 0, %s503
    %s505 = sphi 0, %s503
    %s506 = sphi 0, %s505
    %s520 = sphi 0, %s506
    %s524 = sphi 0, %s524
    %s526 = sphi 0, %s524
    %s527 = sphi 0, %s526
    %s541 = sphi 0, %s527
    %s547 = sphi 0, %s549
    %s550 = sphi 0, %s547
    %s551 = sphi 0, %s550
    %s567 = sphi 0, %s551
    %s575 = sphi 0, %s577
    %s578 = sphi 0, %s575
    %s579 = sphi 0, %s578
    %s595 = sphi 0, %s579
  $region4: #{ext_transformer_encoder.1} parent=0 // loop_header_branch
    %33 = sbr.rel (%p31) target = $region8
  $region5: #{ext_transformer_encoder.1} parent=0 // loop_body
    %s35 = ssub.s32 %s30, 1
    %s36 = ssub.s32 %s30, 2
    %s43 = sadd.s32 1, %s38
    %p44 = scmp.ge.s32.totalorder %s43, 2
    %s45 = scalar_select %p44, 0, %s43
    %s46 = sadd.s32 1, %s37
    %s47 = scalar_select %p44, %s46, %s37
    %p48 = scmp.ge.s32.totalorder %s47, 2
    %s49 = scalar_select %p48, 0, %s47
    %s50 = ssub.s32 %s37, %s49
    %p51 = scmp.eq.s32.totalorder %s50, 0
    %s53 = sadd.s32 %s52, 1
    %s54 = scalar_select %p51, %s52, %s53
    %p57 = pneg %p51
    %p58 = scmp.eq.s32.totalorder %s30, 3
    %p59 = por %p57, %p58
    %p60 = scmp.ne.s32.totalorder %s52, %s55
    %p61 = scmp.eq.s32.totalorder %s30, 0
    %p62 = por %p60, %p61
    %p63 = scmp.ne.s32.totalorder %s52, %s55
    %p64 = scmp.eq.s32.totalorder %s35, 3
    %p65 = por %p63, %p64
    %p66 = scmp.ne.s32.totalorder %s55, %s56
    %p67 = scmp.eq.s32.totalorder %s35, 0
    %p68 = por %p66, %p67
    %p69 = scmp.ne.s32.totalorder %s55, %s56
    %p70 = scmp.eq.s32.totalorder %s36, 3
    %p71 = por %p69, %p70
    %p73 = scmp.ne.s32.totalorder %s56, %s72
    %p74 = scmp.eq.s32.totalorder %s36, 0
    %p75 = por %p73, %p74
    %s76 = ssub.s32 %s37, %s49
    %p77 = scmp.eq.s32.totalorder %s76, 0
    %s79 = sadd.s32 %s78, 1
    %s80 = scalar_select %p77, %s78, %s79
    %p83 = pneg %p77
    %p84 = scmp.eq.s32.totalorder %s30, 3
    %p85 = por %p83, %p84
    %p86 = scmp.ne.s32.totalorder %s78, %s81
    %p87 = scmp.eq.s32.totalorder %s30, 0
    %p88 = por %p86, %p87
    %p89 = scmp.ne.s32.totalorder %s78, %s81
    %p90 = scmp.eq.s32.totalorder %s35, 3
    %p91 = por %p89, %p90
    %p92 = scmp.ne.s32.totalorder %s81, %s82
    %p93 = scmp.eq.s32.totalorder %s35, 0
    %p94 = por %p92, %p93
    %p95 = scmp.ne.s32.totalorder %s81, %s82
    %p96 = scmp.eq.s32.totalorder %s36, 3
    %p97 = por %p95, %p96
    %p99 = scmp.ne.s32.totalorder %s82, %s98
    %p100 = scmp.eq.s32.totalorder %s36, 0
    %p101 = por %p99, %p100
    %s102 = ssub.s32 %s37, %s49
    %p103 = scmp.eq.s32.totalorder %s102, 0
    %s105 = sadd.s32 %s104, 1
    %s106 = scalar_select %p103, %s104, %s105
    %p109 = pneg %p103
    %p110 = scmp.eq.s32.totalorder %s30, 3
    %p111 = por %p109, %p110
    %p112 = scmp.ne.s32.totalorder %s104, %s107
    %p113 = scmp.eq.s32.totalorder %s30, 0
    %p114 = por %p112, %p113
    %p115 = scmp.ne.s32.totalorder %s104, %s107
    %p116 = scmp.eq.s32.totalorder %s35, 3
    %p117 = por %p115, %p116
    %p118 = scmp.ne.s32.totalorder %s107, %s108
    %p119 = scmp.eq.s32.totalorder %s35, 0
    %p120 = por %p118, %p119
    %p121 = scmp.ne.s32.totalorder %s107, %s108
    %p122 = scmp.eq.s32.totalorder %s36, 3
    %p123 = por %p121, %p122
    %p125 = scmp.ne.s32.totalorder %s108, %s124
    %p126 = scmp.eq.s32.totalorder %s36, 0
    %p127 = por %p125, %p126
    %s129 = sadd.s32 %s128, 1
    %p132 = scmp.eq.s32.totalorder %s30, 3
    %p133 = scmp.ne.s32.totalorder %s128, %s130
    %p134 = scmp.eq.s32.totalorder %s30, 0
    %p135 = por %p133, %p134
    %p136 = scmp.ne.s32.totalorder %s128, %s130
    %p137 = scmp.eq.s32.totalorder %s35, 3
    %p138 = por %p136, %p137
    %p139 = scmp.ne.s32.totalorder %s130, %s131
    %p140 = scmp.eq.s32.totalorder %s35, 0
    %p141 = por %p139, %p140
    %p142 = scmp.ne.s32.totalorder %s130, %s131
    %p143 = scmp.eq.s32.totalorder %s36, 3
    %p144 = por %p142, %p143
    %p146 = scmp.ne.s32.totalorder %s131, %s145
    %p147 = scmp.eq.s32.totalorder %s36, 0
    %p148 = por %p146, %p147
    %s149 = ssub.s32 %s38, %s45
    %p150 = scmp.eq.s32.totalorder %s149, 0
    %s152 = sadd.s32 %s151, 1
    %s153 = scalar_select %p150, %s151, %s152
    %p156 = pneg %p150
    %p157 = scmp.eq.s32.totalorder %s30, 3
    %p158 = por %p156, %p157
    %p159 = scmp.ne.s32.totalorder %s151, %s154
    %p160 = scmp.eq.s32.totalorder %s30, 0
    %p161 = por %p159, %p160
    %p162 = scmp.ne.s32.totalorder %s151, %s154
    %p163 = scmp.eq.s32.totalorder %s35, 3
    %p164 = por %p162, %p163
    %p165 = scmp.ne.s32.totalorder %s154, %s155
    %p166 = scmp.eq.s32.totalorder %s35, 0
    %p167 = por %p165, %p166
    %p168 = scmp.ne.s32.totalorder %s154, %s155
    %p169 = scmp.eq.s32.totalorder %s36, 3
    %p170 = por %p168, %p169
    %p172 = scmp.ne.s32.totalorder %s155, %s171
    %p173 = scmp.eq.s32.totalorder %s36, 0
    %p174 = por %p172, %p173
    %s175 = ssub.s32 %s38, %s45
    %p176 = scmp.eq.s32.totalorder %s175, 0
    %s178 = sadd.s32 %s177, 1
    %s179 = scalar_select %p176, %s177, %s178
    %p182 = pneg %p176
    %p183 = scmp.eq.s32.totalorder %s30, 3
    %p184 = por %p182, %p183
    %p185 = scmp.ne.s32.totalorder %s177, %s180
    %p186 = scmp.eq.s32.totalorder %s30, 0
    %p187 = por %p185, %p186
    %p188 = scmp.ne.s32.totalorder %s177, %s180
    %p189 = scmp.eq.s32.totalorder %s35, 3
    %p190 = por %p188, %p189
    %p191 = scmp.ne.s32.totalorder %s180, %s181
    %p192 = scmp.eq.s32.totalorder %s35, 0
    %p193 = por %p191, %p192
    %p194 = scmp.ne.s32.totalorder %s180, %s181
    %p195 = scmp.eq.s32.totalorder %s36, 3
    %p196 = por %p194, %p195
    %p198 = scmp.ne.s32.totalorder %s181, %s197
    %p199 = scmp.eq.s32.totalorder %s36, 0
    %p200 = por %p198, %p199
    %s201 = ssub.s32 %s38, %s45
    %p202 = scmp.eq.s32.totalorder %s201, 0
    %s204 = sadd.s32 %s203, 1
    %s205 = scalar_select %p202, %s203, %s204
    %p208 = pneg %p202
    %p209 = scmp.eq.s32.totalorder %s30, 3
    %p210 = por %p208, %p209
    %p211 = scmp.ne.s32.totalorder %s203, %s206
    %p212 = scmp.eq.s32.totalorder %s30, 0
    %p213 = por %p211, %p212
    %p214 = scmp.ne.s32.totalorder %s203, %s206
    %p215 = scmp.eq.s32.totalorder %s35, 3
    %p216 = por %p214, %p215
    %p217 = scmp.ne.s32.totalorder %s206, %s207
    %p218 = scmp.eq.s32.totalorder %s35, 0
    %p219 = por %p217, %p218
    %p220 = scmp.ne.s32.totalorder %s206, %s207
    %p221 = scmp.eq.s32.totalorder %s36, 3
    %p222 = por %p220, %p221
    %p224 = scmp.ne.s32.totalorder %s207, %s223
    %p225 = scmp.eq.s32.totalorder %s36, 0
    %p226 = por %p224, %p225
    %s227 = ssub.s32 %s38, %s45
    %p228 = scmp.eq.s32.totalorder %s227, 0
    %s230 = sadd.s32 %s229, 1
    %s231 = scalar_select %p228, %s229, %s230
    %p234 = pneg %p228
    %p235 = scmp.eq.s32.totalorder %s30, 3
    %p236 = por %p234, %p235
    %p237 = scmp.ne.s32.totalorder %s229, %s232
    %p238 = scmp.eq.s32.totalorder %s30, 0
    %p239 = por %p237, %p238
    %p240 = scmp.ne.s32.totalorder %s229, %s232
    %p241 = scmp.eq.s32.totalorder %s35, 3
    %p242 = por %p240, %p241
    %p243 = scmp.ne.s32.totalorder %s232, %s233
    %p244 = scmp.eq.s32.totalorder %s35, 0
    %p245 = por %p243, %p244
    %p246 = scmp.ne.s32.totalorder %s232, %s233
    %p247 = scmp.eq.s32.totalorder %s36, 3
    %p248 = por %p246, %p247
    %p250 = scmp.ne.s32.totalorder %s233, %s249
    %p251 = scmp.eq.s32.totalorder %s36, 0
    %p252 = por %p250, %p251
    %s253 = ssub.s32 %s38, %s45
    %p254 = scmp.eq.s32.totalorder %s253, 0
    %s256 = sadd.s32 %s255, 1
    %s257 = scalar_select %p254, %s255, %s256
    %p260 = pneg %p254
    %p261 = scmp.eq.s32.totalorder %s30, 3
    %p262 = por %p260, %p261
    %p263 = scmp.ne.s32.totalorder %s255, %s258
    %p264 = scmp.eq.s32.totalorder %s30, 0
    %p265 = por %p263, %p264
    %p266 = scmp.ne.s32.totalorder %s255, %s258
    %p267 = scmp.eq.s32.totalorder %s35, 3
    %p268 = por %p266, %p267
    %p269 = scmp.ne.s32.totalorder %s258, %s259
    %p270 = scmp.eq.s32.totalorder %s35, 0
    %p271 = por %p269, %p270
    %p272 = scmp.ne.s32.totalorder %s258, %s259
    %p273 = scmp.eq.s32.totalorder %s36, 3
    %p274 = por %p272, %p273
    %p276 = scmp.ne.s32.totalorder %s259, %s275
    %p277 = scmp.eq.s32.totalorder %s36, 0
    %p278 = por %p276, %p277
    %s279 = ssub.s32 %s38, %s45
    %p280 = scmp.eq.s32.totalorder %s279, 0
    %s282 = sadd.s32 %s281, 1
    %s283 = scalar_select %p280, %s281, %s282
    %p286 = pneg %p280
    %p287 = scmp.eq.s32.totalorder %s30, 3
    %p288 = por %p286, %p287
    %p289 = scmp.ne.s32.totalorder %s281, %s284
    %p290 = scmp.eq.s32.totalorder %s30, 0
    %p291 = por %p289, %p290
    %p292 = scmp.ne.s32.totalorder %s281, %s284
    %p293 = scmp.eq.s32.totalorder %s35, 3
    %p294 = por %p292, %p293
    %p295 = scmp.ne.s32.totalorder %s284, %s285
    %p296 = scmp.eq.s32.totalorder %s35, 0
    %p297 = por %p295, %p296
    %p298 = scmp.ne.s32.totalorder %s284, %s285
    %p299 = scmp.eq.s32.totalorder %s36, 3
    %p300 = por %p298, %p299
    %p302 = scmp.ne.s32.totalorder %s285, %s301
    %p303 = scmp.eq.s32.totalorder %s36, 0
    %p304 = por %p302, %p303
    %s305 = ssub.s32 %s38, %s45
    %p306 = scmp.eq.s32.totalorder %s305, 0
    %s308 = sadd.s32 %s307, 1
    %s309 = scalar_select %p306, %s307, %s308
    %p312 = pneg %p306
    %p313 = scmp.eq.s32.totalorder %s30, 3
    %p314 = por %p312, %p313
    %p315 = scmp.ne.s32.totalorder %s307, %s310
    %p316 = scmp.eq.s32.totalorder %s30, 0
    %p317 = por %p315, %p316
    %p318 = scmp.ne.s32.totalorder %s307, %s310
    %p319 = scmp.eq.s32.totalorder %s35, 3
    %p320 = por %p318, %p319
    %p321 = scmp.ne.s32.totalorder %s310, %s311
    %p322 = scmp.eq.s32.totalorder %s35, 0
    %p323 = por %p321, %p322
    %p324 = scmp.ne.s32.totalorder %s310, %s311
    %p325 = scmp.eq.s32.totalorder %s36, 3
    %p326 = por %p324, %p325
    %p328 = scmp.ne.s32.totalorder %s311, %s327
    %p329 = scmp.eq.s32.totalorder %s36, 0
    %p330 = por %p328, %p329
    %s331 = ssub.s32 %s38, %s45
    %p332 = scmp.eq.s32.totalorder %s331, 0
    %s334 = sadd.s32 %s333, 1
    %s335 = scalar_select %p332, %s333, %s334
    %p338 = pneg %p332
    %p339 = scmp.eq.s32.totalorder %s30, 3
    %p340 = por %p338, %p339
    %p341 = scmp.ne.s32.totalorder %s333, %s336
    %p342 = scmp.eq.s32.totalorder %s30, 0
    %p343 = por %p341, %p342
    %p344 = scmp.ne.s32.totalorder %s333, %s336
    %p345 = scmp.eq.s32.totalorder %s35, 3
    %p346 = por %p344, %p345
    %p347 = scmp.ne.s32.totalorder %s336, %s337
    %p348 = scmp.eq.s32.totalorder %s35, 0
    %p349 = por %p347, %p348
    %p350 = scmp.ne.s32.totalorder %s336, %s337
    %p351 = scmp.eq.s32.totalorder %s36, 3
    %p352 = por %p350, %p351
    %p354 = scmp.ne.s32.totalorder %s337, %s353
    %p355 = scmp.eq.s32.totalorder %s36, 0
    %p356 = por %p354, %p355
    %s357 = ssub.s32 %s38, %s45
    %p358 = scmp.eq.s32.totalorder %s357, 0
    %s360 = sadd.s32 %s359, 1
    %s361 = scalar_select %p358, %s359, %s360
    %p364 = pneg %p358
    %p365 = scmp.eq.s32.totalorder %s30, 3
    %p366 = por %p364, %p365
    %p367 = scmp.ne.s32.totalorder %s359, %s362
    %p368 = scmp.eq.s32.totalorder %s30, 0
    %p369 = por %p367, %p368
    %p370 = scmp.ne.s32.totalorder %s359, %s362
    %p371 = scmp.eq.s32.totalorder %s35, 3
    %p372 = por %p370, %p371
    %p373 = scmp.ne.s32.totalorder %s362, %s363
    %p374 = scmp.eq.s32.totalorder %s35, 0
    %p375 = por %p373, %p374
    %p376 = scmp.ne.s32.totalorder %s362, %s363
    %p377 = scmp.eq.s32.totalorder %s36, 3
    %p378 = por %p376, %p377
    %p380 = scmp.ne.s32.totalorder %s363, %s379
    %p381 = scmp.eq.s32.totalorder %s36, 0
    %p382 = por %p380, %p381
    %s383 = ssub.s32 %s38, %s45
    %p384 = scmp.eq.s32.totalorder %s383, 0
    %s386 = sadd.s32 %s385, 1
    %s387 = scalar_select %p384, %s385, %s386
    %p390 = pneg %p384
    %p391 = scmp.eq.s32.totalorder %s30, 3
    %p392 = por %p390, %p391
    %p393 = scmp.ne.s32.totalorder %s385, %s388
    %p394 = scmp.eq.s32.totalorder %s30, 0
    %p395 = por %p393, %p394
    %p396 = scmp.ne.s32.totalorder %s385, %s388
    %p397 = scmp.eq.s32.totalorder %s35, 3
    %p398 = por %p396, %p397
    %p399 = scmp.ne.s32.totalorder %s388, %s389
    %p400 = scmp.eq.s32.totalorder %s35, 0
    %p401 = por %p399, %p400
    %p402 = scmp.ne.s32.totalorder %s388, %s389
    %p403 = scmp.eq.s32.totalorder %s36, 3
    %p404 = por %p402, %p403
    %p406 = scmp.ne.s32.totalorder %s389, %s405
    %p407 = scmp.eq.s32.totalorder %s36, 0
    %p408 = por %p406, %p407
    %s409 = ssub.s32 %s38, %s45
    %p410 = scmp.eq.s32.totalorder %s409, 0
    %s412 = sadd.s32 %s411, 1
    %s413 = scalar_select %p410, %s411, %s412
    %p416 = pneg %p410
    %p417 = scmp.eq.s32.totalorder %s30, 3
    %p418 = por %p416, %p417
    %p419 = scmp.ne.s32.totalorder %s411, %s414
    %p420 = scmp.eq.s32.totalorder %s30, 0
    %p421 = por %p419, %p420
    %p422 = scmp.ne.s32.totalorder %s411, %s414
    %p423 = scmp.eq.s32.totalorder %s35, 3
    %p424 = por %p422, %p423
    %p425 = scmp.ne.s32.totalorder %s414, %s415
    %p426 = scmp.eq.s32.totalorder %s35, 0
    %p427 = por %p425, %p426
    %p428 = scmp.ne.s32.totalorder %s414, %s415
    %p429 = scmp.eq.s32.totalorder %s36, 3
    %p430 = por %p428, %p429
    %p432 = scmp.ne.s32.totalorder %s415, %s431
    %p433 = scmp.eq.s32.totalorder %s36, 0
    %p434 = por %p432, %p433
    %s435 = ssub.s32 %s38, %s45
    %p436 = scmp.eq.s32.totalorder %s435, 0
    %s438 = sadd.s32 %s437, 1
    %s439 = scalar_select %p436, %s437, %s438
    %p442 = pneg %p436
    %p443 = scmp.eq.s32.totalorder %s30, 3
    %p444 = por %p442, %p443
    %p445 = scmp.ne.s32.totalorder %s437, %s440
    %p446 = scmp.eq.s32.totalorder %s30, 0
    %p447 = por %p445, %p446
    %p448 = scmp.ne.s32.totalorder %s437, %s440
    %p449 = scmp.eq.s32.totalorder %s35, 3
    %p450 = por %p448, %p449
    %p451 = scmp.ne.s32.totalorder %s440, %s441
    %p452 = scmp.eq.s32.totalorder %s35, 0
    %p453 = por %p451, %p452
    %p454 = scmp.ne.s32.totalorder %s440, %s441
    %p455 = scmp.eq.s32.totalorder %s36, 3
    %p456 = por %p454, %p455
    %p458 = scmp.ne.s32.totalorder %s441, %s457
    %p459 = scmp.eq.s32.totalorder %s36, 0
    %p460 = por %p458, %p459
    %s462 = sadd.s32 %s461, 1
    %p465 = scmp.eq.s32.totalorder %s30, 3
    %p466 = scmp.ne.s32.totalorder %s461, %s463
    %p467 = scmp.eq.s32.totalorder %s30, 0
    %p468 = por %p466, %p467
    %p469 = scmp.ne.s32.totalorder %s461, %s463
    %p470 = scmp.eq.s32.totalorder %s35, 3
    %p471 = por %p469, %p470
    %p472 = scmp.ne.s32.totalorder %s463, %s464
    %p473 = scmp.eq.s32.totalorder %s35, 0
    %p474 = por %p472, %p473
    %p475 = scmp.ne.s32.totalorder %s463, %s464
    %p476 = scmp.eq.s32.totalorder %s36, 3
    %p477 = por %p475, %p476
    %p479 = scmp.ne.s32.totalorder %s464, %s478
    %p480 = scmp.eq.s32.totalorder %s36, 0
    %p481 = por %p479, %p480
    %s483 = sadd.s32 %s482, 1
    %p486 = scmp.eq.s32.totalorder %s30, 3
    %p487 = scmp.ne.s32.totalorder %s482, %s484
    %p488 = scmp.eq.s32.totalorder %s30, 0
    %p489 = por %p487, %p488
    %p490 = scmp.ne.s32.totalorder %s482, %s484
    %p491 = scmp.eq.s32.totalorder %s35, 3
    %p492 = por %p490, %p491
    %p493 = scmp.ne.s32.totalorder %s484, %s485
    %p494 = scmp.eq.s32.totalorder %s35, 0
    %p495 = por %p493, %p494
    %p496 = scmp.ne.s32.totalorder %s484, %s485
    %p497 = scmp.eq.s32.totalorder %s36, 3
    %p498 = por %p496, %p497
    %p500 = scmp.ne.s32.totalorder %s485, %s499
    %p501 = scmp.eq.s32.totalorder %s36, 0
    %p502 = por %p500, %p501
    %s504 = sadd.s32 %s503, 1
    %p507 = scmp.eq.s32.totalorder %s30, 3
    %p508 = scmp.ne.s32.totalorder %s503, %s505
    %p509 = scmp.eq.s32.totalorder %s30, 0
    %p510 = por %p508, %p509
    %p511 = scmp.ne.s32.totalorder %s503, %s505
    %p512 = scmp.eq.s32.totalorder %s35, 3
    %p513 = por %p511, %p512
    %p514 = scmp.ne.s32.totalorder %s505, %s506
    %p515 = scmp.eq.s32.totalorder %s35, 0
    %p516 = por %p514, %p515
    %p517 = scmp.ne.s32.totalorder %s505, %s506
    %p518 = scmp.eq.s32.totalorder %s36, 3
    %p519 = por %p517, %p518
    %p521 = scmp.ne.s32.totalorder %s506, %s520
    %p522 = scmp.eq.s32.totalorder %s36, 0
    %p523 = por %p521, %p522
    %s525 = sadd.s32 %s524, 1
    %p528 = scmp.eq.s32.totalorder %s30, 3
    %p529 = scmp.ne.s32.totalorder %s524, %s526
    %p530 = scmp.eq.s32.totalorder %s30, 0
    %p531 = por %p529, %p530
    %p532 = scmp.ne.s32.totalorder %s524, %s526
    %p533 = scmp.eq.s32.totalorder %s35, 3
    %p534 = por %p532, %p533
    %p535 = scmp.ne.s32.totalorder %s526, %s527
    %p536 = scmp.eq.s32.totalorder %s35, 0
    %p537 = por %p535, %p536
    %p538 = scmp.ne.s32.totalorder %s526, %s527
    %p539 = scmp.eq.s32.totalorder %s36, 3
    %p540 = por %p538, %p539
    %p542 = scmp.ne.s32.totalorder %s527, %s541
    %p543 = scmp.eq.s32.totalorder %s36, 0
    %p544 = por %p542, %p543
    %s545 = ssub.s32 %s37, %s49
    %p546 = scmp.eq.s32.totalorder %s545, 0
    %s548 = sadd.s32 %s547, 1
    %s549 = scalar_select %p546, %s547, %s548
    %p552 = pneg %p546
    %p553 = scmp.eq.s32.totalorder %s30, 3
    %p554 = por %p552, %p553
    %p555 = scmp.ne.s32.totalorder %s547, %s550
    %p556 = scmp.eq.s32.totalorder %s30, 0
    %p557 = por %p555, %p556
    %p558 = scmp.ne.s32.totalorder %s547, %s550
    %p559 = scmp.eq.s32.totalorder %s35, 3
    %p560 = por %p558, %p559
    %p561 = scmp.ne.s32.totalorder %s550, %s551
    %p562 = scmp.eq.s32.totalorder %s35, 0
    %p563 = por %p561, %p562
    %p564 = scmp.ne.s32.totalorder %s550, %s551
    %p565 = scmp.eq.s32.totalorder %s36, 3
    %p566 = por %p564, %p565
    %p568 = scmp.ne.s32.totalorder %s551, %s567
    %p569 = scmp.eq.s32.totalorder %s36, 0
    %p570 = por %p568, %p569
    %s571 = ssub.s32 %s37, %s49
    %s572 = ssub.s32 %s38, %s45
    %s573 = sor.u32 %s571, %s572
    %p574 = scmp.eq.s32.totalorder %s573, 0
    %s576 = sadd.s32 %s575, 1
    %s577 = scalar_select %p574, %s575, %s576
    %p580 = pneg %p574
    %p581 = scmp.eq.s32.totalorder %s30, 3
    %p582 = por %p580, %p581
    %p583 = scmp.ne.s32.totalorder %s575, %s578
    %p584 = scmp.eq.s32.totalorder %s30, 0
    %p585 = por %p583, %p584
    %p586 = scmp.ne.s32.totalorder %s575, %s578
    %p587 = scmp.eq.s32.totalorder %s35, 3
    %p588 = por %p586, %p587
    %p589 = scmp.ne.s32.totalorder %s578, %s579
    %p590 = scmp.eq.s32.totalorder %s35, 0
    %p591 = por %p589, %p590
    %p592 = scmp.ne.s32.totalorder %s578, %s579
    %p593 = scmp.eq.s32.totalorder %s36, 3
    %p594 = por %p592, %p593
    %p596 = scmp.ne.s32.totalorder %s579, %s595
    %p597 = scmp.eq.s32.totalorder %s36, 0
    %p598 = por %p596, %p597
    %p599 = scmp.le.s32.totalorder 1, %s30
    %p600 = scmp.lt.s32.totalorder %s30, 5
    %p601 = pnand %p599, %p600
    %p602 = pneg %p601
    // Predicated region
    $region9: #{ext_transformer_encoder.1} parent=5 // pred_check
      _
    $region10: #{ext_transformer_encoder.1} parent=5 // pred_check_branch
      %604 = sbr.rel (%p601) target = $region12
    $region11: #{ext_transformer_encoder.1} parent=5 // pred_region
      %s605 = ssub.s32 %s30, 1
      // Predicated region
      $region13: #{ext_transformer_encoder.1} parent=11 // pred_check
        %p606 = pneg %p141
      $region14: #{ext_transformer_encoder.1} parent=11 // pred_check_branch
        %608 = sbr.rel (%p606) target = $region16
      $region15: #{ext_transformer_encoder.1} parent=11 // pred_region
        _
      $region16: #{ext_transformer_encoder.1} parent=11 // pred_fallthru
        _
      // Predicated region
      $region17: #{ext_transformer_encoder.1} parent=11 // pred_check
        %p609 = pneg %p474
      $region18: #{ext_transformer_encoder.1} parent=11 // pred_check_branch
        %611 = sbr.rel (%p609) target = $region20
      $region19: #{ext_transformer_encoder.1} parent=11 // pred_region
        _
      $region20: #{ext_transformer_encoder.1} parent=11 // pred_fallthru
        _
      // Predicated region
      $region21: #{ext_transformer_encoder.1} parent=11 // pred_check
        %p612 = pneg %p495
      $region22: #{ext_transformer_encoder.1} parent=11 // pred_check_branch
        %614 = sbr.rel (%p612) target = $region24
      $region23: #{ext_transformer_encoder.1} parent=11 // pred_region
        _
      $region24: #{ext_transformer_encoder.1} parent=11 // pred_fallthru
        _
      // Predicated region
      $region25: #{ext_transformer_encoder.1} parent=11 // pred_check
        %p615 = pneg %p516
      $region26: #{ext_transformer_encoder.1} parent=11 // pred_check_branch
        %617 = sbr.rel (%p615) target = $region28
      $region27: #{ext_transformer_encoder.1} parent=11 // pred_region
        _
      $region28: #{ext_transformer_encoder.1} parent=11 // pred_fallthru
        _
      // Predicated region
      $region29: #{ext_transformer_encoder.1} parent=11 // pred_check
        %p618 = pneg %p537
      $region30: #{ext_transformer_encoder.1} parent=11 // pred_check_branch
        %620 = sbr.rel (%p618) target = $region32
      $region31: #{ext_transformer_encoder.1} parent=11 // pred_region
        _
      $region32: #{ext_transformer_encoder.1} parent=11 // pred_fallthru
        _
    $region12: #{ext_transformer_encoder.1} parent=5 // pred_fallthru
      _
    %p621 = scmp.lt.s32.totalorder %s30, 4
    // Predicated region
    $region33: #{ext_transformer_encoder.1} parent=5 // pred_check
      %p622 = pneg %p621
    $region34: #{ext_transformer_encoder.1} parent=5 // pred_check_branch
      %624 = sbr.rel (%p622) target = $region36
    $region35: #{ext_transformer_encoder.1} parent=5 // pred_region
      // Predicated region
      $region37: #{ext_transformer_encoder.1} parent=35 // pred_check
        %p625 = pneg %p62
      $region38: #{ext_transformer_encoder.1} parent=35 // pred_check_branch
        %627 = sbr.rel (%p625) target = $region40
      $region39: #{ext_transformer_encoder.1} parent=35 // pred_region
        %p628 = scmp.lt.s32.totalorder %s37, 1
        %s629 = scalar_select %p628, %s37, 1
        %s630 = smul.addr %s629, 8
        %s631 = scalar_lea.vmem %s0, %s630
      $region40: #{ext_transformer_encoder.1} parent=35 // pred_fallthru
        _
      // Predicated region
      $region41: #{ext_transformer_encoder.1} parent=35 // pred_check
        %p632 = pneg %p88
      $region42: #{ext_transformer_encoder.1} parent=35 // pred_check_branch
        %634 = sbr.rel (%p632) target = $region44
      $region43: #{ext_transformer_encoder.1} parent=35 // pred_region
        %p635 = scmp.lt.s32.totalorder %s37, 1
        %s636 = scalar_select %p635, %s37, 1
        %s637 = scalar_lea.vmem %s1, %s636
      $region44: #{ext_transformer_encoder.1} parent=35 // pred_fallthru
        _
      // Predicated region
      $region45: #{ext_transformer_encoder.1} parent=35 // pred_check
        %p638 = pneg %p114
      $region46: #{ext_transformer_encoder.1} parent=35 // pred_check_branch
        %640 = sbr.rel (%p638) target = $region48
      $region47: #{ext_transformer_encoder.1} parent=35 // pred_region
        %p641 = scmp.lt.s32.totalorder %s37, 1
        %s642 = scalar_select %p641, %s37, 1
        %s643 = smul.addr %s642, 8
        %s644 = scalar_lea.vmem %s2, %s643
      $region48: #{ext_transformer_encoder.1} parent=35 // pred_fallthru
        _
      // Predicated region
      $region49: #{ext_transformer_encoder.1} parent=35 // pred_check
        %p645 = pneg %p161
      $region50: #{ext_transformer_encoder.1} parent=35 // pred_check_branch
        %647 = sbr.rel (%p645) target = $region52
      $region51: #{ext_transformer_encoder.1} parent=35 // pred_region
        %p648 = scmp.lt.s32.totalorder %s38, 1
        %s649 = scalar_select %p648, %s38, 1
        %s650 = smul.addr %s649, 4
        %s651 = smul.addr %s650, 4
        %s652 = scalar_lea.vmem %s4, %s651
      $region52: #{ext_transformer_encoder.1} parent=35 // pred_fallthru
        _
      // Predicated region
      $region53: #{ext_transformer_encoder.1} parent=35 // pred_check
        %p653 = pneg %p187
      $region54: #{ext_transformer_encoder.1} parent=35 // pred_check_branch
        %655 = sbr.rel (%p653) target = $region56
      $region55: #{ext_transformer_encoder.1} parent=35 // pred_region
        %p656 = scmp.lt.s32.totalorder %s38, 1
        %s657 = scalar_select %p656, %s38, 1
        %s658 = scalar_lea.vmem %s5, %s657
      $region56: #{ext_transformer_encoder.1} parent=35 // pred_fallthru
        _
      // Predicated region
      $region57: #{ext_transformer_encoder.1} parent=35 // pred_check
        %p659 = pneg %p213
      $region58: #{ext_transformer_encoder.1} parent=35 // pred_check_branch
        %661 = sbr.rel (%p659) target = $region60
      $region59: #{ext_transformer_encoder.1} parent=35 // pred_region
        %p662 = scmp.lt.s32.totalorder %s38, 1
        %s663 = scalar_select %p662, %s38, 1
        %s664 = smul.addr %s663, 4
        %s665 = smul.addr %s664, 4
        %s666 = scalar_lea.vmem %s6, %s665
      $region60: #{ext_transformer_encoder.1} parent=35 // pred_fallthru
        _
      // Predicated region
      $region61: #{ext_transformer_encoder.1} parent=35 // pred_check
        %p667 = pneg %p239
      $region62: #{ext_transformer_encoder.1} parent=35 // pred_check_branch
        %669 = sbr.rel (%p667) target = $region64
      $region63: #{ext_transformer_encoder.1} parent=35 // pred_region
        %p670 = scmp.lt.s32.totalorder %s38, 1
        %s671 = scalar_select %p670, %s38, 1
        %s672 = scalar_lea.vmem %s7, %s671
      $region64: #{ext_transformer_encoder.1} parent=35 // pred_fallthru
        _
      // Predicated region
      $region65: #{ext_transformer_encoder.1} parent=35 // pred_check
        %p673 = pneg %p265
      $region66: #{ext_transformer_encoder.1} parent=35 // pred_check_branch
        %675 = sbr.rel (%p673) target = $region68
      $region67: #{ext_transformer_encoder.1} parent=35 // pred_region
        %p676 = scmp.lt.s32.totalorder %s38, 1
        %s677 = scalar_select %p676, %s38, 1
        %s678 = scalar_lea.vmem %s8, %s677
      $region68: #{ext_transformer_encoder.1} parent=35 // pred_fallthru
        _
      // Predicated region
      $region69: #{ext_transformer_encoder.1} parent=35 // pred_check
        %p679 = pneg %p291
      $region70: #{ext_transformer_encoder.1} parent=35 // pred_check_branch
        %681 = sbr.rel (%p679) target = $region72
      $region71: #{ext_transformer_encoder.1} parent=35 // pred_region
        %p682 = scmp.lt.s32.totalorder %s38, 1
        %s683 = scalar_select %p682, %s38, 1
        %s684 = scalar_lea.vmem %s9, %s683
      $region72: #{ext_transformer_encoder.1} parent=35 // pred_fallthru
        _
      // Predicated region
      $region73: #{ext_transformer_encoder.1} parent=35 // pred_check
        %p685 = pneg %p317
      $region74: #{ext_transformer_encoder.1} parent=35 // pred_check_branch
        %687 = sbr.rel (%p685) target = $region76
      $region75: #{ext_transformer_encoder.1} parent=35 // pred_region
        %p688 = scmp.lt.s32.totalorder %s38, 1
        %s689 = scalar_select %p688, %s38, 1
        %s690 = scalar_lea.vmem %s10, %s689
      $region76: #{ext_transformer_encoder.1} parent=35 // pred_fallthru
        _
      // Predicated region
      $region77: #{ext_transformer_encoder.1} parent=35 // pred_check
        %p691 = pneg %p343
      $region78: #{ext_transformer_encoder.1} parent=35 // pred_check_branch
        %693 = sbr.rel (%p691) target = $region80
      $region79: #{ext_transformer_encoder.1} parent=35 // pred_region
        %p694 = scmp.lt.s32.totalorder %s38, 1
        %s695 = scalar_select %p694, %s38, 1
        %s696 = scalar_lea.vmem %s11, %s695
      $region80: #{ext_transformer_encoder.1} parent=35 // pred_fallthru
        _
      // Predicated region
      $region81: #{ext_transformer_encoder.1} parent=35 // pred_check
        %p697 = pneg %p369
      $region82: #{ext_transformer_encoder.1} parent=35 // pred_check_branch
        %699 = sbr.rel (%p697) target = $region84
      $region83: #{ext_transformer_encoder.1} parent=35 // pred_region
        %p700 = scmp.lt.s32.totalorder %s38, 1
        %s701 = scalar_select %p700, %s38, 1
        %s702 = smul.addr %s701, 4
        %s703 = smul.addr %s702, 4
        %s704 = scalar_lea.vmem %s12, %s703
      $region84: #{ext_transformer_encoder.1} parent=35 // pred_fallthru
        _
      // Predicated region
      $region85: #{ext_transformer_encoder.1} parent=35 // pred_check
        %p705 = pneg %p395
      $region86: #{ext_transformer_encoder.1} parent=35 // pred_check_branch
        %707 = sbr.rel (%p705) target = $region88
      $region87: #{ext_transformer_encoder.1} parent=35 // pred_region
        %p708 = scmp.lt.s32.totalorder %s38, 1
        %s709 = scalar_select %p708, %s38, 1
        %s710 = scalar_lea.vmem %s13, %s709
      $region88: #{ext_transformer_encoder.1} parent=35 // pred_fallthru
        _
      // Predicated region
      $region89: #{ext_transformer_encoder.1} parent=35 // pred_check
        %p711 = pneg %p421
      $region90: #{ext_transformer_encoder.1} parent=35 // pred_check_branch
        %713 = sbr.rel (%p711) target = $region92
      $region91: #{ext_transformer_encoder.1} parent=35 // pred_region
        %p714 = scmp.lt.s32.totalorder %s38, 1
        %s715 = scalar_select %p714, %s38, 1
        %s716 = smul.addr %s715, 8
        %s717 = smul.addr %s716, 4
        %s718 = scalar_lea.vmem %s14, %s717
      $region92: #{ext_transformer_encoder.1} parent=35 // pred_fallthru
        _
      // Predicated region
      $region93: #{ext_transformer_encoder.1} parent=35 // pred_check
        %p719 = pneg %p447
      $region94: #{ext_transformer_encoder.1} parent=35 // pred_check_branch
        %721 = sbr.rel (%p719) target = $region96
      $region95: #{ext_transformer_encoder.1} parent=35 // pred_region
        %p722 = scmp.lt.s32.totalorder %s38, 1
        %s723 = scalar_select %p722, %s38, 1
        %s724 = scalar_lea.vmem %s15, %s723
      $region96: #{ext_transformer_encoder.1} parent=35 // pred_fallthru
        _
    $region36: #{ext_transformer_encoder.1} parent=5 // pred_fallthru
      _
    %p725 = scmp.le.s32.totalorder 1, %s30
    %p726 = scmp.lt.s32.totalorder %s30, 5
    %p727 = pnand %p725, %p726
    %p728 = pneg %p727
    // Predicated region
    $region97: #{ext_transformer_encoder.1} parent=5 // pred_check
      _
    $region98: #{ext_transformer_encoder.1} parent=5 // pred_check_branch
      %730 = sbr.rel (%p727) target = $region100
    $region99: #{ext_transformer_encoder.1} parent=5 // pred_region
      %s731 = ssub.s32 %s30, 1
      %p732 = scmp.lt.s32.totalorder %s39, 1
      %s733 = scalar_select %p732, %s39, 1
      %s734 = smul.addr %s733, 8
      %s735 = scalar_lea.vmem %s0, %s734
      %p736 = pneg %p68
      %p737 = pneg %p65
      %p738 = scmp.lt.s32.totalorder %s39, 1
      %s739 = scalar_select %p738, %s39, 1
      %s740 = scalar_lea.vmem %s1, %s739
      %p741 = pneg %p94
      %p742 = pneg %p91
      %p743 = scmp.lt.s32.totalorder %s39, 1
      %s744 = scalar_select %p743, %s39, 1
      %s745 = smul.addr %s744, 8
      %s746 = scalar_lea.vmem %s2, %s745
      %p747 = pneg %p120
      %p748 = pneg %p117
      %p749 = pneg %p141
      %p750 = pneg %p138
      %p751 = scmp.lt.s32.totalorder %s40, 1
      %s752 = scalar_select %p751, %s40, 1
      %s753 = smul.addr %s752, 4
      %s754 = smul.addr %s753, 4
      %s755 = scalar_lea.vmem %s4, %s754
      %p756 = pneg %p167
      %p757 = pneg %p164
      %p758 = scmp.lt.s32.totalorder %s40, 1
      %s759 = scalar_select %p758, %s40, 1
      %s760 = scalar_lea.vmem %s5, %s759
      %p761 = pneg %p193
      %p762 = pneg %p190
      %p763 = scmp.lt.s32.totalorder %s40, 1
      %s764 = scalar_select %p763, %s40, 1
      %s765 = smul.addr %s764, 4
      %s766 = smul.addr %s765, 4
      %s767 = scalar_lea.vmem %s6, %s766
      %p768 = pneg %p219
      %p769 = pneg %p216
      %p770 = scmp.lt.s32.totalorder %s40, 1
      %s771 = scalar_select %p770, %s40, 1
      %s772 = scalar_lea.vmem %s7, %s771
      %p773 = pneg %p245
      %p774 = pneg %p242
      %p775 = scmp.lt.s32.totalorder %s40, 1
      %s776 = scalar_select %p775, %s40, 1
      %s777 = scalar_lea.vmem %s8, %s776
      %p778 = pneg %p271
      %p779 = pneg %p268
      %p780 = scmp.lt.s32.totalorder %s40, 1
      %s781 = scalar_select %p780, %s40, 1
      %s782 = scalar_lea.vmem %s9, %s781
      %p783 = pneg %p297
      %p784 = pneg %p294
      %p785 = scmp.lt.s32.totalorder %s40, 1
      %s786 = scalar_select %p785, %s40, 1
      %s787 = scalar_lea.vmem %s10, %s786
      %p788 = pneg %p323
      %p789 = pneg %p320
      %p790 = scmp.lt.s32.totalorder %s40, 1
      %s791 = scalar_select %p790, %s40, 1
      %s792 = scalar_lea.vmem %s11, %s791
      %p793 = pneg %p349
      %p794 = pneg %p346
      %p795 = scmp.lt.s32.totalorder %s40, 1
      %s796 = scalar_select %p795, %s40, 1
      %s797 = smul.addr %s796, 4
      %s798 = smul.addr %s797, 4
      %s799 = scalar_lea.vmem %s12, %s798
      %p800 = pneg %p375
      %p801 = pneg %p372
      %p802 = scmp.lt.s32.totalorder %s40, 1
      %s803 = scalar_select %p802, %s40, 1
      %s804 = scalar_lea.vmem %s13, %s803
      %p805 = pneg %p401
      %p806 = pneg %p398
      %p807 = scmp.lt.s32.totalorder %s40, 1
      %s808 = scalar_select %p807, %s40, 1
      %s809 = smul.addr %s808, 8
      %s810 = smul.addr %s809, 4
      %s811 = scalar_lea.vmem %s14, %s810
      %p812 = pneg %p427
      %p813 = pneg %p424
      %p814 = scmp.lt.s32.totalorder %s40, 1
      %s815 = scalar_select %p814, %s40, 1
      %s816 = scalar_lea.vmem %s15, %s815
      %p817 = pneg %p453
      %p818 = pneg %p450
      %p819 = pneg %p474
      %p820 = pneg %p471
      %p821 = pneg %p495
      %p822 = pneg %p492
      %p823 = pneg %p516
      %p824 = pneg %p513
      %p825 = pneg %p537
      %p826 = pneg %p534
      %p827 = pneg %p563
      %p828 = pneg %p560
      %p829 = scmp.lt.s32.totalorder %s39, 1
      %s830 = scalar_select %p829, %s39, 1
      %s831 = smul.addr %s830, 8
      %s832 = scalar_lea.vmem %s20, %s831
      %p833 = pneg %p591
      %p834 = pneg %p588
      %p835 = scmp.lt.s32.totalorder %s39, 1
      %s836 = scalar_select %p835, %s39, 1
      %p837 = scmp.lt.s32.totalorder %s40, 1
      %s838 = scalar_select %p837, %s40, 1
      %s839 = smul.addr %s838, 4
      %s840 = smul.addr %s836, 8
      %s841 = sadd.s32 %s839, %s840
      %s842 = smul.addr %s841, 8
      %s843 = scalar_lea.vmem %s21, %s842
      %p844 = scmp.lt.s32.totalorder %s39, 1
      %s845 = scalar_select %p844, %s39, 1
      %s846 = smul.addr %s845, 8
      %s847 = scalar_lea.vmem %s0, %s846
      %p848 = scmp.lt.s32.totalorder %s39, 1
      %s849 = scalar_select %p848, %s39, 1
      %s850 = scalar_lea.vmem %s1, %s849
      %p851 = scmp.lt.s32.totalorder %s39, 1
      %s852 = scalar_select %p851, %s39, 1
      %s853 = smul.addr %s852, 8
      %s854 = scalar_lea.vmem %s2, %s853
      %p855 = scmp.lt.s32.totalorder %s40, 1
      %s856 = scalar_select %p855, %s40, 1
      %s857 = smul.addr %s856, 4
      %s858 = smul.addr %s857, 4
      %s859 = scalar_lea.vmem %s4, %s858
      %p860 = scmp.lt.s32.totalorder %s40, 1
      %s861 = scalar_select %p860, %s40, 1
      %s862 = scalar_lea.vmem %s5, %s861
      %p863 = scmp.lt.s32.totalorder %s40, 1
      %s864 = scalar_select %p863, %s40, 1
      %s865 = smul.addr %s864, 4
      %s866 = smul.addr %s865, 4
      %s867 = scalar_lea.vmem %s6, %s866
      %p868 = scmp.lt.s32.totalorder %s40, 1
      %s869 = scalar_select %p868, %s40, 1
      %s870 = scalar_lea.vmem %s7, %s869
      %p871 = scmp.lt.s32.totalorder %s40, 1
      %s872 = scalar_select %p871, %s40, 1
      %s873 = scalar_lea.vmem %s8, %s872
      %p874 = scmp.lt.s32.totalorder %s40, 1
      %s875 = scalar_select %p874, %s40, 1
      %s876 = scalar_lea.vmem %s9, %s875
      %p877 = scmp.lt.s32.totalorder %s40, 1
      %s878 = scalar_select %p877, %s40, 1
      %s879 = scalar_lea.vmem %s10, %s878
      %p880 = scmp.lt.s32.totalorder %s40, 1
      %s881 = scalar_select %p880, %s40, 1
      %s882 = scalar_lea.vmem %s11, %s881
      %p883 = scmp.lt.s32.totalorder %s40, 1
      %s884 = scalar_select %p883, %s40, 1
      %s885 = smul.addr %s884, 4
      %s886 = smul.addr %s885, 4
      %s887 = scalar_lea.vmem %s12, %s886
      %p888 = scmp.lt.s32.totalorder %s40, 1
      %s889 = scalar_select %p888, %s40, 1
      %s890 = scalar_lea.vmem %s13, %s889
      %p891 = scmp.lt.s32.totalorder %s40, 1
      %s892 = scalar_select %p891, %s40, 1
      %s893 = smul.addr %s892, 8
      %s894 = smul.addr %s893, 4
      %s895 = scalar_lea.vmem %s14, %s894
      %p896 = scmp.lt.s32.totalorder %s40, 1
      %s897 = scalar_select %p896, %s40, 1
      %s898 = scalar_lea.vmem %s15, %s897
      %p899 = scmp.lt.s32.totalorder %s39, 1
      %s900 = scalar_select %p899, %s39, 1
      %s901 = smul.addr %s900, 8
      %s902 = scalar_lea.vmem %s20, %s901
      %p903 = scmp.lt.s32.totalorder %s39, 1
      %s904 = scalar_select %p903, %s39, 1
      %p905 = scmp.lt.s32.totalorder %s40, 1
      %s906 = scalar_select %p905, %s40, 1
      %s907 = smul.addr %s906, 4
      %s908 = smul.addr %s904, 8
      %s909 = sadd.s32 %s907, %s908
      %s910 = smul.addr %s909, 8
      %s911 = scalar_lea.vmem %s21, %s910
      %p913 = scmp.eq.s32.totalorder %s40, 0
      // Predicated region
      $region101: #{ext_transformer_encoder.1} parent=99 // pred_check
        %p914 = pneg %p913
      $region102: #{ext_transformer_encoder.1} parent=99 // pred_check_branch
        %916 = sbr.rel (%p914) target = $region104
      $region103: #{ext_transformer_encoder.1} parent=99 // pred_region
        %v917 = vld [vmem:[%s847] sm:$0xff]
        %v918 = vld [vmem:[%s854] sm:$0xff]
        %920 = vset.pattern.permute.xlu0 0
        %921 = vperm.xlu0 %920, %v918
        %v922 = vpop.permute.xlu0 %921
        %v924 = vmul.f32 %v917, %v922
        %v925 = vld [vmem:[%s3] sm:$0xff]
        %v926 = vadd.f32 %v924, %v925
        %vm927 = vcmask 261120
        %928 = vst.msk [vmem:[#allocation2] sm:$0xff] %vm927, %v926
        %v929 = vpack.c.bf16 %v926, %v926
        %vm930 = vcmask 257024
        %931 = vst.msk [vmem:[#allocation3] sm:$0xf] %vm930, %v929
      $region104: #{ext_transformer_encoder.1} parent=99 // pred_fallthru
        _
      %p932 = scmp.ne.s32.totalorder %s40, 0
      // Predicated region
      $region105: #{ext_transformer_encoder.1} parent=99 // pred_check
        %p933 = pneg %p932
      $region106: #{ext_transformer_encoder.1} parent=99 // pred_check_branch
        %935 = sbr.rel (%p933) target = $region108
      $region107: #{ext_transformer_encoder.1} parent=99 // pred_region
        %v936 = vld [vmem:[#allocation2] sm:$0xff]
        %v937 = vld [vmem:[%s873] sm:$0x1]
        %v938 = vld [vmem:[%s876] sm:$0x1]
        %vm939 = vcmask 261120
        %v940 = vsel %vm939, %v936, 0.0
        %941 = vadd.xlane.f32.xlu0 %v940
        %v942 = vpop.xlane.xlu0 %941
        %v943 = vrcp.pop 32.0
        %v944 = vmul.f32 %v942, %v943
        %v945 = vmul.f32 %v936, %v936
        %v946 = vsel %vm939, %v945, 0.0
        %947 = vadd.xlane.f32.xlu0 %v946
        %v948 = vpop.xlane.xlu0 %947
        %v949 = vmul.f32 %v948, %v943
        %v950 = vmul.f32 %v944, %v944
        %v951 = vsub.f32 %v949, %v950
        %v952 = vmax.f32 %v951, 0.0
        %v953 = vsub.f32 %v936, %v944
        %v954 = vadd.f32 %v952, 1e-06
        %v955 = vrsqrt.pop %v954
        %v956 = vmul.f32 %v953, %v955
        %v958 = vlaneseq
        %v959 = vshrl.u32 %v958, 7
        %v960 = vsub.s32 0, %v959
        %v961 = vrot.slane %v937, %v960
        %v963 = vmul.f32 %v956, %v961
        %v965 = vlaneseq
        %v966 = vshrl.u32 %v965, 7
        %v967 = vsub.s32 0, %v966
        %v968 = vrot.slane %v938, %v967
        %v970 = vadd.f32 %v963, %v968
        %v971 = vpack.c.bf16 %v970, %v970
        %vm972 = vcmask 257024
        %973 = vst.msk [vmem:[#allocation3] sm:$0xf] %vm972, %v971
      $region108: #{ext_transformer_encoder.1} parent=99 // pred_fallthru
        _
      %v974 = vld [vmem:[#allocation3] sm:$0xf]
      %v975 = vld [vmem:[%s859] sm:$0xf]
      %v976 = vld [vmem:[%s859 + $0x4] sm:$0xf]
      %v977 = vld [vmem:[%s859 + $0x8] sm:$0xf]
      %v978 = vld [vmem:[%s859 + $0xc] sm:$0xf]
      %v979 = vld [vmem:[%s862] sm:$0x1]
      %v981 = vlaneseq
      %v982 = vshrl.u32 %v981, 7
      %v983 = vsub.s32 0, %v982
      %v984 = vrot.slane %v979, %v983
      %v990 = vunpack.c.l.b16 %v975
      %v991 = vunpack.c.l.b16 %v976
      %v992 = vunpack.c.l.b16 %v977
      %v993 = vunpack.c.l.b16 %v978
      %v994 = vpack.c.b16 %v991, %v990
      %v995 = vpack.c.b16 %v993, %v992
      %vm998 = vcmask 261120
      %v1000 = vsel %vm998, %v974, 0
      %1002 = vmatprep.subr.bf16.mxu0 0
      %1003 = vmatpush1.bf16.msra.mxu0 %v994
      %1004 = vmatprep.subr.bf16.mxu0 0
      %1005 = vmatpush1.bf16.msra.mxu0 %v995
      %1006 = vmatprep.subr.bf16.mxu0 0
      %1007 = vmatpush1.bf16.msra.mxu0 0
      %1008 = vmatprep.subr.bf16.mxu0 0
      %1009 = vmatpush1.bf16.msra.mxu0 0
      %1010 = vmatprep.subr.bf16.mxu0 0
      %1011 = vmatpush1.bf16.msra.mxu0 0
      %1012 = vmatprep.subr.bf16.mxu0 0
      %1013 = vmatpush1.bf16.msra.mxu0 0
      %1014 = vmatprep.subr.bf16.mxu0 0
      %1015 = vmatpush1.bf16.msra.mxu0 0
      %1016 = vmatprep.subr.bf16.mxu0 0
      %1017 = vmatpush1.bf16.msra.mxu0 0
      %1018 = vmatprep.subr.bf16.mxu0 0
      %1019 = vmatpush1.bf16.msra.mxu0 0
      %1020 = vmatprep.subr.bf16.mxu0 0
      %1021 = vmatpush1.bf16.msra.mxu0 0
      %1022 = vmatprep.subr.bf16.mxu0 0
      %1023 = vmatpush1.bf16.msra.mxu0 0
      %1024 = vmatprep.subr.bf16.mxu0 0
      %1025 = vmatpush1.bf16.msra.mxu0 0
      %1026 = vmatprep.subr.bf16.mxu0 0
      %1027 = vmatpush1.bf16.msra.mxu0 0
      %1028 = vmatprep.subr.bf16.mxu0 0
      %1029 = vmatpush1.bf16.msra.mxu0 0
      %1030 = vmatprep.subr.bf16.mxu0 0
      %1031 = vmatpush1.bf16.msra.mxu0 0
      %1032 = vmatprep.subr.bf16.mxu0 0
      %1033 = vmatpush1.bf16.msra.mxu0 0
      %1034 = vmatprep.mubr.bf16.mxu0 0
      %1035 = vmatmul.mubr.bf16.gmra.mrb[0].mxu0 %v1000
      %v1036 = vpop.f32.mrb[0].mxu0
      %v1037 = vadd.f32 %v984, %v1036
      %v1038 = vpop.f32.mrb[0].mxu0
      %v1039 = vpop.f32.mrb[0].mxu0
      %v1040 = vpop.f32.mrb[0].mxu0
      %1041 = vdwg.mxu0
      %v1042 = vpack.c.bf16 %v1037, %v1037
      %vm1043 = vcmask 781312
      %1044 = vst.msk [vmem:[#allocation4] sm:$0xf] %vm1043, %v1042
      %v1045 = vld [vmem:[#allocation2] sm:$0xff]
      %v1046 = vld [vmem:[%s870] sm:$0x1]
      %v1048 = vlaneseq
      %v1049 = vshrl.u32 %v1048, 7
      %v1050 = vsub.s32 0, %v1049
      %v1051 = vrot.slane %v1046, %v1050
      %v1053 = vadd.f32 %v1045, %v1051
      %1054 = vst.msk [vmem:[#allocation2] sm:$0xff] %vm998, %v1053
      %v1055 = vld [vmem:[%s850] sm:$0x1]
      %v1057 = vlaneseq
      %v1058 = vshrl.u32 %v1057, 7
      %v1059 = vsub.s32 0, %v1058
      %v1060 = vrot.slane %v1055, %v1059
      %v1062 = vld [vmem:[#allocation4] sm:$0xf]
      %v1063 = vld [vmem:[%s867] sm:$0xf]
      %v1065 = vunpack.c.l.b16 %v1062
      %v1066 = vpack.c.b16 %v1065, %v1065
      %1067 = vrot.lane.b32.xlu0 %v1066, 96
      %v1068 = vpop.permute.xlu0 %1067
      %vm1069 = vcmask 64512
      %v1071 = vsel %vm1069, %v1062, 0
      %v1074 = vsel %vm1069, %v1068, 0
      %1076 = vmatprep.subr.bf16.mxu0 0
      %1077 = vmatpush1.bf16.xpose.msra.mxu0 %v1074
      %1078 = vmatprep.subr.bf16.mxu0 0
      %1079 = vmatpush1.bf16.xpose.msra.mxu0 0
      %1080 = vmatprep.subr.bf16.mxu0 0
      %1081 = vmatpush1.bf16.xpose.msra.mxu0 0
      %1082 = vmatprep.subr.bf16.mxu0 0
      %1083 = vmatpush1.bf16.xpose.msra.mxu0 0
      %1084 = vmatprep.subr.bf16.mxu0 0
      %1085 = vmatpush1.bf16.xpose.msra.mxu0 0
      %1086 = vmatprep.subr.bf16.mxu0 0
      %1087 = vmatpush1.bf16.xpose.msra.mxu0 0
      %1088 = vmatprep.subr.bf16.mxu0 0
      %1089 = vmatpush1.bf16.xpose.msra.mxu0 0
      %1090 = vmatprep.subr.bf16.mxu0 0
      %1091 = vmatpush1.bf16.xpose.msra.mxu0 0
      %1092 = vmatprep.subr.bf16.mxu0 0
      %1093 = vmatpush1.bf16.xpose.msra.mxu0 0
      %1094 = vmatprep.subr.bf16.mxu0 0
      %1095 = vmatpush1.bf16.xpose.msra.mxu0 0
      %1096 = vmatprep.subr.bf16.mxu0 0
      %1097 = vmatpush1.bf16.xpose.msra.mxu0 0
      %1098 = vmatprep.subr.bf16.mxu0 0
      %1099 = vmatpush1.bf16.xpose.msra.mxu0 0
      %1100 = vmatprep.subr.bf16.mxu0 0
      %1101 = vmatpush1.bf16.xpose.msra.mxu0 0
      %1102 = vmatprep.subr.bf16.mxu0 0
      %1103 = vmatpush1.bf16.xpose.msra.mxu0 0
      %1104 = vmatprep.subr.bf16.mxu0 0
      %1105 = vmatpush1.bf16.xpose.msra.mxu0 0
      %1106 = vmatprep.subr.bf16.mxu0 0
      %1107 = vmatpush1.bf16.xpose.msra.mxu0 0
      %1108 = vmatprep.mubr.bf16.mxu0 0
      %1109 = vmatmul.mubr.bf16.gmra.mrb[0].mxu0 %v1071
      %v1110 = vpop.f32.mrb[0].mxu0
      %v1111 = vadd.f32 %v1060, %v1110
      %v1112 = vpop.f32.mrb[0].mxu0
      %v1113 = vpop.f32.mrb[0].mxu0
      %v1114 = vpop.f32.mrb[0].mxu0
      %1115 = vdwg.mxu0
      %v1116 = vsel %vm1069, %v1111, -inf
      %1117 = vmax.xlane.f32.xlu0 %v1116
      %v1118 = vpop.xlane.xlu0 %1117
      %v1119 = vsub.f32 %v1111, %v1118
      %v1120 = vmul.f32 %v1119, 1.442695
      %v1121 = vpow.pop %v1120
      %v1122 = vsel %vm1069, %v1121, 0.0
      %1123 = vadd.xlane.f32.xlu0 %v1122
      %v1124 = vpop.xlane.xlu0 %1123
      %v1125 = vrcp.pop %v1124
      %v1126 = vmul.f32 %v1121, %v1125
      %1127 = vst.msk [vmem:[%s911] sm:$0xff] %vm1069, %v1126
      %v1128 = vpack.c.bf16 %v1126, %v1126
      %1129 = vrot.lane.b32.xlu0 %v1066, 64
      %v1130 = vpop.permute.xlu0 %1129
      %v1132 = vsel %vm1069, %v1128, 0
      %vm1134 = vcmask 1043456
      %v1136 = vsel %vm1134, %v1130, 0
      %1138 = vmatprep.subr.bf16.mxu0 0
      %1139 = vmatpush1.bf16.msra.mxu0 %v1136
      %1140 = vmatprep.subr.bf16.mxu0 0
      %1141 = vmatpush1.bf16.msra.mxu0 0
      %1142 = vmatprep.subr.bf16.mxu0 0
      %1143 = vmatpush1.bf16.msra.mxu0 0
      %1144 = vmatprep.subr.bf16.mxu0 0
      %1145 = vmatpush1.bf16.msra.mxu0 0
      %1146 = vmatprep.subr.bf16.mxu0 0
      %1147 = vmatpush1.bf16.msra.mxu0 0
      %1148 = vmatprep.subr.bf16.mxu0 0
      %1149 = vmatpush1.bf16.msra.mxu0 0
      %1150 = vmatprep.subr.bf16.mxu0 0
      %1151 = vmatpush1.bf16.msra.mxu0 0
      %1152 = vmatprep.subr.bf16.mxu0 0
      %1153 = vmatpush1.bf16.msra.mxu0 0
      %1154 = vmatprep.subr.bf16.mxu0 0
      %1155 = vmatpush1.bf16.msra.mxu0 0
      %1156 = vmatprep.subr.bf16.mxu0 0
      %1157 = vmatpush1.bf16.msra.mxu0 0
      %1158 = vmatprep.subr.bf16.mxu0 0
      %1159 = vmatpush1.bf16.msra.mxu0 0
      %1160 = vmatprep.subr.bf16.mxu0 0
      %1161 = vmatpush1.bf16.msra.mxu0 0
      %1162 = vmatprep.subr.bf16.mxu0 0
      %1163 = vmatpush1.bf16.msra.mxu0 0
      %1164 = vmatprep.subr.bf16.mxu0 0
      %1165 = vmatpush1.bf16.msra.mxu0 0
      %1166 = vmatprep.subr.bf16.mxu0 0
      %1167 = vmatpush1.bf16.msra.mxu0 0
      %1168 = vmatprep.subr.bf16.mxu0 0
      %1169 = vmatpush1.bf16.msra.mxu0 0
      %1170 = vmatprep.mubr.bf16.mxu0 0
      %1171 = vmatmul.mubr.bf16.gmra.mrb[0].mxu0 %v1132
      %v1172 = vpop.f32.mrb[0].mxu0
      %v1173 = vadd.f32 0.0, %v1172
      %v1174 = vpop.f32.mrb[0].mxu0
      %v1175 = vpop.f32.mrb[0].mxu0
      %v1176 = vpop.f32.mrb[0].mxu0
      %1177 = vdwg.mxu0
      %v1178 = vld [vmem:[#allocation2] sm:$0xff]
      %v1179 = vpack.c.bf16 %v1173, %v1173
      %v1181 = vsel %vm1069, %v1179, 0
      %v1184 = vsel %vm1134, %v1063, 0
      %1186 = vmatprep.subr.bf16.mxu0 0
      %1187 = vmatpush1.bf16.msra.mxu0 %v1184
      %1188 = vmatprep.subr.bf16.mxu0 0
      %1189 = vmatpush1.bf16.msra.mxu0 0
      %1190 = vmatprep.subr.bf16.mxu0 0
      %1191 = vmatpush1.bf16.msra.mxu0 0
      %1192 = vmatprep.subr.bf16.mxu0 0
      %1193 = vmatpush1.bf16.msra.mxu0 0
      %1194 = vmatprep.subr.bf16.mxu0 0
      %1195 = vmatpush1.bf16.msra.mxu0 0
      %1196 = vmatprep.subr.bf16.mxu0 0
      %1197 = vmatpush1.bf16.msra.mxu0 0
      %1198 = vmatprep.subr.bf16.mxu0 0
      %1199 = vmatpush1.bf16.msra.mxu0 0
      %1200 = vmatprep.subr.bf16.mxu0 0
      %1201 = vmatpush1.bf16.msra.mxu0 0
      %1202 = vmatprep.subr.bf16.mxu0 0
      %1203 = vmatpush1.bf16.msra.mxu0 0
      %1204 = vmatprep.subr.bf16.mxu0 0
      %1205 = vmatpush1.bf16.msra.mxu0 0
      %1206 = vmatprep.subr.bf16.mxu0 0
      %1207 = vmatpush1.bf16.msra.mxu0 0
      %1208 = vmatprep.subr.bf16.mxu0 0
      %1209 = vmatpush1.bf16.msra.mxu0 0
      %1210 = vmatprep.subr.bf16.mxu0 0
      %1211 = vmatpush1.bf16.msra.mxu0 0
      %1212 = vmatprep.subr.bf16.mxu0 0
      %1213 = vmatpush1.bf16.msra.mxu0 0
      %1214 = vmatprep.subr.bf16.mxu0 0
      %1215 = vmatpush1.bf16.msra.mxu0 0
      %1216 = vmatprep.subr.bf16.mxu0 0
      %1217 = vmatpush1.bf16.msra.mxu0 0
      %1218 = vmatprep.mubr.bf16.mxu0 0
      %1219 = vmatmul.mubr.bf16.gmra.mrb[0].mxu0 %v1181
      %v1220 = vpop.f32.mrb[0].mxu0
      %v1221 = vadd.f32 0.0, %v1220
      %v1222 = vpop.f32.mrb[0].mxu0
      %v1223 = vpop.f32.mrb[0].mxu0
      %v1224 = vpop.f32.mrb[0].mxu0
      %1225 = vdwg.mxu0
      %v1226 = vadd.f32 %v1178, %v1221
      %1227 = vst.msk [vmem:[#allocation2] sm:$0xff] %vm998, %v1226
      %v1228 = vld [vmem:[#allocation4] sm:$0xf]
      %s1229 = scalar_lea.vmem %s867, 4
      %v1230 = vld [vmem:[%s1229] sm:$0xf]
      %v1232 = vunpack.c.l.b16 %v1228
      %v1233 = vpack.c.b16 %v1232, %v1232
      %1234 = vrot.lane.b32.xlu0 %v1233, 120
      %v1235 = vpop.permute.xlu0 %1234
      %1236 = vrot.lane.b32.xlu0 %v1233, 88
      %v1237 = vpop.permute.xlu0 %1236
      %v1239 = vsel %vm1069, %v1235, 0
      %v1242 = vsel %vm1069, %v1237, 0
      %1244 = vmatprep.subr.bf16.mxu0 0
      %1245 = vmatpush1.bf16.xpose.msra.mxu0 %v1242
      %1246 = vmatprep.subr.bf16.mxu0 0
      %1247 = vmatpush1.bf16.xpose.msra.mxu0 0
      %1248 = vmatprep.subr.bf16.mxu0 0
      %1249 = vmatpush1.bf16.xpose.msra.mxu0 0
      %1250 = vmatprep.subr.bf16.mxu0 0
      %1251 = vmatpush1.bf16.xpose.msra.mxu0 0
      %1252 = vmatprep.subr.bf16.mxu0 0
      %1253 = vmatpush1.bf16.xpose.msra.mxu0 0
      %1254 = vmatprep.subr.bf16.mxu0 0
      %1255 = vmatpush1.bf16.xpose.msra.mxu0 0
      %1256 = vmatprep.subr.bf16.mxu0 0
      %1257 = vmatpush1.bf16.xpose.msra.mxu0 0
      %1258 = vmatprep.subr.bf16.mxu0 0
      %1259 = vmatpush1.bf16.xpose.msra.mxu0 0
      %1260 = vmatprep.subr.bf16.mxu0 0
      %1261 = vmatpush1.bf16.xpose.msra.mxu0 0
      %1262 = vmatprep.subr.bf16.mxu0 0
      %1263 = vmatpush1.bf16.xpose.msra.mxu0 0
      %1264 = vmatprep.subr.bf16.mxu0 0
      %1265 = vmatpush1.bf16.xpose.msra.mxu0 0
      %1266 = vmatprep.subr.bf16.mxu0 0
      %1267 = vmatpush1.bf16.xpose.msra.mxu0 0
      %1268 = vmatprep.subr.bf16.mxu0 0
      %1269 = vmatpush1.bf16.xpose.msra.mxu0 0
      %1270 = vmatprep.subr.bf16.mxu0 0
      %1271 = vmatpush1.bf16.xpose.msra.mxu0 0
      %1272 = vmatprep.subr.bf16.mxu0 0
      %1273 = vmatpush1.bf16.xpose.msra.mxu0 0
      %1274 = vmatprep.subr.bf16.mxu0 0
      %1275 = vmatpush1.bf16.xpose.msra.mxu0 0
      %1276 = vmatprep.mubr.bf16.mxu0 0
      %1277 = vmatmul.mubr.bf16.gmra.mrb[0].mxu0 %v1239
      %v1278 = vpop.f32.mrb[0].mxu0
      %v1279 = vadd.f32 %v1060, %v1278
      %v1280 = vpop.f32.mrb[0].mxu0
      %v1281 = vpop.f32.mrb[0].mxu0
      %v1282 = vpop.f32.mrb[0].mxu0
      %1283 = vdwg.mxu0
      %v1284 = vsel %vm1069, %v1279, -inf
      %1285 = vmax.xlane.f32.xlu0 %v1284
      %v1286 = vpop.xlane.xlu0 %1285
      %v1287 = vsub.f32 %v1279, %v1286
      %v1288 = vmul.f32 %v1287, 1.442695
      %v1289 = vpow.pop %v1288
      %v1290 = vsel %vm1069, %v1289, 0.0
      %1291 = vadd.xlane.f32.xlu0 %v1290
      %v1292 = vpop.xlane.xlu0 %1291
      %v1293 = vrcp.pop %v1292
      %v1294 = vmul.f32 %v1289, %v1293
      %s1295 = scalar_lea.vmem %s911, 8
      %1296 = vst.msk [vmem:[%s1295] sm:$0xff] %vm1069, %v1294
      %v1297 = vpack.c.bf16 %v1294, %v1294
      %1298 = vrot.lane.b32.xlu0 %v1233, 56
      %v1299 = vpop.permute.xlu0 %1298
      %v1301 = vsel %vm1069, %v1297, 0
      %v1304 = vsel %vm1134, %v1299, 0
      %1306 = vmatprep.subr.bf16.mxu0 0
      %1307 = vmatpush1.bf16.msra.mxu0 %v1304
      %1308 = vmatprep.subr.bf16.mxu0 0
      %1309 = vmatpush1.bf16.msra.mxu0 0
      %1310 = vmatprep.subr.bf16.mxu0 0
      %1311 = vmatpush1.bf16.msra.mxu0 0
      %1312 = vmatprep.subr.bf16.mxu0 0
      %1313 = vmatpush1.bf16.msra.mxu0 0
      %1314 = vmatprep.subr.bf16.mxu0 0
      %1315 = vmatpush1.bf16.msra.mxu0 0
      %1316 = vmatprep.subr.bf16.mxu0 0
      %1317 = vmatpush1.bf16.msra.mxu0 0
      %1318 = vmatprep.subr.bf16.mxu0 0
      %1319 = vmatpush1.bf16.msra.mxu0 0
      %1320 = vmatprep.subr.bf16.mxu0 0
      %1321 = vmatpush1.bf16.msra.mxu0 0
      %1322 = vmatprep.subr.bf16.mxu0 0
      %1323 = vmatpush1.bf16.msra.mxu0 0
      %1324 = vmatprep.subr.bf16.mxu0 0
      %1325 = vmatpush1.bf16.msra.mxu0 0
      %1326 = vmatprep.subr.bf16.mxu0 0
      %1327 = vmatpush1.bf16.msra.mxu0 0
      %1328 = vmatprep.subr.bf16.mxu0 0
      %1329 = vmatpush1.bf16.msra.mxu0 0
      %1330 = vmatprep.subr.bf16.mxu0 0
      %1331 = vmatpush1.bf16.msra.mxu0 0
      %1332 = vmatprep.subr.bf16.mxu0 0
      %1333 = vmatpush1.bf16.msra.mxu0 0
      %1334 = vmatprep.subr.bf16.mxu0 0
      %1335 = vmatpush1.bf16.msra.mxu0 0
      %1336 = vmatprep.subr.bf16.mxu0 0
      %1337 = vmatpush1.bf16.msra.mxu0 0
      %1338 = vmatprep.mubr.bf16.mxu0 0
      %1339 = vmatmul.mubr.bf16.gmra.mrb[0].mxu0 %v1301
      %v1340 = vpop.f32.mrb[0].mxu0
      %v1341 = vadd.f32 0.0, %v1340
      %v1342 = vpop.f32.mrb[0].mxu0
      %v1343 = vpop.f32.mrb[0].mxu0
      %v1344 = vpop.f32.mrb[0].mxu0
      %1345 = vdwg.mxu0
      %v1346 = vld [vmem:[#allocation2] sm:$0xff]
      %v1347 = vpack.c.bf16 %v1341, %v1341
      %v1349 = vsel %vm1069, %v1347, 0
      %v1352 = vsel %vm1134, %v1230, 0
      %1354 = vmatprep.subr.bf16.mxu0 0
      %1355 = vmatpush1.bf16.msra.mxu0 %v1352
      %1356 = vmatprep.subr.bf16.mxu0 0
      %1357 = vmatpush1.bf16.msra.mxu0 0
      %1358 = vmatprep.subr.bf16.mxu0 0
      %1359 = vmatpush1.bf16.msra.mxu0 0
      %1360 = vmatprep.subr.bf16.mxu0 0
      %1361 = vmatpush1.bf16.msra.mxu0 0
      %1362 = vmatprep.subr.bf16.mxu0 0
      %1363 = vmatpush1.bf16.msra.mxu0 0
      %1364 = vmatprep.subr.bf16.mxu0 0
      %1365 = vmatpush1.bf16.msra.mxu0 0
      %1366 = vmatprep.subr.bf16.mxu0 0
      %1367 = vmatpush1.bf16.msra.mxu0 0
      %1368 = vmatprep.subr.bf16.mxu0 0
      %1369 = vmatpush1.bf16.msra.mxu0 0
      %1370 = vmatprep.subr.bf16.mxu0 0
      %1371 = vmatpush1.bf16.msra.mxu0 0
      %1372 = vmatprep.subr.bf16.mxu0 0
      %1373 = vmatpush1.bf16.msra.mxu0 0
      %1374 = vmatprep.subr.bf16.mxu0 0
      %1375 = vmatpush1.bf16.msra.mxu0 0
      %1376 = vmatprep.subr.bf16.mxu0 0
      %1377 = vmatpush1.bf16.msra.mxu0 0
      %1378 = vmatprep.subr.bf16.mxu0 0
      %1379 = vmatpush1.bf16.msra.mxu0 0
      %1380 = vmatprep.subr.bf16.mxu0 0
      %1381 = vmatpush1.bf16.msra.mxu0 0
      %1382 = vmatprep.subr.bf16.mxu0 0
      %1383 = vmatpush1.bf16.msra.mxu0 0
      %1384 = vmatprep.subr.bf16.mxu0 0
      %1385 = vmatpush1.bf16.msra.mxu0 0
      %1386 = vmatprep.mubr.bf16.mxu0 0
      %1387 = vmatmul.mubr.bf16.gmra.mrb[0].mxu0 %v1349
      %v1388 = vpop.f32.mrb[0].mxu0
      %v1389 = vadd.f32 0.0, %v1388
      %v1390 = vpop.f32.mrb[0].mxu0
      %v1391 = vpop.f32.mrb[0].mxu0
      %v1392 = vpop.f32.mrb[0].mxu0
      %1393 = vdwg.mxu0
      %v1394 = vadd.f32 %v1346, %v1389
      %1395 = vst.msk [vmem:[#allocation2] sm:$0xff] %vm998, %v1394
      %v1396 = vld [vmem:[#allocation4] sm:$0xf]
      %s1397 = scalar_lea.vmem %s867, 8
      %v1398 = vld [vmem:[%s1397] sm:$0xf]
      %v1400 = vunpack.c.l.b16 %v1396
      %v1401 = vpack.c.b16 %v1400, %v1400
      %1402 = vrot.lane.b32.xlu0 %v1401, 112
      %v1403 = vpop.permute.xlu0 %1402
      %1404 = vrot.lane.b32.xlu0 %v1401, 80
      %v1405 = vpop.permute.xlu0 %1404
      %v1407 = vsel %vm1069, %v1403, 0
      %v1410 = vsel %vm1069, %v1405, 0
      %1412 = vmatprep.subr.bf16.mxu0 0
      %1413 = vmatpush1.bf16.xpose.msra.mxu0 %v1410
      %1414 = vmatprep.subr.bf16.mxu0 0
      %1415 = vmatpush1.bf16.xpose.msra.mxu0 0
      %1416 = vmatprep.subr.bf16.mxu0 0
      %1417 = vmatpush1.bf16.xpose.msra.mxu0 0
      %1418 = vmatprep.subr.bf16.mxu0 0
      %1419 = vmatpush1.bf16.xpose.msra.mxu0 0
      %1420 = vmatprep.subr.bf16.mxu0 0
      %1421 = vmatpush1.bf16.xpose.msra.mxu0 0
      %1422 = vmatprep.subr.bf16.mxu0 0
      %1423 = vmatpush1.bf16.xpose.msra.mxu0 0
      %1424 = vmatprep.subr.bf16.mxu0 0
      %1425 = vmatpush1.bf16.xpose.msra.mxu0 0
      %1426 = vmatprep.subr.bf16.mxu0 0
      %1427 = vmatpush1.bf16.xpose.msra.mxu0 0
      %1428 = vmatprep.subr.bf16.mxu0 0
      %1429 = vmatpush1.bf16.xpose.msra.mxu0 0
      %1430 = vmatprep.subr.bf16.mxu0 0
      %1431 = vmatpush1.bf16.xpose.msra.mxu0 0
      %1432 = vmatprep.subr.bf16.mxu0 0
      %1433 = vmatpush1.bf16.xpose.msra.mxu0 0
      %1434 = vmatprep.subr.bf16.mxu0 0
      %1435 = vmatpush1.bf16.xpose.msra.mxu0 0
      %1436 = vmatprep.subr.bf16.mxu0 0
      %1437 = vmatpush1.bf16.xpose.msra.mxu0 0
      %1438 = vmatprep.subr.bf16.mxu0 0
      %1439 = vmatpush1.bf16.xpose.msra.mxu0 0
      %1440 = vmatprep.subr.bf16.mxu0 0
      %1441 = vmatpush1.bf16.xpose.msra.mxu0 0
      %1442 = vmatprep.subr.bf16.mxu0 0
      %1443 = vmatpush1.bf16.xpose.msra.mxu0 0
      %1444 = vmatprep.mubr.bf16.mxu0 0
      %1445 = vmatmul.mubr.bf16.gmra.mrb[0].mxu0 %v1407
      %v1446 = vpop.f32.mrb[0].mxu0
      %v1447 = vadd.f32 %v1060, %v1446
      %v1448 = vpop.f32.mrb[0].mxu0
      %v1449 = vpop.f32.mrb[0].mxu0
      %v1450 = vpop.f32.mrb[0].mxu0
      %1451 = vdwg.mxu0
      %v1452 = vsel %vm1069, %v1447, -inf
      %1453 = vmax.xlane.f32.xlu0 %v1452
      %v1454 = vpop.xlane.xlu0 %1453
      %v1455 = vsub.f32 %v1447, %v1454
      %v1456 = vmul.f32 %v1455, 1.442695
      %v1457 = vpow.pop %v1456
      %v1458 = vsel %vm1069, %v1457, 0.0
      %1459 = vadd.xlane.f32.xlu0 %v1458
      %v1460 = vpop.xlane.xlu0 %1459
      %v1461 = vrcp.pop %v1460
      %v1462 = vmul.f32 %v1457, %v1461
      %s1463 = scalar_lea.vmem %s911, 16
      %1464 = vst.msk [vmem:[%s1463] sm:$0xff] %vm1069, %v1462
      %v1465 = vpack.c.bf16 %v1462, %v1462
      %1466 = vrot.lane.b32.xlu0 %v1401, 48
      %v1467 = vpop.permute.xlu0 %1466
      %v1469 = vsel %vm1069, %v1465, 0
      %v1472 = vsel %vm1134, %v1467, 0
      %1474 = vmatprep.subr.bf16.mxu0 0
      %1475 = vmatpush1.bf16.msra.mxu0 %v1472
      %1476 = vmatprep.subr.bf16.mxu0 0
      %1477 = vmatpush1.bf16.msra.mxu0 0
      %1478 = vmatprep.subr.bf16.mxu0 0
      %1479 = vmatpush1.bf16.msra.mxu0 0
      %1480 = vmatprep.subr.bf16.mxu0 0
      %1481 = vmatpush1.bf16.msra.mxu0 0
      %1482 = vmatprep.subr.bf16.mxu0 0
      %1483 = vmatpush1.bf16.msra.mxu0 0
      %1484 = vmatprep.subr.bf16.mxu0 0
      %1485 = vmatpush1.bf16.msra.mxu0 0
      %1486 = vmatprep.subr.bf16.mxu0 0
      %1487 = vmatpush1.bf16.msra.mxu0 0
      %1488 = vmatprep.subr.bf16.mxu0 0
      %1489 = vmatpush1.bf16.msra.mxu0 0
      %1490 = vmatprep.subr.bf16.mxu0 0
      %1491 = vmatpush1.bf16.msra.mxu0 0
      %1492 = vmatprep.subr.bf16.mxu0 0
      %1493 = vmatpush1.bf16.msra.mxu0 0
      %1494 = vmatprep.subr.bf16.mxu0 0
      %1495 = vmatpush1.bf16.msra.mxu0 0
      %1496 = vmatprep.subr.bf16.mxu0 0
      %1497 = vmatpush1.bf16.msra.mxu0 0
      %1498 = vmatprep.subr.bf16.mxu0 0
      %1499 = vmatpush1.bf16.msra.mxu0 0
      %1500 = vmatprep.subr.bf16.mxu0 0
      %1501 = vmatpush1.bf16.msra.mxu0 0
      %1502 = vmatprep.subr.bf16.mxu0 0
      %1503 = vmatpush1.bf16.msra.mxu0 0
      %1504 = vmatprep.subr.bf16.mxu0 0
      %1505 = vmatpush1.bf16.msra.mxu0 0
      %1506 = vmatprep.mubr.bf16.mxu0 0
      %1507 = vmatmul.mubr.bf16.gmra.mrb[0].mxu0 %v1469
      %v1508 = vpop.f32.mrb[0].mxu0
      %v1509 = vadd.f32 0.0, %v1508
      %v1510 = vpop.f32.mrb[0].mxu0
      %v1511 = vpop.f32.mrb[0].mxu0
      %v1512 = vpop.f32.mrb[0].mxu0
      %1513 = vdwg.mxu0
      %v1514 = vld [vmem:[#allocation2] sm:$0xff]
      %v1515 = vpack.c.bf16 %v1509, %v1509
      %v1517 = vsel %vm1069, %v1515, 0
      %v1520 = vsel %vm1134, %v1398, 0
      %1522 = vmatprep.subr.bf16.mxu0 0
      %1523 = vmatpush1.bf16.msra.mxu0 %v1520
      %1524 = vmatprep.subr.bf16.mxu0 0
      %1525 = vmatpush1.bf16.msra.mxu0 0
      %1526 = vmatprep.subr.bf16.mxu0 0
      %1527 = vmatpush1.bf16.msra.mxu0 0
      %1528 = vmatprep.subr.bf16.mxu0 0
      %1529 = vmatpush1.bf16.msra.mxu0 0
      %1530 = vmatprep.subr.bf16.mxu0 0
      %1531 = vmatpush1.bf16.msra.mxu0 0
      %1532 = vmatprep.subr.bf16.mxu0 0
      %1533 = vmatpush1.bf16.msra.mxu0 0
      %1534 = vmatprep.subr.bf16.mxu0 0
      %1535 = vmatpush1.bf16.msra.mxu0 0
      %1536 = vmatprep.subr.bf16.mxu0 0
      %1537 = vmatpush1.bf16.msra.mxu0 0
      %1538 = vmatprep.subr.bf16.mxu0 0
      %1539 = vmatpush1.bf16.msra.mxu0 0
      %1540 = vmatprep.subr.bf16.mxu0 0
      %1541 = vmatpush1.bf16.msra.mxu0 0
      %1542 = vmatprep.subr.bf16.mxu0 0
      %1543 = vmatpush1.bf16.msra.mxu0 0
      %1544 = vmatprep.subr.bf16.mxu0 0
      %1545 = vmatpush1.bf16.msra.mxu0 0
      %1546 = vmatprep.subr.bf16.mxu0 0
      %1547 = vmatpush1.bf16.msra.mxu0 0
      %1548 = vmatprep.subr.bf16.mxu0 0
      %1549 = vmatpush1.bf16.msra.mxu0 0
      %1550 = vmatprep.subr.bf16.mxu0 0
      %1551 = vmatpush1.bf16.msra.mxu0 0
      %1552 = vmatprep.subr.bf16.mxu0 0
      %1553 = vmatpush1.bf16.msra.mxu0 0
      %1554 = vmatprep.mubr.bf16.mxu0 0
      %1555 = vmatmul.mubr.bf16.gmra.mrb[0].mxu0 %v1517
      %v1556 = vpop.f32.mrb[0].mxu0
      %v1557 = vadd.f32 0.0, %v1556
      %v1558 = vpop.f32.mrb[0].mxu0
      %v1559 = vpop.f32.mrb[0].mxu0
      %v1560 = vpop.f32.mrb[0].mxu0
      %1561 = vdwg.mxu0
      %v1562 = vadd.f32 %v1514, %v1557
      %1563 = vst.msk [vmem:[#allocation2] sm:$0xff] %vm998, %v1562
      %v1564 = vld [vmem:[#allocation4] sm:$0xf]
      %s1565 = scalar_lea.vmem %s867, 12
      %v1566 = vld [vmem:[%s1565] sm:$0xf]
      %v1568 = vunpack.c.l.b16 %v1564
      %v1569 = vpack.c.b16 %v1568, %v1568
      %1570 = vrot.lane.b32.xlu0 %v1569, 104
      %v1571 = vpop.permute.xlu0 %1570
      %1572 = vrot.lane.b32.xlu0 %v1569, 72
      %v1573 = vpop.permute.xlu0 %1572
      %v1575 = vsel %vm1069, %v1571, 0
      %v1578 = vsel %vm1069, %v1573, 0
      %1580 = vmatprep.subr.bf16.mxu0 0
      %1581 = vmatpush1.bf16.xpose.msra.mxu0 %v1578
      %1582 = vmatprep.subr.bf16.mxu0 0
      %1583 = vmatpush1.bf16.xpose.msra.mxu0 0
      %1584 = vmatprep.subr.bf16.mxu0 0
      %1585 = vmatpush1.bf16.xpose.msra.mxu0 0
      %1586 = vmatprep.subr.bf16.mxu0 0
      %1587 = vmatpush1.bf16.xpose.msra.mxu0 0
      %1588 = vmatprep.subr.bf16.mxu0 0
      %1589 = vmatpush1.bf16.xpose.msra.mxu0 0
      %1590 = vmatprep.subr.bf16.mxu0 0
      %1591 = vmatpush1.bf16.xpose.msra.mxu0 0
      %1592 = vmatprep.subr.bf16.mxu0 0
      %1593 = vmatpush1.bf16.xpose.msra.mxu0 0
      %1594 = vmatprep.subr.bf16.mxu0 0
      %1595 = vmatpush1.bf16.xpose.msra.mxu0 0
      %1596 = vmatprep.subr.bf16.mxu0 0
      %1597 = vmatpush1.bf16.xpose.msra.mxu0 0
      %1598 = vmatprep.subr.bf16.mxu0 0
      %1599 = vmatpush1.bf16.xpose.msra.mxu0 0
      %1600 = vmatprep.subr.bf16.mxu0 0
      %1601 = vmatpush1.bf16.xpose.msra.mxu0 0
      %1602 = vmatprep.subr.bf16.mxu0 0
      %1603 = vmatpush1.bf16.xpose.msra.mxu0 0
      %1604 = vmatprep.subr.bf16.mxu0 0
      %1605 = vmatpush1.bf16.xpose.msra.mxu0 0
      %1606 = vmatprep.subr.bf16.mxu0 0
      %1607 = vmatpush1.bf16.xpose.msra.mxu0 0
      %1608 = vmatprep.subr.bf16.mxu0 0
      %1609 = vmatpush1.bf16.xpose.msra.mxu0 0
      %1610 = vmatprep.subr.bf16.mxu0 0
      %1611 = vmatpush1.bf16.xpose.msra.mxu0 0
      %1612 = vmatprep.mubr.bf16.mxu0 0
      %1613 = vmatmul.mubr.bf16.gmra.mrb[0].mxu0 %v1575
      %v1614 = vpop.f32.mrb[0].mxu0
      %v1615 = vadd.f32 %v1060, %v1614
      %v1616 = vpop.f32.mrb[0].mxu0
      %v1617 = vpop.f32.mrb[0].mxu0
      %v1618 = vpop.f32.mrb[0].mxu0
      %1619 = vdwg.mxu0
      %v1620 = vsel %vm1069, %v1615, -inf
      %1621 = vmax.xlane.f32.xlu0 %v1620
      %v1622 = vpop.xlane.xlu0 %1621
      %v1623 = vsub.f32 %v1615, %v1622
      %v1624 = vmul.f32 %v1623, 1.442695
      %v1625 = vpow.pop %v1624
      %v1626 = vsel %vm1069, %v1625, 0.0
      %1627 = vadd.xlane.f32.xlu0 %v1626
      %v1628 = vpop.xlane.xlu0 %1627
      %v1629 = vrcp.pop %v1628
      %v1630 = vmul.f32 %v1625, %v1629
      %s1631 = scalar_lea.vmem %s911, 24
      %1632 = vst.msk [vmem:[%s1631] sm:$0xff] %vm1069, %v1630
      %v1633 = vpack.c.bf16 %v1630, %v1630
      %1634 = vrot.lane.b32.xlu0 %v1569, 40
      %v1635 = vpop.permute.xlu0 %1634
      %v1637 = vsel %vm1069, %v1633, 0
      %v1640 = vsel %vm1134, %v1635, 0
      %1642 = vmatprep.subr.bf16.mxu0 0
      %1643 = vmatpush1.bf16.msra.mxu0 %v1640
      %1644 = vmatprep.subr.bf16.mxu0 0
      %1645 = vmatpush1.bf16.msra.mxu0 0
      %1646 = vmatprep.subr.bf16.mxu0 0
      %1647 = vmatpush1.bf16.msra.mxu0 0
      %1648 = vmatprep.subr.bf16.mxu0 0
      %1649 = vmatpush1.bf16.msra.mxu0 0
      %1650 = vmatprep.subr.bf16.mxu0 0
      %1651 = vmatpush1.bf16.msra.mxu0 0
      %1652 = vmatprep.subr.bf16.mxu0 0
      %1653 = vmatpush1.bf16.msra.mxu0 0
      %1654 = vmatprep.subr.bf16.mxu0 0
      %1655 = vmatpush1.bf16.msra.mxu0 0
      %1656 = vmatprep.subr.bf16.mxu0 0
      %1657 = vmatpush1.bf16.msra.mxu0 0
      %1658 = vmatprep.subr.bf16.mxu0 0
      %1659 = vmatpush1.bf16.msra.mxu0 0
      %1660 = vmatprep.subr.bf16.mxu0 0
      %1661 = vmatpush1.bf16.msra.mxu0 0
      %1662 = vmatprep.subr.bf16.mxu0 0
      %1663 = vmatpush1.bf16.msra.mxu0 0
      %1664 = vmatprep.subr.bf16.mxu0 0
      %1665 = vmatpush1.bf16.msra.mxu0 0
      %1666 = vmatprep.subr.bf16.mxu0 0
      %1667 = vmatpush1.bf16.msra.mxu0 0
      %1668 = vmatprep.subr.bf16.mxu0 0
      %1669 = vmatpush1.bf16.msra.mxu0 0
      %1670 = vmatprep.subr.bf16.mxu0 0
      %1671 = vmatpush1.bf16.msra.mxu0 0
      %1672 = vmatprep.subr.bf16.mxu0 0
      %1673 = vmatpush1.bf16.msra.mxu0 0
      %1674 = vmatprep.mubr.bf16.mxu0 0
      %1675 = vmatmul.mubr.bf16.gmra.mrb[0].mxu0 %v1637
      %v1676 = vpop.f32.mrb[0].mxu0
      %v1677 = vadd.f32 0.0, %v1676
      %v1678 = vpop.f32.mrb[0].mxu0
      %v1679 = vpop.f32.mrb[0].mxu0
      %v1680 = vpop.f32.mrb[0].mxu0
      %1681 = vdwg.mxu0
      %v1682 = vld [vmem:[#allocation2] sm:$0xff]
      %v1683 = vpack.c.bf16 %v1677, %v1677
      %v1685 = vsel %vm1069, %v1683, 0
      %v1688 = vsel %vm1134, %v1566, 0
      %1690 = vmatprep.subr.bf16.mxu0 0
      %1691 = vmatpush1.bf16.msra.mxu0 %v1688
      %1692 = vmatprep.subr.bf16.mxu0 0
      %1693 = vmatpush1.bf16.msra.mxu0 0
      %1694 = vmatprep.subr.bf16.mxu0 0
      %1695 = vmatpush1.bf16.msra.mxu0 0
      %1696 = vmatprep.subr.bf16.mxu0 0
      %1697 = vmatpush1.bf16.msra.mxu0 0
      %1698 = vmatprep.subr.bf16.mxu0 0
      %1699 = vmatpush1.bf16.msra.mxu0 0
      %1700 = vmatprep.subr.bf16.mxu0 0
      %1701 = vmatpush1.bf16.msra.mxu0 0
      %1702 = vmatprep.subr.bf16.mxu0 0
      %1703 = vmatpush1.bf16.msra.mxu0 0
      %1704 = vmatprep.subr.bf16.mxu0 0
      %1705 = vmatpush1.bf16.msra.mxu0 0
      %1706 = vmatprep.subr.bf16.mxu0 0
      %1707 = vmatpush1.bf16.msra.mxu0 0
      %1708 = vmatprep.subr.bf16.mxu0 0
      %1709 = vmatpush1.bf16.msra.mxu0 0
      %1710 = vmatprep.subr.bf16.mxu0 0
      %1711 = vmatpush1.bf16.msra.mxu0 0
      %1712 = vmatprep.subr.bf16.mxu0 0
      %1713 = vmatpush1.bf16.msra.mxu0 0
      %1714 = vmatprep.subr.bf16.mxu0 0
      %1715 = vmatpush1.bf16.msra.mxu0 0
      %1716 = vmatprep.subr.bf16.mxu0 0
      %1717 = vmatpush1.bf16.msra.mxu0 0
      %1718 = vmatprep.subr.bf16.mxu0 0
      %1719 = vmatpush1.bf16.msra.mxu0 0
      %1720 = vmatprep.subr.bf16.mxu0 0
      %1721 = vmatpush1.bf16.msra.mxu0 0
      %1722 = vmatprep.mubr.bf16.mxu0 0
      %1723 = vmatmul.mubr.bf16.gmra.mrb[0].mxu0 %v1685
      %v1724 = vpop.f32.mrb[0].mxu0
      %v1725 = vadd.f32 0.0, %v1724
      %v1726 = vpop.f32.mrb[0].mxu0
      %v1727 = vpop.f32.mrb[0].mxu0
      %v1728 = vpop.f32.mrb[0].mxu0
      %1729 = vdwg.mxu0
      %v1730 = vadd.f32 %v1682, %v1725
      %1731 = vst.msk [vmem:[#allocation2] sm:$0xff] %vm998, %v1730
      %v1732 = vld [vmem:[#allocation2] sm:$0xff]
      %v1733 = vld [vmem:[%s879] sm:$0x1]
      %v1734 = vld [vmem:[%s882] sm:$0x1]
      %v1735 = vsel %vm998, %v1732, 0.0
      %1736 = vadd.xlane.f32.xlu0 %v1735
      %v1737 = vpop.xlane.xlu0 %1736
      %v1738 = vrcp.pop 32.0
      %v1739 = vmul.f32 %v1737, %v1738
      %v1740 = vmul.f32 %v1732, %v1732
      %v1741 = vsel %vm998, %v1740, 0.0
      %1742 = vadd.xlane.f32.xlu0 %v1741
      %v1743 = vpop.xlane.xlu0 %1742
      %v1744 = vmul.f32 %v1743, %v1738
      %v1745 = vmul.f32 %v1739, %v1739
      %v1746 = vsub.f32 %v1744, %v1745
      %v1747 = vmax.f32 %v1746, 0.0
      %v1748 = vsub.f32 %v1732, %v1739
      %v1749 = vadd.f32 %v1747, 1e-06
      %v1750 = vrsqrt.pop %v1749
      %v1751 = vmul.f32 %v1748, %v1750
      %v1753 = vlaneseq
      %v1754 = vshrl.u32 %v1753, 7
      %v1755 = vsub.s32 0, %v1754
      %v1756 = vrot.slane %v1733, %v1755
      %v1758 = vmul.f32 %v1751, %v1756
      %v1760 = vlaneseq
      %v1761 = vshrl.u32 %v1760, 7
      %v1762 = vsub.s32 0, %v1761
      %v1763 = vrot.slane %v1734, %v1762
      %v1765 = vadd.f32 %v1758, %v1763
      %v1766 = vpack.c.bf16 %v1765, %v1765
      %vm1767 = vcmask 257024
      %1768 = vst.msk [vmem:[#allocation3] sm:$0xf] %vm1767, %v1766
      %v1769 = vld [vmem:[%s898] sm:$0x1]
      %v1771 = vlaneseq
      %v1772 = vshrl.u32 %v1771, 7
      %v1773 = vsub.s32 0, %v1772
      %v1774 = vrot.slane %v1769, %v1773
      %v1776 = vadd.f32 %v1732, %v1774
      %1777 = vst.msk [vmem:[#allocation2] sm:$0xff] %vm998, %v1776
      %v1778 = vld [vmem:[#allocation3] sm:$0xf]
      %v1779 = vld [vmem:[%s887] sm:$0xf]
      %v1780 = vld [vmem:[%s887 + $0x4] sm:$0xf]
      %v1781 = vld [vmem:[%s887 + $0x8] sm:$0xf]
      %v1782 = vld [vmem:[%s887 + $0xc] sm:$0xf]
      %v1783 = vld [vmem:[%s890] sm:$0x1]
      %v1785 = vlaneseq
      %v1786 = vshrl.u32 %v1785, 7
      %v1787 = vsub.s32 0, %v1786
      %v1788 = vrot.slane %v1783, %v1787
      %v1794 = vunpack.c.l.b16 %v1779
      %v1795 = vunpack.c.l.b16 %v1780
      %v1796 = vunpack.c.l.b16 %v1781
      %v1797 = vunpack.c.l.b16 %v1782
      %v1798 = vpack.c.b16 %v1795, %v1794
      %v1799 = vpack.c.b16 %v1797, %v1796
      %v1803 = vsel %vm998, %v1778, 0
      %1805 = vmatprep.subr.bf16.mxu0 0
      %1806 = vmatpush1.bf16.msra.mxu0 %v1798
      %1807 = vmatprep.subr.bf16.mxu0 0
      %1808 = vmatpush1.bf16.msra.mxu0 %v1799
      %1809 = vmatprep.subr.bf16.mxu0 0
      %1810 = vmatpush1.bf16.msra.mxu0 0
      %1811 = vmatprep.subr.bf16.mxu0 0
      %1812 = vmatpush1.bf16.msra.mxu0 0
      %1813 = vmatprep.subr.bf16.mxu0 0
      %1814 = vmatpush1.bf16.msra.mxu0 0
      %1815 = vmatprep.subr.bf16.mxu0 0
      %1816 = vmatpush1.bf16.msra.mxu0 0
      %1817 = vmatprep.subr.bf16.mxu0 0
      %1818 = vmatpush1.bf16.msra.mxu0 0
      %1819 = vmatprep.subr.bf16.mxu0 0
      %1820 = vmatpush1.bf16.msra.mxu0 0
      %1821 = vmatprep.subr.bf16.mxu0 0
      %1822 = vmatpush1.bf16.msra.mxu0 0
      %1823 = vmatprep.subr.bf16.mxu0 0
      %1824 = vmatpush1.bf16.msra.mxu0 0
      %1825 = vmatprep.subr.bf16.mxu0 0
      %1826 = vmatpush1.bf16.msra.mxu0 0
      %1827 = vmatprep.subr.bf16.mxu0 0
      %1828 = vmatpush1.bf16.msra.mxu0 0
      %1829 = vmatprep.subr.bf16.mxu0 0
      %1830 = vmatpush1.bf16.msra.mxu0 0
      %1831 = vmatprep.subr.bf16.mxu0 0
      %1832 = vmatpush1.bf16.msra.mxu0 0
      %1833 = vmatprep.subr.bf16.mxu0 0
      %1834 = vmatpush1.bf16.msra.mxu0 0
      %1835 = vmatprep.subr.bf16.mxu0 0
      %1836 = vmatpush1.bf16.msra.mxu0 0
      %1837 = vmatprep.mubr.bf16.mxu0 0
      %1838 = vmatmul.mubr.bf16.gmra.mrb[0].mxu0 %v1803
      %v1839 = vpop.f32.mrb[0].mxu0
      %v1840 = vadd.f32 %v1788, %v1839
      %v1841 = vpop.f32.mrb[0].mxu0
      %v1842 = vpop.f32.mrb[0].mxu0
      %v1843 = vpop.f32.mrb[0].mxu0
      %1844 = vdwg.mxu0
      %v1845 = vld [vmem:[#allocation2] sm:$0xff]
      %v1846 = vmul.f32 %v1840, 0.5
      %v1847 = vmul.f32 %v1840, %v1840
      %v1848 = vmul.f32 %v1840, %v1847
      %v1849 = vmul.f32 %v1848, 0.044715
      %v1850 = vadd.f32 %v1840, %v1849
      %v1851 = vmul.f32 %v1850, 0.7978846
      %v1852 = vtanh.pop %v1851
      %v1853 = vadd.f32 %v1852, 1.0
      %v1854 = vmul.f32 %v1846, %v1853
      %v1855 = vpack.c.bf16 %v1854, %v1854
      %v1856 = vld [vmem:[%s895] sm:$0xf]
      %v1857 = vld [vmem:[%s895 + $0x4] sm:$0xf]
      %v1858 = vld [vmem:[%s895 + $0x8] sm:$0xf]
      %v1859 = vld [vmem:[%s895 + $0xc] sm:$0xf]
      %v1860 = vld [vmem:[%s895 + $0x10] sm:$0xf]
      %v1861 = vld [vmem:[%s895 + $0x14] sm:$0xf]
      %v1862 = vld [vmem:[%s895 + $0x18] sm:$0xf]
      %v1863 = vld [vmem:[%s895 + $0x1c] sm:$0xf]
      %v1872 = vunpack.c.l.b16 %v1856
      %v1873 = vunpack.c.l.b16 %v1857
      %v1874 = vunpack.c.l.b16 %v1858
      %v1875 = vunpack.c.l.b16 %v1859
      %v1876 = vunpack.c.l.b16 %v1860
      %v1877 = vunpack.c.l.b16 %v1861
      %v1878 = vunpack.c.l.b16 %v1862
      %v1879 = vunpack.c.l.b16 %v1863
      %v1880 = vpack.c.b16 %v1873, %v1872
      %v1881 = vpack.c.b16 %v1875, %v1874
      %v1882 = vpack.c.b16 %v1877, %v1876
      %v1883 = vpack.c.b16 %v1879, %v1878
      %vm1888 = vcmask 523264
      %v1890 = vsel %vm1888, %v1855, 0
      %1892 = vmatprep.subr.bf16.mxu0 0
      %1893 = vmatpush1.bf16.msra.mxu0 %v1880
      %1894 = vmatprep.subr.bf16.mxu0 0
      %1895 = vmatpush1.bf16.msra.mxu0 %v1881
      %1896 = vmatprep.subr.bf16.mxu0 0
      %1897 = vmatpush1.bf16.msra.mxu0 %v1882
      %1898 = vmatprep.subr.bf16.mxu0 0
      %1899 = vmatpush1.bf16.msra.mxu0 %v1883
      %1900 = vmatprep.subr.bf16.mxu0 0
      %1901 = vmatpush1.bf16.msra.mxu0 0
      %1902 = vmatprep.subr.bf16.mxu0 0
      %1903 = vmatpush1.bf16.msra.mxu0 0
      %1904 = vmatprep.subr.bf16.mxu0 0
      %1905 = vmatpush1.bf16.msra.mxu0 0
      %1906 = vmatprep.subr.bf16.mxu0 0
      %1907 = vmatpush1.bf16.msra.mxu0 0
      %1908 = vmatprep.subr.bf16.mxu0 0
      %1909 = vmatpush1.bf16.msra.mxu0 0
      %1910 = vmatprep.subr.bf16.mxu0 0
      %1911 = vmatpush1.bf16.msra.mxu0 0
      %1912 = vmatprep.subr.bf16.mxu0 0
      %1913 = vmatpush1.bf16.msra.mxu0 0
      %1914 = vmatprep.subr.bf16.mxu0 0
      %1915 = vmatpush1.bf16.msra.mxu0 0
      %1916 = vmatprep.subr.bf16.mxu0 0
      %1917 = vmatpush1.bf16.msra.mxu0 0
      %1918 = vmatprep.subr.bf16.mxu0 0
      %1919 = vmatpush1.bf16.msra.mxu0 0
      %1920 = vmatprep.subr.bf16.mxu0 0
      %1921 = vmatpush1.bf16.msra.mxu0 0
      %1922 = vmatprep.subr.bf16.mxu0 0
      %1923 = vmatpush1.bf16.msra.mxu0 0
      %1924 = vmatprep.mubr.bf16.mxu0 0
      %1925 = vmatmul.mubr.bf16.gmra.mrb[0].mxu0 %v1890
      %v1926 = vpop.f32.mrb[0].mxu0
      %v1927 = vadd.f32 0.0, %v1926
      %v1928 = vpop.f32.mrb[0].mxu0
      %v1929 = vpop.f32.mrb[0].mxu0
      %v1930 = vpop.f32.mrb[0].mxu0
      %1931 = vdwg.mxu0
      %v1932 = vadd.f32 %v1845, %v1927
      %1933 = vst.msk [vmem:[#allocation2] sm:$0xff] %vm998, %v1932
      %p1934 = scmp.eq.s32.totalorder %s40, 1
      // Predicated region
      $region109: #{ext_transformer_encoder.1} parent=99 // pred_check
        %p1935 = pneg %p1934
      $region110: #{ext_transformer_encoder.1} parent=99 // pred_check_branch
        %1937 = sbr.rel (%p1935) target = $region112
      $region111: #{ext_transformer_encoder.1} parent=99 // pred_region
        %v1938 = vld [vmem:[#allocation2] sm:$0xff]
        %v1939 = vld [vmem:[%s16] sm:$0x1]
        %v1940 = vld [vmem:[%s17] sm:$0x1]
        %v1941 = vsel %vm998, %v1938, 0.0
        %1942 = vadd.xlane.f32.xlu0 %v1941
        %v1943 = vpop.xlane.xlu0 %1942
        %v1944 = vmul.f32 %v1943, %v1738
        %v1945 = vmul.f32 %v1938, %v1938
        %v1946 = vsel %vm998, %v1945, 0.0
        %1947 = vadd.xlane.f32.xlu0 %v1946
        %v1948 = vpop.xlane.xlu0 %1947
        %v1949 = vmul.f32 %v1948, %v1738
        %v1950 = vmul.f32 %v1944, %v1944
        %v1951 = vsub.f32 %v1949, %v1950
        %v1952 = vmax.f32 %v1951, 0.0
        %v1953 = vsub.f32 %v1938, %v1944
        %v1954 = vadd.f32 %v1952, 1e-06
        %v1955 = vrsqrt.pop %v1954
        %v1956 = vmul.f32 %v1953, %v1955
        %v1958 = vlaneseq
        %v1959 = vshrl.u32 %v1958, 7
        %v1960 = vsub.s32 0, %v1959
        %v1961 = vrot.slane %v1939, %v1960
        %v1963 = vmul.f32 %v1956, %v1961
        %v1965 = vlaneseq
        %v1966 = vshrl.u32 %v1965, 7
        %v1967 = vsub.s32 0, %v1966
        %v1968 = vrot.slane %v1940, %v1967
        %v1970 = vadd.f32 %v1963, %v1968
        %v1971 = vld [vmem:[%s18] sm:$0xff]
        %v1972 = vld [vmem:[%s18 + $0x8] sm:$0xff]
        %v1973 = vld [vmem:[%s18 + $0x10] sm:$0xff]
        %v1974 = vld [vmem:[%s18 + $0x18] sm:$0xff]
        %v1975 = vld [vmem:[#allocation5] sm:$0x1]
        %v1977 = vlaneseq
        %v1978 = vshrl.u32 %v1977, 7
        %v1979 = vsub.s32 0, %v1978
        %v1980 = vrot.slane %v1975, %v1979
        %v1983 = vsel %vm998, %v1970, 0
        %1985 = vmatprep.subr.mxu0 0.0
        %1986 = vmatpush1.msra.mxu0 %v1971
        %1987 = vmatprep.subr.mxu0 0.0
        %1988 = vmatpush1.msra.mxu0 %v1972
        %1989 = vmatprep.subr.mxu0 0.0
        %1990 = vmatpush1.msra.mxu0 %v1973
        %1991 = vmatprep.subr.mxu0 0.0
        %1992 = vmatpush1.msra.mxu0 %v1974
        %1993 = vmatprep.subr.mxu0 0.0
        %1994 = vmatpush1.msra.mxu0 0.0
        %1995 = vmatprep.subr.mxu0 0.0
        %1996 = vmatpush1.msra.mxu0 0.0
        %1997 = vmatprep.subr.mxu0 0.0
        %1998 = vmatpush1.msra.mxu0 0.0
        %1999 = vmatprep.subr.mxu0 0.0
        %2000 = vmatpush1.msra.mxu0 0.0
        %2001 = vmatprep.subr.mxu0 0.0
        %2002 = vmatpush1.msra.mxu0 0.0
        %2003 = vmatprep.subr.mxu0 0.0
        %2004 = vmatpush1.msra.mxu0 0.0
        %2005 = vmatprep.subr.mxu0 0.0
        %2006 = vmatpush1.msra.mxu0 0.0
        %2007 = vmatprep.subr.mxu0 0.0
        %2008 = vmatpush1.msra.mxu0 0.0
        %2009 = vmatprep.subr.mxu0 0.0
        %2010 = vmatpush1.msra.mxu0 0.0
        %2011 = vmatprep.subr.mxu0 0.0
        %2012 = vmatpush1.msra.mxu0 0.0
        %2013 = vmatprep.subr.mxu0 0.0
        %2014 = vmatpush1.msra.mxu0 0.0
        %2015 = vmatprep.subr.mxu0 0.0
        %2016 = vmatpush1.msra.mxu0 0.0
        %2017 = vmatprep.subr.mxu0 0.0
        %2018 = vmatpush1.msra.mxu0 0.0
        %2019 = vmatprep.subr.mxu0 0.0
        %2020 = vmatpush1.msra.mxu0 0.0
        %2021 = vmatprep.subr.mxu0 0.0
        %2022 = vmatpush1.msra.mxu0 0.0
        %2023 = vmatprep.subr.mxu0 0.0
        %2024 = vmatpush1.msra.mxu0 0.0
        %2025 = vmatprep.subr.mxu0 0.0
        %2026 = vmatpush1.msra.mxu0 0.0
        %2027 = vmatprep.subr.mxu0 0.0
        %2028 = vmatpush1.msra.mxu0 0.0
        %2029 = vmatprep.subr.mxu0 0.0
        %2030 = vmatpush1.msra.mxu0 0.0
        %2031 = vmatprep.subr.mxu0 0.0
        %2032 = vmatpush1.msra.mxu0 0.0
        %2033 = vmatprep.subr.mxu0 0.0
        %2034 = vmatpush1.msra.mxu0 0.0
        %2035 = vmatprep.subr.mxu0 0.0
        %2036 = vmatpush1.msra.mxu0 0.0
        %2037 = vmatprep.subr.mxu0 0.0
        %2038 = vmatpush1.msra.mxu0 0.0
        %2039 = vmatprep.subr.mxu0 0.0
        %2040 = vmatpush1.msra.mxu0 0.0
        %2041 = vmatprep.subr.mxu0 0.0
        %2042 = vmatpush1.msra.mxu0 0.0
        %2043 = vmatprep.subr.mxu0 0.0
        %2044 = vmatpush1.msra.mxu0 0.0
        %2045 = vmatprep.subr.mxu0 0.0
        %2046 = vmatpush1.msra.mxu0 0.0
        %2047 = vmatprep.subr.mxu0 0.0
        %2048 = vmatpush1.msra.mxu0 0.0
        %2049 = vmatprep.mubr.f32.mxu0 0.0
        %2050 = vmatmul.mubr.f32.gmra.mrb[0].mxu0 %v1983
        %v2051 = vpop.f32.mrb[0].mxu0
        %v2052 = vadd.f32 %v1980, %v2051
        %v2053 = vpop.f32.mrb[0].mxu0
        %2054 = vdwg.mxu0
        %v2055 = vxor.u32 %v2052, 2147483648
        %v2056 = vmul.f32 %v2055, 1.442695
        %v2057 = vpow.pop %v2056
        %v2058 = vadd.f32 %v2057, 1.0
        %v2059 = vrcp.pop %v2058
        %v2060 = vmul.f32 1.0, %v2059
        %v2061 = vld [vmem:[%s854] sm:$0xff]
        %v2062 = vmul.f32 %v2060, %v2061
        %vm2063 = vcmask 7168
        %2064 = vst.msk [vmem:[%s902] sm:$0xff] %vm2063, %v2062
      $region112: #{ext_transformer_encoder.1} parent=99 // pred_fallthru
        _
      %p2065 = scmp.lt.s32.totalorder %s39, 1
      %s2066 = scalar_select %p2065, %s39, 1
      %s2067 = smul.addr %s2066, 8
      %s2068 = scalar_lea.vmem %s20, %s2067
      %p2069 = scmp.lt.s32.totalorder %s39, 1
      %s2070 = scalar_select %p2069, %s39, 1
      %p2071 = scmp.lt.s32.totalorder %s40, 1
      %s2072 = scalar_select %p2071, %s40, 1
      %s2073 = smul.addr %s2072, 4
      %s2074 = smul.addr %s2070, 8
      %s2075 = sadd.s32 %s2073, %s2074
      %s2076 = smul.addr %s2075, 8
      %s2077 = scalar_lea.vmem %s21, %s2076
      // Predicated region
      $region113: #{ext_transformer_encoder.1} parent=99 // pred_check
        %p2078 = pneg %p560
      $region114: #{ext_transformer_encoder.1} parent=99 // pred_check_branch
        %2080 = sbr.rel (%p2078) target = $region116
      $region115: #{ext_transformer_encoder.1} parent=99 // pred_region
        _
      $region116: #{ext_transformer_encoder.1} parent=99 // pred_fallthru
        _
      // Predicated region
      $region117: #{ext_transformer_encoder.1} parent=99 // pred_check
        %p2081 = pneg %p588
      $region118: #{ext_transformer_encoder.1} parent=99 // pred_check_branch
        %2083 = sbr.rel (%p2081) target = $region120
      $region119: #{ext_transformer_encoder.1} parent=99 // pred_region
        _
      $region120: #{ext_transformer_encoder.1} parent=99 // pred_fallthru
        _
    $region100: #{ext_transformer_encoder.1} parent=5 // pred_fallthru
      _
    %p2084 = scmp.le.s32.totalorder 2, %s30
    // Predicated region
    $region121: #{ext_transformer_encoder.1} parent=5 // pred_check
      %p2085 = pneg %p2084
    $region122: #{ext_transformer_encoder.1} parent=5 // pred_check_branch
      %2087 = sbr.rel (%p2085) target = $region124
    $region123: #{ext_transformer_encoder.1} parent=5 // pred_region
      %s2088 = ssub.s32 %s30, 2
      // Predicated region
      $region125: #{ext_transformer_encoder.1} parent=123 // pred_check
        %p2089 = pneg %p566
      $region126: #{ext_transformer_encoder.1} parent=123 // pred_check_branch
        %2091 = sbr.rel (%p2089) target = $region128
      $region127: #{ext_transformer_encoder.1} parent=123 // pred_region
        %p2092 = scmp.lt.s32.totalorder %s41, 1
        %s2093 = scalar_select %p2092, %s41, 1
        %s2094 = smul.addr %s2093, 8
        %s2095 = scalar_lea.vmem %s20, %s2094
      $region128: #{ext_transformer_encoder.1} parent=123 // pred_fallthru
        _
      // Predicated region
      $region129: #{ext_transformer_encoder.1} parent=123 // pred_check
        %p2096 = pneg %p594
      $region130: #{ext_transformer_encoder.1} parent=123 // pred_check_branch
        %2098 = sbr.rel (%p2096) target = $region132
      $region131: #{ext_transformer_encoder.1} parent=123 // pred_region
        %p2099 = scmp.lt.s32.totalorder %s41, 1
        %s2100 = scalar_select %p2099, %s41, 1
        %p2101 = scmp.lt.s32.totalorder %s42, 1
        %s2102 = scalar_select %p2101, %s42, 1
        %s2103 = smul.addr %s2102, 4
        %s2104 = smul.addr %s2100, 8
        %s2105 = sadd.s32 %s2103, %s2104
        %s2106 = smul.addr %s2105, 8
        %s2107 = scalar_lea.vmem %s21, %s2106
      $region132: #{ext_transformer_encoder.1} parent=123 // pred_fallthru
        _
    $region124: #{ext_transformer_encoder.1} parent=5 // pred_fallthru
      _
  $region6: #{ext_transformer_encoder.1} parent=0 // loop_footer
    %s34 = sadd.s32 1, %s30
  $region7: #{ext_transformer_encoder.1} parent=0 // loop_footer_branch
    %29 = sbr.rel target = $region3
  $region8: #{ext_transformer_encoder.1} parent=0 // loop_exit
    _

</llo_original>
